<compile_context>
chip_gen: v7x
topology: tpu7x:2x2x1
jax: 0.10.0
libtpu: 0.0.40
codegen_flags: <defaults>
</compile_context>

<pallas_src>
import numpy as np
import jax
import jax.numpy as jnp
from jax import lax
from jax.experimental import pallas as pl
from jax.experimental.pallas import tpu as pltpu

# ---- configuration (S == H == D required by the reference forward) ----------
BATCH = 4
SEQ_LEN = 8
NUM_HEADS = 8
HEAD_DIM = 8
INPUT_DIM = NUM_HEADS * HEAD_DIM      # 64
WINDOW_SIZE = 2

B, S, H, D, E = BATCH, SEQ_LEN, NUM_HEADS, HEAD_DIM, INPUT_DIM
BS = B * S                            # 32  flattened (batch, seq) rows
HS = H * BS                           # 256 rows of the (head, batch, query) slab
assert S == H == D, "reference forward requires seq_len == num_heads == head_dim"
assert E == H * D


# ---- compile-time constant selector / mask matrices (numpy, built once) -----
def _build_constants():
    r = np.arange(HS) % BS            # flat (b, i) index of each big row
    h = np.arange(HS) // BS           # head index of each big row
    b = r // S                        # batch index of each big row
    i = r % S                         # query position of each big row
    cE = np.arange(E)                 # 64-wide column index
    cB = np.arange(BS)                # 32-wide column index
    scale = 1.0 / np.sqrt(D)

    # REPR[h*BS + r, r'] = [r' == r]      : replicate a (BS, .) slab over heads
    repr_ = (cB[None, :] == r[:, None]).astype(np.float32)                    # (HS, BS)
    repr_t = np.ascontiguousarray(repr_.T)                                    # (BS, HS)
    # HSEL[h*BS + r, h'*D + c] = [h' == h] : keep only this row's head block
    hsel = ((cE[None, :] // D) == h[:, None]).astype(np.float32)              # (HS, E)
    # COLM[h'*D + m, b'*D + m'] = scale * [m' == m] : collapse head blocks -> m,
    # replicate over batch blocks, fold in the 1/sqrt(D) score scale
    colm = (((cE[:, None] % D) == (cB[None, :] % D)).astype(np.float32) * scale)  # (E, BS)
    # BMASK[h*BS + r, b'*D + m] = [b' == b] : keep only this row's batch block
    bmask = ((cB[None, :] // D) == b[:, None]).astype(np.float32)             # (HS, BS)
    # ADDMASK: 0 where (i' == i and p >= h + window) else -inf  (torch triu mask)
    keep = ((cE[None, :] // D) == i[:, None]) & \
           ((cE[None, :] % D) >= (h[:, None] + WINDOW_SIZE))
    addmask = np.where(keep, 0.0, -np.inf).astype(np.float32)                 # (HS, E)
    # C1[i'*D + p', m*D + p] = [p' == m]   : attn @ C1 -> attn value of slot m,
    # replicated over p (off-diagonal i' blocks are exact zeros and vanish)
    c1 = ((cE[:, None] % D) == (cE[None, :] // D)).astype(np.float32)         # (E, E)
    # SELX[m*D + p, h'*D + p'] = [p == p'] : sum over m of attn*v, per output dim p'
    selx = ((cE[:, None] % D) == (cE[None, :] % D)).astype(np.float32)        # (E, E)
    return repr_, repr_t, hsel, colm, bmask, addmask, c1, selx


_REPR, _REPR_T, _HSEL, _COLM, _BMASK, _ADDMASK, _C1, _SELX = _build_constants()


# ----------------------------- fused kernel ----------------------------------
def _window_attn_kernel(x_ref, wq_ref, wk_ref, wv_ref, bq_ref, bk_ref, bv_ref,
                        repr_ref, reprt_ref, hsel_ref, colm_ref, bmask_ref,
                        amask_ref, c1_ref, selx_ref, o_ref):
    f32 = jnp.float32
    x = x_ref[...]                                                     # (32, 64)

    # -- 1. projections: three lane-aligned (32,64)@(64,64) MXU passes --------
    q = jnp.dot(x, wq_ref[...], preferred_element_type=f32) + bq_ref[...]
    k = jnp.dot(x, wk_ref[...], preferred_element_type=f32) + bk_ref[...]
    v = jnp.dot(x, wv_ref[...], preferred_element_type=f32) + bv_ref[...]

    hsel = hsel_ref[...]                                               # (256, 64)

    # -- 2. score slab: rows R = (h, b, i), cols C = (i', p) -------------------
    # q replicated over heads, head-selected, collapsed/scaled/replicated over
    # batch blocks, batch-masked -> block-diagonal lhs for the score matmul.
    q_rep = jnp.dot(repr_ref[...], q, preferred_element_type=f32)      # (256, 64)
    qs_bd = jnp.dot(q_rep * hsel, colm_ref[...],
                    preferred_element_type=f32) * bmask_ref[...]       # (256, 32)
    # scores[R, i'*D+p] = (1/sqrt(D)) * sum_m q[b,i,h,m] * k[b,m,i',p]
    scores = jnp.dot(qs_bd, k, preferred_element_type=f32) + amask_ref[...]   # (256, 64)

    # -- 3. softmax over the 64 columns (EUP reciprocal) -----------------------
    # Fully masked rows (h >= D - window) give all -inf -> NaN, matching torch.
    mx = jnp.max(scores, axis=-1, keepdims=True)
    ex = jnp.exp(scores - mx)
    den = jnp.sum(ex, axis=-1, keepdims=True)
    rec = pl.reciprocal(den, approx=True)
    rec = rec * (2.0 - den * rec)        # one Newton step -> full f32 accuracy
    attn = ex * rec                                                     # (256, 64)

    # -- 4. out[b,i,h,p] = sum_m attn[b,i,h,m] * v[b,i,m,p] --------------------
    a_rep = jnp.dot(attn, c1_ref[...], preferred_element_type=f32)      # (256, 64)
    v_rep = jnp.dot(repr_ref[...], v, preferred_element_type=f32)       # (256, 64)
    t = jnp.dot(a_rep * v_rep, selx_ref[...], preferred_element_type=f32)  # (256, 64)
    # Select (not multiply) this row's head block so NaN rows stay confined to
    # their own head when the row blocks are summed back into (32, 64).
    obe = jnp.where(hsel != 0.0, t, 0.0)

    # -- 5. ONE lane-dense (32, 64) store --------------------------------------
    o_ref[...] = jnp.dot(reprt_ref[...], obe, preferred_element_type=f32)


# ----------------------------- wrapper ----------------------------------------
@jax.jit
def window_attention(x, wq, wk, wv, bq, bk, bv):
    Bx, Sx, Ex = x.shape
    assert (Bx, Sx, Ex) == (B, S, E)
    x_flat = x.reshape(Bx * Sx, Ex)

    n_inputs = 15
    out_flat = pl.pallas_call(
        _window_attn_kernel,
        out_shape=jax.ShapeDtypeStruct((Bx * Sx, H * D), jnp.float32),
        in_specs=[pl.BlockSpec(memory_space=pltpu.MemorySpace.VMEM)] * n_inputs,
        out_specs=pl.BlockSpec(memory_space=pltpu.MemorySpace.VMEM),
    )(x_flat, wq, wk, wv,
      bq.reshape(1, Ex), bk.reshape(1, Ex), bv.reshape(1, Ex),
      _REPR, _REPR_T, _HSEL, _COLM, _BMASK, _ADDMASK, _C1, _SELX)

    return out_flat.reshape(Bx, Sx, H, D)


# ----------------------------- pure-JAX reference (mirrors torch exactly) ----
def reference(x, wq, wk, wv, bq, bk, bv):
    P = lax.Precision.HIGHEST
    Bx, Sx, Ex = x.shape
    q = (jnp.dot(x, wq, precision=P) + bq).reshape(Bx, Sx, H, D)
    k = (jnp.dot(x, wk, precision=P) + bk).reshape(Bx, Sx, H, D)
    v = (jnp.dot(x, wv, precision=P) + bv).reshape(Bx, Sx, H, D)
    scores = jnp.matmul(q, jnp.swapaxes(k, 1, 2), precision=P) / (D ** 0.5)
    win = jnp.triu(jnp.ones((Sx, Sx), jnp.float32), k=WINDOW_SIZE)
    scores = jnp.where(win == 0, -jnp.inf, scores)
    m = jnp.max(scores, axis=-1, keepdims=True)
    e = jnp.exp(scores - m)
    attn = e / jnp.sum(e, axis=-1, keepdims=True)
    return jnp.matmul(attn, v, precision=P)


if __name__ == "__main__":
    key = jax.random.PRNGKey(0)
    kx, kq, kk, kv, kbq, kbk, kbv = jax.random.split(key, 7)
    bound = 1.0 / (E ** 0.5)

    x = jax.random.normal(kx, (B, S, E), jnp.float32)
    wq = jax.random.uniform(kq, (E, E), jnp.float32, -bound, bound)
    wk = jax.random.uniform(kk, (E, E), jnp.float32, -bound, bound)
    wv = jax.random.uniform(kv, (E, E), jnp.float32, -bound, bound)
    bq = jax.random.uniform(kbq, (E,), jnp.float32, -bound, bound)
    bk = jax.random.uniform(kbk, (E,), jnp.float32, -bound, bound)
    bv = jax.random.uniform(kbv, (E,), jnp.float32, -bound, bound)

    out = window_attention(x, wq, wk, wv, bq, bk, bv)
    out = jax.block_until_ready(out)

    ref = reference(x, wq, wk, wv, bq, bk, bv)
    assert out.shape == (B, S, H, D)
    assert bool(jnp.allclose(out, ref, rtol=1e-4, atol=1e-4, equal_nan=True))
    print("KERNEL_OK")
</pallas_src>

<mosaic_0001>
module attributes {stable_mosaic.version = 11 : i64} {
  func.func @_window_attn_kernel(%arg0: memref<32x64xf32, #tpu.memory_space<vmem>>, %arg1: memref<64x64xf32, #tpu.memory_space<vmem>>, %arg2: memref<64x64xf32, #tpu.memory_space<vmem>>, %arg3: memref<64x64xf32, #tpu.memory_space<vmem>>, %arg4: memref<1x64xf32, #tpu.memory_space<vmem>>, %arg5: memref<1x64xf32, #tpu.memory_space<vmem>>, %arg6: memref<1x64xf32, #tpu.memory_space<vmem>>, %arg7: memref<256x32xf32, #tpu.memory_space<vmem>>, %arg8: memref<32x256xf32, #tpu.memory_space<vmem>>, %arg9: memref<256x64xf32, #tpu.memory_space<vmem>>, %arg10: memref<64x32xf32, #tpu.memory_space<vmem>>, %arg11: memref<256x32xf32, #tpu.memory_space<vmem>>, %arg12: memref<256x64xf32, #tpu.memory_space<vmem>>, %arg13: memref<64x64xf32, #tpu.memory_space<vmem>>, %arg14: memref<64x64xf32, #tpu.memory_space<vmem>>, %arg15: memref<32x64xf32, #tpu.memory_space<vmem>>) attributes {dimension_semantics = [], scalar_prefetch = 0 : i64, scratch_operands = 0 : i64, tpu.core_type = #tpu.core_type<tc>} {
    %c0 = arith.constant 0 : index
    %c0_0 = arith.constant 0 : index
    %0 = vector.load %arg0[%c0, %c0_0] : memref<32x64xf32, #tpu.memory_space<vmem>>, vector<32x64xf32>
    %c0_1 = arith.constant 0 : index
    %c0_2 = arith.constant 0 : index
    %1 = vector.load %arg1[%c0_1, %c0_2] : memref<64x64xf32, #tpu.memory_space<vmem>>, vector<64x64xf32>
    %cst = arith.constant dense<0.000000e+00> : vector<32x64xf32>
    %2 = tpu.matmul %0, %1, %cst {dimension_numbers = #tpu.dot_dimension_numbers<[1], [0], [0], [1], [0, 0, 1, 1], [], []>} : vector<32x64xf32>, vector<64x64xf32>, vector<32x64xf32> -> vector<32x64xf32>
    %c0_3 = arith.constant 0 : index
    %c0_4 = arith.constant 0 : index
    %3 = vector.load %arg4[%c0_3, %c0_4] : memref<1x64xf32, #tpu.memory_space<vmem>>, vector<1x64xf32>
    %4 = vector.broadcast %3 : vector<1x64xf32> to vector<32x64xf32>
    %5 = arith.addf %2, %4 : vector<32x64xf32>
    %c0_5 = arith.constant 0 : index
    %c0_6 = arith.constant 0 : index
    %6 = vector.load %arg2[%c0_5, %c0_6] : memref<64x64xf32, #tpu.memory_space<vmem>>, vector<64x64xf32>
    %cst_7 = arith.constant dense<0.000000e+00> : vector<32x64xf32>
    %7 = tpu.matmul %0, %6, %cst_7 {dimension_numbers = #tpu.dot_dimension_numbers<[1], [0], [0], [1], [0, 0, 1, 1], [], []>} : vector<32x64xf32>, vector<64x64xf32>, vector<32x64xf32> -> vector<32x64xf32>
    %c0_8 = arith.constant 0 : index
    %c0_9 = arith.constant 0 : index
    %8 = vector.load %arg5[%c0_8, %c0_9] : memref<1x64xf32, #tpu.memory_space<vmem>>, vector<1x64xf32>
    %9 = vector.broadcast %8 : vector<1x64xf32> to vector<32x64xf32>
    %10 = arith.addf %7, %9 : vector<32x64xf32>
    %c0_10 = arith.constant 0 : index
    %c0_11 = arith.constant 0 : index
    %11 = vector.load %arg3[%c0_10, %c0_11] : memref<64x64xf32, #tpu.memory_space<vmem>>, vector<64x64xf32>
    %cst_12 = arith.constant dense<0.000000e+00> : vector<32x64xf32>
    %12 = tpu.matmul %0, %11, %cst_12 {dimension_numbers = #tpu.dot_dimension_numbers<[1], [0], [0], [1], [0, 0, 1, 1], [], []>} : vector<32x64xf32>, vector<64x64xf32>, vector<32x64xf32> -> vector<32x64xf32>
    %c0_13 = arith.constant 0 : index
    %c0_14 = arith.constant 0 : index
    %13 = vector.load %arg6[%c0_13, %c0_14] : memref<1x64xf32, #tpu.memory_space<vmem>>, vector<1x64xf32>
    %14 = vector.broadcast %13 : vector<1x64xf32> to vector<32x64xf32>
    %15 = arith.addf %12, %14 : vector<32x64xf32>
    %c0_15 = arith.constant 0 : index
    %c0_16 = arith.constant 0 : index
    %16 = vector.load %arg9[%c0_15, %c0_16] : memref<256x64xf32, #tpu.memory_space<vmem>>, vector<256x64xf32>
    %c0_17 = arith.constant 0 : index
    %c0_18 = arith.constant 0 : index
    %17 = vector.load %arg7[%c0_17, %c0_18] : memref<256x32xf32, #tpu.memory_space<vmem>>, vector<256x32xf32>
    %cst_19 = arith.constant dense<0.000000e+00> : vector<256x64xf32>
    %18 = tpu.matmul %17, %5, %cst_19 {dimension_numbers = #tpu.dot_dimension_numbers<[1], [0], [0], [1], [0, 0, 1, 1], [], []>} : vector<256x32xf32>, vector<32x64xf32>, vector<256x64xf32> -> vector<256x64xf32>
    %19 = arith.mulf %18, %16 : vector<256x64xf32>
    %c0_20 = arith.constant 0 : index
    %c0_21 = arith.constant 0 : index
    %20 = vector.load %arg10[%c0_20, %c0_21] : memref<64x32xf32, #tpu.memory_space<vmem>>, vector<64x32xf32>
    %cst_22 = arith.constant dense<0.000000e+00> : vector<256x32xf32>
    %21 = tpu.matmul %19, %20, %cst_22 {dimension_numbers = #tpu.dot_dimension_numbers<[1], [0], [0], [1], [0, 0, 1, 1], [], []>} : vector<256x64xf32>, vector<64x32xf32>, vector<256x32xf32> -> vector<256x32xf32>
    %c0_23 = arith.constant 0 : index
    %c0_24 = arith.constant 0 : index
    %22 = vector.load %arg11[%c0_23, %c0_24] : memref<256x32xf32, #tpu.memory_space<vmem>>, vector<256x32xf32>
    %23 = arith.mulf %21, %22 : vector<256x32xf32>
    %cst_25 = arith.constant dense<0.000000e+00> : vector<256x64xf32>
    %24 = tpu.matmul %23, %10, %cst_25 {dimension_numbers = #tpu.dot_dimension_numbers<[1], [0], [0], [1], [0, 0, 1, 1], [], []>} : vector<256x32xf32>, vector<32x64xf32>, vector<256x64xf32> -> vector<256x64xf32>
    %c0_26 = arith.constant 0 : index
    %c0_27 = arith.constant 0 : index
    %25 = vector.load %arg12[%c0_26, %c0_27] : memref<256x64xf32, #tpu.memory_space<vmem>>, vector<256x64xf32>
    %26 = arith.addf %24, %25 : vector<256x64xf32>
    %cst_28 = arith.constant dense<0xFF800000> : vector<256xf32>
    %27 = vector.multi_reduction <maximumf>, %26, %cst_28 [1] : vector<256x64xf32> to vector<256xf32>
    %28 = vector.shape_cast %27 : vector<256xf32> to vector<256x1xf32>
    %29 = vector.broadcast %28 : vector<256x1xf32> to vector<256x64xf32>
    %30 = arith.subf %26, %29 : vector<256x64xf32>
    %31 = math.exp %30 : vector<256x64xf32>
    %cst_29 = arith.constant dense<0.000000e+00> : vector<256xf32>
    %32 = vector.multi_reduction <add>, %31, %cst_29 [1] : vector<256x64xf32> to vector<256xf32>
    %33 = vector.shape_cast %32 : vector<256xf32> to vector<256x1xf32>
    %34 = tpu.reciprocal %33 {approx = true} : vector<256x1xf32> -> vector<256x1xf32>
    %35 = arith.mulf %33, %34 : vector<256x1xf32>
    %cst_30 = arith.constant 2.000000e+00 : f32
    %36 = vector.broadcast %cst_30 : f32 to vector<256x1xf32>
    %37 = arith.subf %36, %35 : vector<256x1xf32>
    %38 = arith.mulf %34, %37 : vector<256x1xf32>
    %39 = vector.broadcast %38 : vector<256x1xf32> to vector<256x64xf32>
    %40 = arith.mulf %31, %39 : vector<256x64xf32>
    %c0_31 = arith.constant 0 : index
    %c0_32 = arith.constant 0 : index
    %41 = vector.load %arg13[%c0_31, %c0_32] : memref<64x64xf32, #tpu.memory_space<vmem>>, vector<64x64xf32>
    %cst_33 = arith.constant dense<0.000000e+00> : vector<256x64xf32>
    %42 = tpu.matmul %40, %41, %cst_33 {dimension_numbers = #tpu.dot_dimension_numbers<[1], [0], [0], [1], [0, 0, 1, 1], [], []>} : vector<256x64xf32>, vector<64x64xf32>, vector<256x64xf32> -> vector<256x64xf32>
    %c0_34 = arith.constant 0 : index
    %c0_35 = arith.constant 0 : index
    %43 = vector.load %arg7[%c0_34, %c0_35] : memref<256x32xf32, #tpu.memory_space<vmem>>, vector<256x32xf32>
    %cst_36 = arith.constant dense<0.000000e+00> : vector<256x64xf32>
    %44 = tpu.matmul %43, %15, %cst_36 {dimension_numbers = #tpu.dot_dimension_numbers<[1], [0], [0], [1], [0, 0, 1, 1], [], []>} : vector<256x32xf32>, vector<32x64xf32>, vector<256x64xf32> -> vector<256x64xf32>
    %45 = arith.mulf %42, %44 : vector<256x64xf32>
    %c0_37 = arith.constant 0 : index
    %c0_38 = arith.constant 0 : index
    %46 = vector.load %arg14[%c0_37, %c0_38] : memref<64x64xf32, #tpu.memory_space<vmem>>, vector<64x64xf32>
    %cst_39 = arith.constant dense<0.000000e+00> : vector<256x64xf32>
    %47 = tpu.matmul %45, %46, %cst_39 {dimension_numbers = #tpu.dot_dimension_numbers<[1], [0], [0], [1], [0, 0, 1, 1], [], []>} : vector<256x64xf32>, vector<64x64xf32>, vector<256x64xf32> -> vector<256x64xf32>
    %cst_40 = arith.constant 0.000000e+00 : f32
    %48 = vector.broadcast %cst_40 : f32 to vector<256x64xf32>
    %49 = arith.cmpf one, %16, %48 : vector<256x64xf32>
    %cst_41 = arith.constant 0.000000e+00 : f32
    %50 = vector.broadcast %cst_41 : f32 to vector<256x64xf32>
    %51 = arith.select %49, %47, %50 : vector<256x64xi1>, vector<256x64xf32>
    %c0_42 = arith.constant 0 : index
    %c0_43 = arith.constant 0 : index
    %52 = vector.load %arg8[%c0_42, %c0_43] : memref<32x256xf32, #tpu.memory_space<vmem>>, vector<32x256xf32>
    %cst_44 = arith.constant dense<0.000000e+00> : vector<32x64xf32>
    %53 = tpu.matmul %52, %51, %cst_44 {dimension_numbers = #tpu.dot_dimension_numbers<[1], [0], [0], [1], [0, 0, 1, 1], [], []>} : vector<32x256xf32>, vector<256x64xf32>, vector<32x64xf32> -> vector<32x64xf32>
    %c0_45 = arith.constant 0 : index
    %c0_46 = arith.constant 0 : index
    %54 = vector.load %arg15[%c0_45, %c0_46] : memref<32x64xf32, #tpu.memory_space<vmem>>, vector<32x64xf32>
    tpu.vector_store %arg15[%c0_45, %c0_46], %53 {strides = array<i32>} : memref<32x64xf32, #tpu.memory_space<vmem>>, vector<32x64xf32>,
    return
  }
}

</mosaic_0001>

<llo_original>
// kernel: window_attention.1
$region0: #{window_attention.1}
  #allocation0 [shape = 'u32[]', space=smem, size = 0x4, offset = 0x4, fixed_abs, tag = 'smem constant byte address 0x4 - core index']
  #allocation1 [shape = 'u32[144,128]{1,0:T(1,128)}', space=vmem, size = 0x12000, scoped, tag = 'internal scratch']
  %s0 = inlined_call_operand.hbm [shape: f32[32,64], index: 0, kind: input, shape index: {}]
  %s1 = inlined_call_operand.hbm [shape: f32[64,64], index: 1, kind: input, shape index: {}]
  %s2 = inlined_call_operand.hbm [shape: f32[64,64], index: 2, kind: input, shape index: {}]
  %s3 = inlined_call_operand.hbm [shape: f32[64,64], index: 3, kind: input, shape index: {}]
  %s4 = inlined_call_operand.vmem [shape: f32[1,64], index: 4, kind: input, shape index: {}]
  %s5 = inlined_call_operand.vmem [shape: f32[1,64], index: 5, kind: input, shape index: {}]
  %s6 = inlined_call_operand.vmem [shape: f32[1,64], index: 6, kind: input, shape index: {}]
  %s7 = inlined_call_operand.hbm [shape: f32[256,32], index: 7, kind: input, shape index: {}]
  %s8 = inlined_call_operand.hbm [shape: f32[32,256], index: 8, kind: input, shape index: {}]
  %s9 = inlined_call_operand.hbm [shape: f32[256,64], index: 9, kind: input, shape index: {}]
  %s10 = inlined_call_operand.hbm [shape: f32[64,32], index: 10, kind: input, shape index: {}]
  %s11 = inlined_call_operand.hbm [shape: f32[256,32], index: 11, kind: input, shape index: {}]
  %s12 = inlined_call_operand.hbm [shape: f32[256,64], index: 12, kind: input, shape index: {}]
  %s13 = inlined_call_operand.hbm [shape: f32[64,64], index: 13, kind: input, shape index: {}]
  %s14 = inlined_call_operand.vmem [shape: f32[64,64], index: 14, kind: input, shape index: {}]
  %s15 = inlined_call_operand.vmem [shape: f32[32,64], index: 15, kind: output, shape index: {}]
  %s16 = sld [smem:[#allocation0]]
  $region114: #{window_attention.1} parent=0
    _
  %s18 = ssub.s32 1, %s16
  %s19 = scalar_select 0, %s18, %s16
  $region1: #{window_attention.1} parent=0
    #allocation2 [shape = 'u8[16384]{0}', space=vmem, size = 0x4000, scoped, tag = 'input window, operand 0, single buffered']
    #allocation3 [shape = 's32[1]{0}', space=sflag, size = 0x4, scoped, tag = 'scoped memory for window_attention.1']
    #allocation4 [shape = 'u8[32768]{0}', space=vmem, size = 0x8000, scoped, tag = 'input window, operand 1, single buffered']
    #allocation5 [shape = 's32[1]{0}', space=sflag, size = 0x4, scoped, tag = 'scoped memory for window_attention.1']
    #allocation6 [shape = 'u8[32768]{0}', space=vmem, size = 0x8000, scoped, tag = 'input window, operand 2, single buffered']
    #allocation7 [shape = 'u8[32768]{0}', space=vmem, size = 0x8000, scoped, tag = 'input window, operand 3, single buffered']
    #allocation8 [shape = 's32[1]{0}', space=sflag, size = 0x4, scoped, tag = 'scoped memory for window_attention.1']
    #allocation9 [shape = 'u8[131072]{0}', space=vmem, size = 0x20000, scoped, tag = 'input window, operand 7, single buffered']
    #allocation10 [shape = 'u8[32768]{0}', space=vmem, size = 0x8000, scoped, tag = 'input window, operand 8, single buffered']
    #allocation11 [shape = 's32[1]{0}', space=sflag, size = 0x4, scoped, tag = 'scoped memory for window_attention.1']
    #allocation12 [shape = 'u8[131072]{0}', space=vmem, size = 0x20000, scoped, tag = 'input window, operand 9, single buffered']
    #allocation13 [shape = 'u8[32768]{0}', space=vmem, size = 0x8000, scoped, tag = 'input window, operand 10, single buffered']
    #allocation14 [shape = 's32[1]{0}', space=sflag, size = 0x4, scoped, tag = 'scoped memory for window_attention.1']
    #allocation15 [shape = 'u8[131072]{0}', space=vmem, size = 0x20000, scoped, tag = 'input window, operand 11, single buffered']
    #allocation16 [shape = 'u8[131072]{0}', space=vmem, size = 0x20000, scoped, tag = 'input window, operand 12, single buffered']
    #allocation17 [shape = 's32[1]{0}', space=sflag, size = 0x4, scoped, tag = 'scoped memory for window_attention.1']
    #allocation18 [shape = 'u8[32768]{0}', space=vmem, size = 0x8000, scoped, tag = 'input window, operand 13, single buffered']
    %20 = vsyncpa [#allocation3], 0
    %21 = vsyncpa [#allocation5], 0
    %22 = vsyncpa [#allocation8], 0
    %23 = vsyncpa [#allocation11], 0
    %24 = vsyncpa [#allocation14], 0
    %25 = vsyncpa [#allocation17], 0
    // Predicated region
    $region2: #{window_attention.1} parent=1 // pred_check
      _
    $region3: #{window_attention.1} parent=1 // pred_check_branch
      %27 = sbr.rel (0) target = $region5
    $region4: #{window_attention.1} parent=1 // pred_region
      %s29 = ssub.s32 512, 512
      %30 = vsyncadd [#allocation3], %s29
      %s31 = sshll.u32 [#allocation2], 4
      %s32 = int_to_ptr.vmem [resolvable:$true] %s31
      %37 = dma.hbm_to_vmem [thread:$0]  %s0, 512, %s32, [#allocation3], 128, 128, 8
    $region5: #{window_attention.1} parent=1 // pred_fallthru
      _
    // Predicated region
    $region6: #{window_attention.1} parent=1 // pred_check
      _
    $region7: #{window_attention.1} parent=1 // pred_check_branch
      %39 = sbr.rel (0) target = $region9
    $region8: #{window_attention.1} parent=1 // pred_region
      %s41 = ssub.s32 1024, 1024
      %42 = vsyncadd [#allocation5], %s41
      %s43 = sshll.u32 [#allocation4], 4
      %s44 = int_to_ptr.vmem [resolvable:$true] %s43
      %49 = dma.hbm_to_vmem [thread:$0]  %s1, 1024, %s44, [#allocation5], 128, 128, 8
    $region9: #{window_attention.1} parent=1 // pred_fallthru
      _
    // Predicated region
    $region10: #{window_attention.1} parent=1 // pred_check
      _
    $region11: #{window_attention.1} parent=1 // pred_check_branch
      %51 = sbr.rel (0) target = $region13
    $region12: #{window_attention.1} parent=1 // pred_region
      %s53 = ssub.s32 1024, 1024
      %54 = vsyncadd [#allocation5], %s53
      %s55 = sshll.u32 [#allocation6], 4
      %s56 = int_to_ptr.vmem [resolvable:$true] %s55
      %61 = dma.hbm_to_vmem [thread:$0]  %s2, 1024, %s56, [#allocation5], 128, 128, 8
    $region13: #{window_attention.1} parent=1 // pred_fallthru
      _
    // Predicated region
    $region14: #{window_attention.1} parent=1 // pred_check
      _
    $region15: #{window_attention.1} parent=1 // pred_check_branch
      %63 = sbr.rel (0) target = $region17
    $region16: #{window_attention.1} parent=1 // pred_region
      %s65 = ssub.s32 1024, 1024
      %66 = vsyncadd [#allocation8], %s65
      %s67 = sshll.u32 [#allocation7], 4
      %s68 = int_to_ptr.vmem [resolvable:$true] %s67
      %73 = dma.hbm_to_vmem [thread:$0]  %s3, 1024, %s68, [#allocation8], 128, 128, 8
    $region17: #{window_attention.1} parent=1 // pred_fallthru
      _
    // Predicated region
    $region18: #{window_attention.1} parent=1 // pred_check
      _
    $region19: #{window_attention.1} parent=1 // pred_check_branch
      %75 = sbr.rel (0) target = $region21
    $region20: #{window_attention.1} parent=1 // pred_region
      _
    $region21: #{window_attention.1} parent=1 // pred_fallthru
      _
    // Predicated region
    $region22: #{window_attention.1} parent=1 // pred_check
      _
    $region23: #{window_attention.1} parent=1 // pred_check_branch
      %77 = sbr.rel (0) target = $region25
    $region24: #{window_attention.1} parent=1 // pred_region
      _
    $region25: #{window_attention.1} parent=1 // pred_fallthru
      _
    // Predicated region
    $region26: #{window_attention.1} parent=1 // pred_check
      _
    $region27: #{window_attention.1} parent=1 // pred_check_branch
      %79 = sbr.rel (0) target = $region29
    $region28: #{window_attention.1} parent=1 // pred_region
      _
    $region29: #{window_attention.1} parent=1 // pred_fallthru
      _
    // Predicated region
    $region30: #{window_attention.1} parent=1 // pred_check
      _
    $region31: #{window_attention.1} parent=1 // pred_check_branch
      %81 = sbr.rel (0) target = $region33
    $region32: #{window_attention.1} parent=1 // pred_region
      %s83 = ssub.s32 4096, 4096
      %84 = vsyncadd [#allocation8], %s83
      %s85 = sshll.u32 [#allocation9], 4
      %s86 = int_to_ptr.vmem [resolvable:$true] %s85
      %91 = dma.hbm_to_vmem [thread:$0]  %s7, 4096, %s86, [#allocation8], 128, 128, 8
    $region33: #{window_attention.1} parent=1 // pred_fallthru
      _
    // Predicated region
    $region34: #{window_attention.1} parent=1 // pred_check
      _
    $region35: #{window_attention.1} parent=1 // pred_check_branch
      %93 = sbr.rel (0) target = $region37
    $region36: #{window_attention.1} parent=1 // pred_region
      %s95 = ssub.s32 1024, 1024
      %96 = vsyncadd [#allocation11], %s95
      %s97 = sshll.u32 [#allocation10], 4
      %s98 = int_to_ptr.vmem [resolvable:$true] %s97
      %103 = dma.hbm_to_vmem [thread:$0]  %s8, 1024, %s98, [#allocation11], 256, 256, 16
    $region37: #{window_attention.1} parent=1 // pred_fallthru
      _
    // Predicated region
    $region38: #{window_attention.1} parent=1 // pred_check
      _
    $region39: #{window_attention.1} parent=1 // pred_check_branch
      %105 = sbr.rel (0) target = $region41
    $region40: #{window_attention.1} parent=1 // pred_region
      %s107 = ssub.s32 4096, 4096
      %108 = vsyncadd [#allocation11], %s107
      %s109 = sshll.u32 [#allocation12], 4
      %s110 = int_to_ptr.vmem [resolvable:$true] %s109
      %115 = dma.hbm_to_vmem [thread:$0]  %s9, 4096, %s110, [#allocation11], 128, 128, 8
    $region41: #{window_attention.1} parent=1 // pred_fallthru
      _
    // Predicated region
    $region42: #{window_attention.1} parent=1 // pred_check
      _
    $region43: #{window_attention.1} parent=1 // pred_check_branch
      %117 = sbr.rel (0) target = $region45
    $region44: #{window_attention.1} parent=1 // pred_region
      %s119 = ssub.s32 1024, 1024
      %120 = vsyncadd [#allocation14], %s119
      %s121 = sshll.u32 [#allocation13], 4
      %s122 = int_to_ptr.vmem [resolvable:$true] %s121
      %127 = dma.hbm_to_vmem [thread:$0]  %s10, 1024, %s122, [#allocation14], 128, 128, 8
    $region45: #{window_attention.1} parent=1 // pred_fallthru
      _
    // Predicated region
    $region46: #{window_attention.1} parent=1 // pred_check
      _
    $region47: #{window_attention.1} parent=1 // pred_check_branch
      %129 = sbr.rel (0) target = $region49
    $region48: #{window_attention.1} parent=1 // pred_region
      %s131 = ssub.s32 4096, 4096
      %132 = vsyncadd [#allocation14], %s131
      %s133 = sshll.u32 [#allocation15], 4
      %s134 = int_to_ptr.vmem [resolvable:$true] %s133
      %139 = dma.hbm_to_vmem [thread:$0]  %s11, 4096, %s134, [#allocation14], 128, 128, 8
    $region49: #{window_attention.1} parent=1 // pred_fallthru
      _
    // Predicated region
    $region50: #{window_attention.1} parent=1 // pred_check
      _
    $region51: #{window_attention.1} parent=1 // pred_check_branch
      %141 = sbr.rel (0) target = $region53
    $region52: #{window_attention.1} parent=1 // pred_region
      %s143 = ssub.s32 4096, 4096
      %144 = vsyncadd [#allocation17], %s143
      %s145 = sshll.u32 [#allocation16], 4
      %s146 = int_to_ptr.vmem [resolvable:$true] %s145
      %151 = dma.hbm_to_vmem [thread:$0]  %s12, 4096, %s146, [#allocation17], 128, 128, 8
    $region53: #{window_attention.1} parent=1 // pred_fallthru
      _
    // Predicated region
    $region54: #{window_attention.1} parent=1 // pred_check
      _
    $region55: #{window_attention.1} parent=1 // pred_check_branch
      %153 = sbr.rel (0) target = $region57
    $region56: #{window_attention.1} parent=1 // pred_region
      %s155 = ssub.s32 1024, 1024
      %156 = vsyncadd [#allocation17], %s155
      %s157 = sshll.u32 [#allocation18], 4
      %s158 = int_to_ptr.vmem [resolvable:$true] %s157
      %163 = dma.hbm_to_vmem [thread:$0]  %s13, 1024, %s158, [#allocation17], 128, 128, 8
    $region57: #{window_attention.1} parent=1 // pred_fallthru
      _
    // Predicated region
    $region58: #{window_attention.1} parent=1 // pred_check
      _
    $region59: #{window_attention.1} parent=1 // pred_check_branch
      %165 = sbr.rel (0) target = $region61
    $region60: #{window_attention.1} parent=1 // pred_region
      _
    $region61: #{window_attention.1} parent=1 // pred_fallthru
      _
    // Predicated region
    $region62: #{window_attention.1} parent=1 // pred_check
      _
    $region63: #{window_attention.1} parent=1 // pred_check_branch
      %167 = sbr.rel (0) target = $region65
    $region64: #{window_attention.1} parent=1 // pred_region
      %168 = dma.done [#allocation3], 512
    $region65: #{window_attention.1} parent=1 // pred_fallthru
      _
    // Predicated region
    $region66: #{window_attention.1} parent=1 // pred_check
      _
    $region67: #{window_attention.1} parent=1 // pred_check_branch
      %170 = sbr.rel (0) target = $region69
    $region68: #{window_attention.1} parent=1 // pred_region
      %171 = dma.done [#allocation5], 1024
    $region69: #{window_attention.1} parent=1 // pred_fallthru
      _
    // Predicated region
    $region70: #{window_attention.1} parent=1 // pred_check
      _
    $region71: #{window_attention.1} parent=1 // pred_check_branch
      %173 = sbr.rel (0) target = $region73
    $region72: #{window_attention.1} parent=1 // pred_region
      %174 = dma.done [#allocation5], 1024
    $region73: #{window_attention.1} parent=1 // pred_fallthru
      _
    // Predicated region
    $region74: #{window_attention.1} parent=1 // pred_check
      _
    $region75: #{window_attention.1} parent=1 // pred_check_branch
      %176 = sbr.rel (0) target = $region77
    $region76: #{window_attention.1} parent=1 // pred_region
      %177 = dma.done [#allocation8], 1024
    $region77: #{window_attention.1} parent=1 // pred_fallthru
      _
    // Predicated region
    $region78: #{window_attention.1} parent=1 // pred_check
      _
    $region79: #{window_attention.1} parent=1 // pred_check_branch
      %179 = sbr.rel (0) target = $region81
    $region80: #{window_attention.1} parent=1 // pred_region
      %180 = dma.done [#allocation8], 4096
    $region81: #{window_attention.1} parent=1 // pred_fallthru
      _
    // Predicated region
    $region82: #{window_attention.1} parent=1 // pred_check
      _
    $region83: #{window_attention.1} parent=1 // pred_check_branch
      %182 = sbr.rel (0) target = $region85
    $region84: #{window_attention.1} parent=1 // pred_region
      %183 = dma.done [#allocation11], 1024
    $region85: #{window_attention.1} parent=1 // pred_fallthru
      _
    // Predicated region
    $region86: #{window_attention.1} parent=1 // pred_check
      _
    $region87: #{window_attention.1} parent=1 // pred_check_branch
      %185 = sbr.rel (0) target = $region89
    $region88: #{window_attention.1} parent=1 // pred_region
      %186 = dma.done [#allocation11], 4096
    $region89: #{window_attention.1} parent=1 // pred_fallthru
      _
    // Predicated region
    $region90: #{window_attention.1} parent=1 // pred_check
      _
    $region91: #{window_attention.1} parent=1 // pred_check_branch
      %188 = sbr.rel (0) target = $region93
    $region92: #{window_attention.1} parent=1 // pred_region
      %189 = dma.done [#allocation14], 1024
    $region93: #{window_attention.1} parent=1 // pred_fallthru
      _
    // Predicated region
    $region94: #{window_attention.1} parent=1 // pred_check
      _
    $region95: #{window_attention.1} parent=1 // pred_check_branch
      %191 = sbr.rel (0) target = $region97
    $region96: #{window_attention.1} parent=1 // pred_region
      %192 = dma.done [#allocation14], 4096
    $region97: #{window_attention.1} parent=1 // pred_fallthru
      _
    // Predicated region
    $region98: #{window_attention.1} parent=1 // pred_check
      _
    $region99: #{window_attention.1} parent=1 // pred_check_branch
      %194 = sbr.rel (0) target = $region101
    $region100: #{window_attention.1} parent=1 // pred_region
      %195 = dma.done [#allocation17], 4096
    $region101: #{window_attention.1} parent=1 // pred_fallthru
      _
    // Predicated region
    $region102: #{window_attention.1} parent=1 // pred_check
      _
    $region103: #{window_attention.1} parent=1 // pred_check_branch
      %197 = sbr.rel (0) target = $region105
    $region104: #{window_attention.1} parent=1 // pred_region
      %198 = dma.done [#allocation17], 1024
    $region105: #{window_attention.1} parent=1 // pred_fallthru
      _
    %v199 = vld [vmem:[#allocation2] sm:$0xff]
    %v200 = vld [vmem:[#allocation2 + $0x8] sm:$0xff]
    %v201 = vld [vmem:[#allocation2 + $0x10] sm:$0xff]
    %v202 = vld [vmem:[#allocation2 + $0x18] sm:$0xff]
    %v203 = vld [vmem:[#allocation4] sm:$0xff]
    %v204 = vld [vmem:[#allocation4 + $0x8] sm:$0xff]
    %v205 = vld [vmem:[#allocation4 + $0x10] sm:$0xff]
    %v206 = vld [vmem:[#allocation4 + $0x18] sm:$0xff]
    %v207 = vld [vmem:[#allocation4 + $0x20] sm:$0xff]
    %v208 = vld [vmem:[#allocation4 + $0x28] sm:$0xff]
    %v209 = vld [vmem:[#allocation4 + $0x30] sm:$0xff]
    %v210 = vld [vmem:[#allocation4 + $0x38] sm:$0xff]
    %v211 = vld [vmem:[%s4] sm:$0x1]
    %v213 = vlaneseq
    %v214 = vshrl.u32 %v213, 7
    %v215 = vsub.s32 0, %v214
    %v216 = vrot.slane %v211, %v215
    %vm218 = vcmask 523264
    %v220 = vsel %vm218, %v199, 0
    %v223 = vsel %vm218, %v200, 0
    %v226 = vsel %vm218, %v201, 0
    %v229 = vsel %vm218, %v202, 0
    %231 = vmatprep.subr.mxu0 0.0
    %232 = vmatpush1.msra.mxu0 %v203
    %233 = vmatprep.subr.mxu0 0.0
    %234 = vmatpush1.msra.mxu0 %v204
    %235 = vmatprep.subr.mxu0 0.0
    %236 = vmatpush1.msra.mxu0 %v205
    %237 = vmatprep.subr.mxu0 0.0
    %238 = vmatpush1.msra.mxu0 %v206
    %239 = vmatprep.subr.mxu0 0.0
    %240 = vmatpush1.msra.mxu0 %v207
    %241 = vmatprep.subr.mxu0 0.0
    %242 = vmatpush1.msra.mxu0 %v208
    %243 = vmatprep.subr.mxu0 0.0
    %244 = vmatpush1.msra.mxu0 %v209
    %245 = vmatprep.subr.mxu0 0.0
    %246 = vmatpush1.msra.mxu0 %v210
    %247 = vmatprep.subr.mxu0 0.0
    %248 = vmatpush1.msra.mxu0 0.0
    %249 = vmatprep.subr.mxu0 0.0
    %250 = vmatpush1.msra.mxu0 0.0
    %251 = vmatprep.subr.mxu0 0.0
    %252 = vmatpush1.msra.mxu0 0.0
    %253 = vmatprep.subr.mxu0 0.0
    %254 = vmatpush1.msra.mxu0 0.0
    %255 = vmatprep.subr.mxu0 0.0
    %256 = vmatpush1.msra.mxu0 0.0
    %257 = vmatprep.subr.mxu0 0.0
    %258 = vmatpush1.msra.mxu0 0.0
    %259 = vmatprep.subr.mxu0 0.0
    %260 = vmatpush1.msra.mxu0 0.0
    %261 = vmatprep.subr.mxu0 0.0
    %262 = vmatpush1.msra.mxu0 0.0
    %263 = vmatprep.subr.mxu0 0.0
    %264 = vmatpush1.msra.mxu0 0.0
    %265 = vmatprep.subr.mxu0 0.0
    %266 = vmatpush1.msra.mxu0 0.0
    %267 = vmatprep.subr.mxu0 0.0
    %268 = vmatpush1.msra.mxu0 0.0
    %269 = vmatprep.subr.mxu0 0.0
    %270 = vmatpush1.msra.mxu0 0.0
    %271 = vmatprep.subr.mxu0 0.0
    %272 = vmatpush1.msra.mxu0 0.0
    %273 = vmatprep.subr.mxu0 0.0
    %274 = vmatpush1.msra.mxu0 0.0
    %275 = vmatprep.subr.mxu0 0.0
    %276 = vmatpush1.msra.mxu0 0.0
    %277 = vmatprep.subr.mxu0 0.0
    %278 = vmatpush1.msra.mxu0 0.0
    %279 = vmatprep.subr.mxu0 0.0
    %280 = vmatpush1.msra.mxu0 0.0
    %281 = vmatprep.subr.mxu0 0.0
    %282 = vmatpush1.msra.mxu0 0.0
    %283 = vmatprep.subr.mxu0 0.0
    %284 = vmatpush1.msra.mxu0 0.0
    %285 = vmatprep.subr.mxu0 0.0
    %286 = vmatpush1.msra.mxu0 0.0
    %287 = vmatprep.subr.mxu0 0.0
    %288 = vmatpush1.msra.mxu0 0.0
    %289 = vmatprep.subr.mxu0 0.0
    %290 = vmatpush1.msra.mxu0 0.0
    %291 = vmatprep.subr.mxu0 0.0
    %292 = vmatpush1.msra.mxu0 0.0
    %293 = vmatprep.subr.mxu0 0.0
    %294 = vmatpush1.msra.mxu0 0.0
    %295 = vmatprep.mubr.f32.mxu0 0.0
    %296 = vmatmul.mubr.f32.gmra.mrb[0].mxu0 %v220
    %v297 = vpop.f32.mrb[0].mxu0
    %v298 = vadd.f32 %v216, %v297
    %v299 = vpop.f32.mrb[0].mxu0
    %300 = vmatprep.mubr.f32.mxu0 0.0
    %301 = vmatmul.mubr.f32.gmra.mrb[0].mxu0 %v223
    %v302 = vpop.f32.mrb[0].mxu0
    %v303 = vadd.f32 %v216, %v302
    %v304 = vpop.f32.mrb[0].mxu0
    %305 = vmatprep.mubr.f32.mxu0 0.0
    %306 = vmatmul.mubr.f32.gmra.mrb[0].mxu0 %v226
    %v307 = vpop.f32.mrb[0].mxu0
    %v308 = vadd.f32 %v216, %v307
    %v309 = vpop.f32.mrb[0].mxu0
    %310 = vmatprep.mubr.f32.mxu0 0.0
    %311 = vmatmul.mubr.f32.gmra.mrb[0].mxu0 %v229
    %v312 = vpop.f32.mrb[0].mxu0
    %v313 = vadd.f32 %v216, %v312
    %v314 = vpop.f32.mrb[0].mxu0
    %315 = vdwg.mxu0
    %v316 = vld [vmem:[#allocation6] sm:$0xff]
    %v317 = vld [vmem:[#allocation6 + $0x8] sm:$0xff]
    %v318 = vld [vmem:[#allocation6 + $0x10] sm:$0xff]
    %v319 = vld [vmem:[#allocation6 + $0x18] sm:$0xff]
    %v320 = vld [vmem:[#allocation6 + $0x20] sm:$0xff]
    %v321 = vld [vmem:[#allocation6 + $0x28] sm:$0xff]
    %v322 = vld [vmem:[#allocation6 + $0x30] sm:$0xff]
    %v323 = vld [vmem:[#allocation6 + $0x38] sm:$0xff]
    %v324 = vld [vmem:[%s5] sm:$0x1]
    %v326 = vlaneseq
    %v327 = vshrl.u32 %v326, 7
    %v328 = vsub.s32 0, %v327
    %v329 = vrot.slane %v324, %v328
    %331 = vmatprep.subr.mxu0 0.0
    %332 = vmatpush1.msra.mxu0 %v316
    %333 = vmatprep.subr.mxu0 0.0
    %334 = vmatpush1.msra.mxu0 %v317
    %335 = vmatprep.subr.mxu0 0.0
    %336 = vmatpush1.msra.mxu0 %v318
    %337 = vmatprep.subr.mxu0 0.0
    %338 = vmatpush1.msra.mxu0 %v319
    %339 = vmatprep.subr.mxu0 0.0
    %340 = vmatpush1.msra.mxu0 %v320
    %341 = vmatprep.subr.mxu0 0.0
    %342 = vmatpush1.msra.mxu0 %v321
    %343 = vmatprep.subr.mxu0 0.0
    %344 = vmatpush1.msra.mxu0 %v322
    %345 = vmatprep.subr.mxu0 0.0
    %346 = vmatpush1.msra.mxu0 %v323
    %347 = vmatprep.subr.mxu0 0.0
    %348 = vmatpush1.msra.mxu0 0.0
    %349 = vmatprep.subr.mxu0 0.0
    %350 = vmatpush1.msra.mxu0 0.0
    %351 = vmatprep.subr.mxu0 0.0
    %352 = vmatpush1.msra.mxu0 0.0
    %353 = vmatprep.subr.mxu0 0.0
    %354 = vmatpush1.msra.mxu0 0.0
    %355 = vmatprep.subr.mxu0 0.0
    %356 = vmatpush1.msra.mxu0 0.0
    %357 = vmatprep.subr.mxu0 0.0
    %358 = vmatpush1.msra.mxu0 0.0
    %359 = vmatprep.subr.mxu0 0.0
    %360 = vmatpush1.msra.mxu0 0.0
    %361 = vmatprep.subr.mxu0 0.0
    %362 = vmatpush1.msra.mxu0 0.0
    %363 = vmatprep.subr.mxu0 0.0
    %364 = vmatpush1.msra.mxu0 0.0
    %365 = vmatprep.subr.mxu0 0.0
    %366 = vmatpush1.msra.mxu0 0.0
    %367 = vmatprep.subr.mxu0 0.0
    %368 = vmatpush1.msra.mxu0 0.0
    %369 = vmatprep.subr.mxu0 0.0
    %370 = vmatpush1.msra.mxu0 0.0
    %371 = vmatprep.subr.mxu0 0.0
    %372 = vmatpush1.msra.mxu0 0.0
    %373 = vmatprep.subr.mxu0 0.0
    %374 = vmatpush1.msra.mxu0 0.0
    %375 = vmatprep.subr.mxu0 0.0
    %376 = vmatpush1.msra.mxu0 0.0
    %377 = vmatprep.subr.mxu0 0.0
    %378 = vmatpush1.msra.mxu0 0.0
    %379 = vmatprep.subr.mxu0 0.0
    %380 = vmatpush1.msra.mxu0 0.0
    %381 = vmatprep.subr.mxu0 0.0
    %382 = vmatpush1.msra.mxu0 0.0
    %383 = vmatprep.subr.mxu0 0.0
    %384 = vmatpush1.msra.mxu0 0.0
    %385 = vmatprep.subr.mxu0 0.0
    %386 = vmatpush1.msra.mxu0 0.0
    %387 = vmatprep.subr.mxu0 0.0
    %388 = vmatpush1.msra.mxu0 0.0
    %389 = vmatprep.subr.mxu0 0.0
    %390 = vmatpush1.msra.mxu0 0.0
    %391 = vmatprep.subr.mxu0 0.0
    %392 = vmatpush1.msra.mxu0 0.0
    %393 = vmatprep.subr.mxu0 0.0
    %394 = vmatpush1.msra.mxu0 0.0
    %395 = vmatprep.mubr.f32.mxu0 0.0
    %396 = vmatmul.mubr.f32.gmra.mrb[0].mxu0 %v220
    %v397 = vpop.f32.mrb[0].mxu0
    %v398 = vadd.f32 %v329, %v397
    %v399 = vpop.f32.mrb[0].mxu0
    %400 = vmatprep.mubr.f32.mxu0 0.0
    %401 = vmatmul.mubr.f32.gmra.mrb[0].mxu0 %v223
    %v402 = vpop.f32.mrb[0].mxu0
    %v403 = vadd.f32 %v329, %v402
    %v404 = vpop.f32.mrb[0].mxu0
    %405 = vmatprep.mubr.f32.mxu0 0.0
    %406 = vmatmul.mubr.f32.gmra.mrb[0].mxu0 %v226
    %v407 = vpop.f32.mrb[0].mxu0
    %v408 = vadd.f32 %v329, %v407
    %v409 = vpop.f32.mrb[0].mxu0
    %410 = vmatprep.mubr.f32.mxu0 0.0
    %411 = vmatmul.mubr.f32.gmra.mrb[0].mxu0 %v229
    %v412 = vpop.f32.mrb[0].mxu0
    %v413 = vadd.f32 %v329, %v412
    %v414 = vpop.f32.mrb[0].mxu0
    %415 = vdwg.mxu0
    %v416 = vld [vmem:[#allocation7] sm:$0xff]
    %v417 = vld [vmem:[#allocation7 + $0x8] sm:$0xff]
    %v418 = vld [vmem:[#allocation7 + $0x10] sm:$0xff]
    %v419 = vld [vmem:[#allocation7 + $0x18] sm:$0xff]
    %v420 = vld [vmem:[#allocation7 + $0x20] sm:$0xff]
    %v421 = vld [vmem:[#allocation7 + $0x28] sm:$0xff]
    %v422 = vld [vmem:[#allocation7 + $0x30] sm:$0xff]
    %v423 = vld [vmem:[#allocation7 + $0x38] sm:$0xff]
    %v424 = vld [vmem:[%s6] sm:$0x1]
    %v426 = vlaneseq
    %v427 = vshrl.u32 %v426, 7
    %v428 = vsub.s32 0, %v427
    %v429 = vrot.slane %v424, %v428
    %431 = vmatprep.subr.mxu0 0.0
    %432 = vmatpush1.msra.mxu0 %v416
    %433 = vmatprep.subr.mxu0 0.0
    %434 = vmatpush1.msra.mxu0 %v417
    %435 = vmatprep.subr.mxu0 0.0
    %436 = vmatpush1.msra.mxu0 %v418
    %437 = vmatprep.subr.mxu0 0.0
    %438 = vmatpush1.msra.mxu0 %v419
    %439 = vmatprep.subr.mxu0 0.0
    %440 = vmatpush1.msra.mxu0 %v420
    %441 = vmatprep.subr.mxu0 0.0
    %442 = vmatpush1.msra.mxu0 %v421
    %443 = vmatprep.subr.mxu0 0.0
    %444 = vmatpush1.msra.mxu0 %v422
    %445 = vmatprep.subr.mxu0 0.0
    %446 = vmatpush1.msra.mxu0 %v423
    %447 = vmatprep.subr.mxu0 0.0
    %448 = vmatpush1.msra.mxu0 0.0
    %449 = vmatprep.subr.mxu0 0.0
    %450 = vmatpush1.msra.mxu0 0.0
    %451 = vmatprep.subr.mxu0 0.0
    %452 = vmatpush1.msra.mxu0 0.0
    %453 = vmatprep.subr.mxu0 0.0
    %454 = vmatpush1.msra.mxu0 0.0
    %455 = vmatprep.subr.mxu0 0.0
    %456 = vmatpush1.msra.mxu0 0.0
    %457 = vmatprep.subr.mxu0 0.0
    %458 = vmatpush1.msra.mxu0 0.0
    %459 = vmatprep.subr.mxu0 0.0
    %460 = vmatpush1.msra.mxu0 0.0
    %461 = vmatprep.subr.mxu0 0.0
    %462 = vmatpush1.msra.mxu0 0.0
    %463 = vmatprep.subr.mxu0 0.0
    %464 = vmatpush1.msra.mxu0 0.0
    %465 = vmatprep.subr.mxu0 0.0
    %466 = vmatpush1.msra.mxu0 0.0
    %467 = vmatprep.subr.mxu0 0.0
    %468 = vmatpush1.msra.mxu0 0.0
    %469 = vmatprep.subr.mxu0 0.0
    %470 = vmatpush1.msra.mxu0 0.0
    %471 = vmatprep.subr.mxu0 0.0
    %472 = vmatpush1.msra.mxu0 0.0
    %473 = vmatprep.subr.mxu0 0.0
    %474 = vmatpush1.msra.mxu0 0.0
    %475 = vmatprep.subr.mxu0 0.0
    %476 = vmatpush1.msra.mxu0 0.0
    %477 = vmatprep.subr.mxu0 0.0
    %478 = vmatpush1.msra.mxu0 0.0
    %479 = vmatprep.subr.mxu0 0.0
    %480 = vmatpush1.msra.mxu0 0.0
    %481 = vmatprep.subr.mxu0 0.0
    %482 = vmatpush1.msra.mxu0 0.0
    %483 = vmatprep.subr.mxu0 0.0
    %484 = vmatpush1.msra.mxu0 0.0
    %485 = vmatprep.subr.mxu0 0.0
    %486 = vmatpush1.msra.mxu0 0.0
    %487 = vmatprep.subr.mxu0 0.0
    %488 = vmatpush1.msra.mxu0 0.0
    %489 = vmatprep.subr.mxu0 0.0
    %490 = vmatpush1.msra.mxu0 0.0
    %491 = vmatprep.subr.mxu0 0.0
    %492 = vmatpush1.msra.mxu0 0.0
    %493 = vmatprep.subr.mxu0 0.0
    %494 = vmatpush1.msra.mxu0 0.0
    %495 = vmatprep.mubr.f32.mxu0 0.0
    %496 = vmatmul.mubr.f32.gmra.mrb[0].mxu0 %v220
    %v497 = vpop.f32.mrb[0].mxu0
    %v498 = vadd.f32 %v429, %v497
    %v499 = vpop.f32.mrb[0].mxu0
    %500 = vmatprep.mubr.f32.mxu0 0.0
    %501 = vmatmul.mubr.f32.gmra.mrb[0].mxu0 %v223
    %v502 = vpop.f32.mrb[0].mxu0
    %v503 = vadd.f32 %v429, %v502
    %v504 = vpop.f32.mrb[0].mxu0
    %505 = vmatprep.mubr.f32.mxu0 0.0
    %506 = vmatmul.mubr.f32.gmra.mrb[0].mxu0 %v226
    %v507 = vpop.f32.mrb[0].mxu0
    %v508 = vadd.f32 %v429, %v507
    %v509 = vpop.f32.mrb[0].mxu0
    %510 = vmatprep.mubr.f32.mxu0 0.0
    %511 = vmatmul.mubr.f32.gmra.mrb[0].mxu0 %v229
    %v512 = vpop.f32.mrb[0].mxu0
    %v513 = vadd.f32 %v429, %v512
    %v514 = vpop.f32.mrb[0].mxu0
    %515 = vdwg.mxu0
    %v516 = vld [vmem:[#allocation12] sm:$0xff]
    %v517 = vld [vmem:[#allocation12 + $0x8] sm:$0xff]
    %v518 = vld [vmem:[#allocation12 + $0x10] sm:$0xff]
    %v519 = vld [vmem:[#allocation12 + $0x18] sm:$0xff]
    %v520 = vld [vmem:[#allocation12 + $0x20] sm:$0xff]
    %v521 = vld [vmem:[#allocation12 + $0x28] sm:$0xff]
    %v522 = vld [vmem:[#allocation12 + $0x30] sm:$0xff]
    %v523 = vld [vmem:[#allocation12 + $0x38] sm:$0xff]
    %v524 = vld [vmem:[#allocation12 + $0x40] sm:$0xff]
    %v525 = vld [vmem:[#allocation12 + $0x48] sm:$0xff]
    %v526 = vld [vmem:[#allocation12 + $0x50] sm:$0xff]
    %v527 = vld [vmem:[#allocation12 + $0x58] sm:$0xff]
    %v528 = vld [vmem:[#allocation12 + $0x60] sm:$0xff]
    %v529 = vld [vmem:[#allocation12 + $0x68] sm:$0xff]
    %v530 = vld [vmem:[#allocation12 + $0x70] sm:$0xff]
    %v531 = vld [vmem:[#allocation12 + $0x78] sm:$0xff]
    %v532 = vld [vmem:[#allocation12 + $0x80] sm:$0xff]
    %v533 = vld [vmem:[#allocation12 + $0x88] sm:$0xff]
    %v534 = vld [vmem:[#allocation12 + $0x90] sm:$0xff]
    %v535 = vld [vmem:[#allocation12 + $0x98] sm:$0xff]
    %v536 = vld [vmem:[#allocation12 + $0xa0] sm:$0xff]
    %v537 = vld [vmem:[#allocation12 + $0xa8] sm:$0xff]
    %v538 = vld [vmem:[#allocation12 + $0xb0] sm:$0xff]
    %v539 = vld [vmem:[#allocation12 + $0xb8] sm:$0xff]
    %v540 = vld [vmem:[#allocation12 + $0xc0] sm:$0xff]
    %v541 = vld [vmem:[#allocation12 + $0xc8] sm:$0xff]
    %v542 = vld [vmem:[#allocation12 + $0xd0] sm:$0xff]
    %v543 = vld [vmem:[#allocation12 + $0xd8] sm:$0xff]
    %v544 = vld [vmem:[#allocation12 + $0xe0] sm:$0xff]
    %v545 = vld [vmem:[#allocation12 + $0xe8] sm:$0xff]
    %v546 = vld [vmem:[#allocation12 + $0xf0] sm:$0xff]
    %v547 = vld [vmem:[#allocation12 + $0xf8] sm:$0xff]
    %v548 = vld [vmem:[#allocation9] sm:$0xff]
    %v549 = vld [vmem:[#allocation9 + $0x8] sm:$0xff]
    %v550 = vld [vmem:[#allocation9 + $0x10] sm:$0xff]
    %v551 = vld [vmem:[#allocation9 + $0x18] sm:$0xff]
    %v552 = vld [vmem:[#allocation9 + $0x20] sm:$0xff]
    %v553 = vld [vmem:[#allocation9 + $0x28] sm:$0xff]
    %v554 = vld [vmem:[#allocation9 + $0x30] sm:$0xff]
    %v555 = vld [vmem:[#allocation9 + $0x38] sm:$0xff]
    %v556 = vld [vmem:[#allocation9 + $0x40] sm:$0xff]
    %v557 = vld [vmem:[#allocation9 + $0x48] sm:$0xff]
    %v558 = vld [vmem:[#allocation9 + $0x50] sm:$0xff]
    %v559 = vld [vmem:[#allocation9 + $0x58] sm:$0xff]
    %v560 = vld [vmem:[#allocation9 + $0x60] sm:$0xff]
    %v561 = vld [vmem:[#allocation9 + $0x68] sm:$0xff]
    %v562 = vld [vmem:[#allocation9 + $0x70] sm:$0xff]
    %v563 = vld [vmem:[#allocation9 + $0x78] sm:$0xff]
    %v564 = vld [vmem:[#allocation9 + $0x80] sm:$0xff]
    %v565 = vld [vmem:[#allocation9 + $0x88] sm:$0xff]
    %v566 = vld [vmem:[#allocation9 + $0x90] sm:$0xff]
    %v567 = vld [vmem:[#allocation9 + $0x98] sm:$0xff]
    %v568 = vld [vmem:[#allocation9 + $0xa0] sm:$0xff]
    %v569 = vld [vmem:[#allocation9 + $0xa8] sm:$0xff]
    %v570 = vld [vmem:[#allocation9 + $0xb0] sm:$0xff]
    %v571 = vld [vmem:[#allocation9 + $0xb8] sm:$0xff]
    %v572 = vld [vmem:[#allocation9 + $0xc0] sm:$0xff]
    %v573 = vld [vmem:[#allocation9 + $0xc8] sm:$0xff]
    %v574 = vld [vmem:[#allocation9 + $0xd0] sm:$0xff]
    %v575 = vld [vmem:[#allocation9 + $0xd8] sm:$0xff]
    %v576 = vld [vmem:[#allocation9 + $0xe0] sm:$0xff]
    %v577 = vld [vmem:[#allocation9 + $0xe8] sm:$0xff]
    %v578 = vld [vmem:[#allocation9 + $0xf0] sm:$0xff]
    %v579 = vld [vmem:[#allocation9 + $0xf8] sm:$0xff]
    %vm580 = vcmask 261120
    %v582 = vsel %vm580, %v548, 0
    %v585 = vsel %vm580, %v549, 0
    %v588 = vsel %vm580, %v550, 0
    %v591 = vsel %vm580, %v551, 0
    %v594 = vsel %vm580, %v552, 0
    %v597 = vsel %vm580, %v553, 0
    %v600 = vsel %vm580, %v554, 0
    %v603 = vsel %vm580, %v555, 0
    %v606 = vsel %vm580, %v556, 0
    %v609 = vsel %vm580, %v557, 0
    %v612 = vsel %vm580, %v558, 0
    %v615 = vsel %vm580, %v559, 0
    %v618 = vsel %vm580, %v560, 0
    %v621 = vsel %vm580, %v561, 0
    %v624 = vsel %vm580, %v562, 0
    %v627 = vsel %vm580, %v563, 0
    %v630 = vsel %vm580, %v564, 0
    %v633 = vsel %vm580, %v565, 0
    %v636 = vsel %vm580, %v566, 0
    %v639 = vsel %vm580, %v567, 0
    %v642 = vsel %vm580, %v568, 0
    %v645 = vsel %vm580, %v569, 0
    %v648 = vsel %vm580, %v570, 0
    %v651 = vsel %vm580, %v571, 0
    %v654 = vsel %vm580, %v572, 0
    %v657 = vsel %vm580, %v573, 0
    %v660 = vsel %vm580, %v574, 0
    %v663 = vsel %vm580, %v575, 0
    %v666 = vsel %vm580, %v576, 0
    %v669 = vsel %vm580, %v577, 0
    %v672 = vsel %vm580, %v578, 0
    %v675 = vsel %vm580, %v579, 0
    %677 = vmatprep.subr.mxu0 0.0
    %678 = vmatpush1.msra.mxu0 %v298
    %679 = vmatprep.subr.mxu0 0.0
    %680 = vmatpush1.msra.mxu0 %v303
    %681 = vmatprep.subr.mxu0 0.0
    %682 = vmatpush1.msra.mxu0 %v308
    %683 = vmatprep.subr.mxu0 0.0
    %684 = vmatpush1.msra.mxu0 %v313
    %685 = vmatprep.subr.mxu0 0.0
    %686 = vmatpush1.msra.mxu0 0.0
    %687 = vmatprep.subr.mxu0 0.0
    %688 = vmatpush1.msra.mxu0 0.0
    %689 = vmatprep.subr.mxu0 0.0
    %690 = vmatpush1.msra.mxu0 0.0
    %691 = vmatprep.subr.mxu0 0.0
    %692 = vmatpush1.msra.mxu0 0.0
    %693 = vmatprep.subr.mxu0 0.0
    %694 = vmatpush1.msra.mxu0 0.0
    %695 = vmatprep.subr.mxu0 0.0
    %696 = vmatpush1.msra.mxu0 0.0
    %697 = vmatprep.subr.mxu0 0.0
    %698 = vmatpush1.msra.mxu0 0.0
    %699 = vmatprep.subr.mxu0 0.0
    %700 = vmatpush1.msra.mxu0 0.0
    %701 = vmatprep.subr.mxu0 0.0
    %702 = vmatpush1.msra.mxu0 0.0
    %703 = vmatprep.subr.mxu0 0.0
    %704 = vmatpush1.msra.mxu0 0.0
    %705 = vmatprep.subr.mxu0 0.0
    %706 = vmatpush1.msra.mxu0 0.0
    %707 = vmatprep.subr.mxu0 0.0
    %708 = vmatpush1.msra.mxu0 0.0
    %709 = vmatprep.subr.mxu0 0.0
    %710 = vmatpush1.msra.mxu0 0.0
    %711 = vmatprep.subr.mxu0 0.0
    %712 = vmatpush1.msra.mxu0 0.0
    %713 = vmatprep.subr.mxu0 0.0
    %714 = vmatpush1.msra.mxu0 0.0
    %715 = vmatprep.subr.mxu0 0.0
    %716 = vmatpush1.msra.mxu0 0.0
    %717 = vmatprep.subr.mxu0 0.0
    %718 = vmatpush1.msra.mxu0 0.0
    %719 = vmatprep.subr.mxu0 0.0
    %720 = vmatpush1.msra.mxu0 0.0
    %721 = vmatprep.subr.mxu0 0.0
    %722 = vmatpush1.msra.mxu0 0.0
    %723 = vmatprep.subr.mxu0 0.0
    %724 = vmatpush1.msra.mxu0 0.0
    %725 = vmatprep.subr.mxu0 0.0
    %726 = vmatpush1.msra.mxu0 0.0
    %727 = vmatprep.subr.mxu0 0.0
    %728 = vmatpush1.msra.mxu0 0.0
    %729 = vmatprep.subr.mxu0 0.0
    %730 = vmatpush1.msra.mxu0 0.0
    %731 = vmatprep.subr.mxu0 0.0
    %732 = vmatpush1.msra.mxu0 0.0
    %733 = vmatprep.subr.mxu0 0.0
    %734 = vmatpush1.msra.mxu0 0.0
    %735 = vmatprep.subr.mxu0 0.0
    %736 = vmatpush1.msra.mxu0 0.0
    %737 = vmatprep.subr.mxu0 0.0
    %738 = vmatpush1.msra.mxu0 0.0
    %739 = vmatprep.subr.mxu0 0.0
    %740 = vmatpush1.msra.mxu0 0.0
    %741 = vmatprep.mubr.f32.mxu0 0.0
    %742 = vmatmul.mubr.f32.gmra.mrb[0].mxu0 %v582
    %v743 = vpop.f32.mrb[0].mxu0
    %v744 = vadd.f32 0.0, %v743
    %v745 = vpop.f32.mrb[0].mxu0
    %746 = vmatprep.mubr.f32.mxu0 0.0
    %747 = vmatmul.mubr.f32.gmra.mrb[0].mxu0 %v585
    %v748 = vpop.f32.mrb[0].mxu0
    %v749 = vadd.f32 0.0, %v748
    %v750 = vpop.f32.mrb[0].mxu0
    %751 = vmatprep.mubr.f32.mxu0 0.0
    %752 = vmatmul.mubr.f32.gmra.mrb[0].mxu0 %v588
    %v753 = vpop.f32.mrb[0].mxu0
    %v754 = vadd.f32 0.0, %v753
    %v755 = vpop.f32.mrb[0].mxu0
    %756 = vmatprep.mubr.f32.mxu0 0.0
    %757 = vmatmul.mubr.f32.gmra.mrb[0].mxu0 %v591
    %v758 = vpop.f32.mrb[0].mxu0
    %v759 = vadd.f32 0.0, %v758
    %v760 = vpop.f32.mrb[0].mxu0
    %761 = vmatprep.mubr.f32.mxu0 0.0
    %762 = vmatmul.mubr.f32.gmra.mrb[0].mxu0 %v594
    %v763 = vpop.f32.mrb[0].mxu0
    %v764 = vadd.f32 0.0, %v763
    %v765 = vpop.f32.mrb[0].mxu0
    %766 = vmatprep.mubr.f32.mxu0 0.0
    %767 = vmatmul.mubr.f32.gmra.mrb[0].mxu0 %v597
    %v768 = vpop.f32.mrb[0].mxu0
    %v769 = vadd.f32 0.0, %v768
    %v770 = vpop.f32.mrb[0].mxu0
    %771 = vmatprep.mubr.f32.mxu0 0.0
    %772 = vmatmul.mubr.f32.gmra.mrb[0].mxu0 %v600
    %v773 = vpop.f32.mrb[0].mxu0
    %v774 = vadd.f32 0.0, %v773
    %v775 = vpop.f32.mrb[0].mxu0
    %776 = vmatprep.mubr.f32.mxu0 0.0
    %777 = vmatmul.mubr.f32.gmra.mrb[0].mxu0 %v603
    %v778 = vpop.f32.mrb[0].mxu0
    %v779 = vadd.f32 0.0, %v778
    %v780 = vpop.f32.mrb[0].mxu0
    %781 = vmatprep.mubr.f32.mxu0 0.0
    %782 = vmatmul.mubr.f32.gmra.mrb[0].mxu0 %v606
    %v783 = vpop.f32.mrb[0].mxu0
    %v784 = vadd.f32 0.0, %v783
    %v785 = vpop.f32.mrb[0].mxu0
    %786 = vmatprep.mubr.f32.mxu0 0.0
    %787 = vmatmul.mubr.f32.gmra.mrb[0].mxu0 %v609
    %v788 = vpop.f32.mrb[0].mxu0
    %v789 = vadd.f32 0.0, %v788
    %v790 = vpop.f32.mrb[0].mxu0
    %791 = vmatprep.mubr.f32.mxu0 0.0
    %792 = vmatmul.mubr.f32.gmra.mrb[0].mxu0 %v612
    %v793 = vpop.f32.mrb[0].mxu0
    %v794 = vadd.f32 0.0, %v793
    %v795 = vpop.f32.mrb[0].mxu0
    %796 = vmatprep.mubr.f32.mxu0 0.0
    %797 = vmatmul.mubr.f32.gmra.mrb[0].mxu0 %v615
    %v798 = vpop.f32.mrb[0].mxu0
    %v799 = vadd.f32 0.0, %v798
    %v800 = vpop.f32.mrb[0].mxu0
    %801 = vmatprep.mubr.f32.mxu0 0.0
    %802 = vmatmul.mubr.f32.gmra.mrb[0].mxu0 %v618
    %v803 = vpop.f32.mrb[0].mxu0
    %v804 = vadd.f32 0.0, %v803
    %v805 = vpop.f32.mrb[0].mxu0
    %806 = vmatprep.mubr.f32.mxu0 0.0
    %807 = vmatmul.mubr.f32.gmra.mrb[0].mxu0 %v621
    %v808 = vpop.f32.mrb[0].mxu0
    %v809 = vadd.f32 0.0, %v808
    %v810 = vpop.f32.mrb[0].mxu0
    %811 = vmatprep.mubr.f32.mxu0 0.0
    %812 = vmatmul.mubr.f32.gmra.mrb[0].mxu0 %v624
    %v813 = vpop.f32.mrb[0].mxu0
    %v814 = vadd.f32 0.0, %v813
    %v815 = vpop.f32.mrb[0].mxu0
    %816 = vmatprep.mubr.f32.mxu0 0.0
    %817 = vmatmul.mubr.f32.gmra.mrb[0].mxu0 %v627
    %v818 = vpop.f32.mrb[0].mxu0
    %v819 = vadd.f32 0.0, %v818
    %v820 = vpop.f32.mrb[0].mxu0
    %821 = vmatprep.mubr.f32.mxu0 0.0
    %822 = vmatmul.mubr.f32.gmra.mrb[0].mxu0 %v630
    %v823 = vpop.f32.mrb[0].mxu0
    %v824 = vadd.f32 0.0, %v823
    %v825 = vpop.f32.mrb[0].mxu0
    %826 = vmatprep.mubr.f32.mxu0 0.0
    %827 = vmatmul.mubr.f32.gmra.mrb[0].mxu0 %v633
    %v828 = vpop.f32.mrb[0].mxu0
    %v829 = vadd.f32 0.0, %v828
    %v830 = vpop.f32.mrb[0].mxu0
    %831 = vmatprep.mubr.f32.mxu0 0.0
    %832 = vmatmul.mubr.f32.gmra.mrb[0].mxu0 %v636
    %v833 = vpop.f32.mrb[0].mxu0
    %v834 = vadd.f32 0.0, %v833
    %v835 = vpop.f32.mrb[0].mxu0
    %836 = vmatprep.mubr.f32.mxu0 0.0
    %837 = vmatmul.mubr.f32.gmra.mrb[0].mxu0 %v639
    %v838 = vpop.f32.mrb[0].mxu0
    %v839 = vadd.f32 0.0, %v838
    %v840 = vpop.f32.mrb[0].mxu0
    %841 = vmatprep.mubr.f32.mxu0 0.0
    %842 = vmatmul.mubr.f32.gmra.mrb[0].mxu0 %v642
    %v843 = vpop.f32.mrb[0].mxu0
    %v844 = vadd.f32 0.0, %v843
    %v845 = vpop.f32.mrb[0].mxu0
    %846 = vmatprep.mubr.f32.mxu0 0.0
    %847 = vmatmul.mubr.f32.gmra.mrb[0].mxu0 %v645
    %v848 = vpop.f32.mrb[0].mxu0
    %v849 = vadd.f32 0.0, %v848
    %v850 = vpop.f32.mrb[0].mxu0
    %851 = vmatprep.mubr.f32.mxu0 0.0
    %852 = vmatmul.mubr.f32.gmra.mrb[0].mxu0 %v648
    %v853 = vpop.f32.mrb[0].mxu0
    %v854 = vadd.f32 0.0, %v853
    %v855 = vpop.f32.mrb[0].mxu0
    %856 = vmatprep.mubr.f32.mxu0 0.0
    %857 = vmatmul.mubr.f32.gmra.mrb[0].mxu0 %v651
    %v858 = vpop.f32.mrb[0].mxu0
    %v859 = vadd.f32 0.0, %v858
    %v860 = vpop.f32.mrb[0].mxu0
    %861 = vmatprep.mubr.f32.mxu0 0.0
    %862 = vmatmul.mubr.f32.gmra.mrb[0].mxu0 %v654
    %v863 = vpop.f32.mrb[0].mxu0
    %v864 = vadd.f32 0.0, %v863
    %v865 = vpop.f32.mrb[0].mxu0
    %866 = vmatprep.mubr.f32.mxu0 0.0
    %867 = vmatmul.mubr.f32.gmra.mrb[0].mxu0 %v657
    %v868 = vpop.f32.mrb[0].mxu0
    %v869 = vadd.f32 0.0, %v868
    %v870 = vpop.f32.mrb[0].mxu0
    %871 = vmatprep.mubr.f32.mxu0 0.0
    %872 = vmatmul.mubr.f32.gmra.mrb[0].mxu0 %v660
    %v873 = vpop.f32.mrb[0].mxu0
    %v874 = vadd.f32 0.0, %v873
    %v875 = vpop.f32.mrb[0].mxu0
    %876 = vmatprep.mubr.f32.mxu0 0.0
    %877 = vmatmul.mubr.f32.gmra.mrb[0].mxu0 %v663
    %v878 = vpop.f32.mrb[0].mxu0
    %v879 = vadd.f32 0.0, %v878
    %v880 = vpop.f32.mrb[0].mxu0
    %881 = vmatprep.mubr.f32.mxu0 0.0
    %882 = vmatmul.mubr.f32.gmra.mrb[0].mxu0 %v666
    %v883 = vpop.f32.mrb[0].mxu0
    %v884 = vadd.f32 0.0, %v883
    %v885 = vpop.f32.mrb[0].mxu0
    %886 = vmatprep.mubr.f32.mxu0 0.0
    %887 = vmatmul.mubr.f32.gmra.mrb[0].mxu0 %v669
    %v888 = vpop.f32.mrb[0].mxu0
    %v889 = vadd.f32 0.0, %v888
    %v890 = vpop.f32.mrb[0].mxu0
    %891 = vmatprep.mubr.f32.mxu0 0.0
    %892 = vmatmul.mubr.f32.gmra.mrb[0].mxu0 %v672
    %v893 = vpop.f32.mrb[0].mxu0
    %v894 = vadd.f32 0.0, %v893
    %v895 = vpop.f32.mrb[0].mxu0
    %896 = vmatprep.mubr.f32.mxu0 0.0
    %897 = vmatmul.mubr.f32.gmra.mrb[0].mxu0 %v675
    %v898 = vpop.f32.mrb[0].mxu0
    %v899 = vadd.f32 0.0, %v898
    %v900 = vpop.f32.mrb[0].mxu0
    %901 = vdwg.mxu0
    %v902 = vmul.f32 %v744, %v516
    %v903 = vmul.f32 %v749, %v517
    %v904 = vmul.f32 %v754, %v518
    %v905 = vmul.f32 %v759, %v519
    %v906 = vmul.f32 %v764, %v520
    %v907 = vmul.f32 %v769, %v521
    %v908 = vmul.f32 %v774, %v522
    %v909 = vmul.f32 %v779, %v523
    %v910 = vmul.f32 %v784, %v524
    %v911 = vmul.f32 %v789, %v525
    %v912 = vmul.f32 %v794, %v526
    %v913 = vmul.f32 %v799, %v527
    %v914 = vmul.f32 %v804, %v528
    %v915 = vmul.f32 %v809, %v529
    %v916 = vmul.f32 %v814, %v530
    %v917 = vmul.f32 %v819, %v531
    %v918 = vmul.f32 %v824, %v532
    %v919 = vmul.f32 %v829, %v533
    %v920 = vmul.f32 %v834, %v534
    %v921 = vmul.f32 %v839, %v535
    %v922 = vmul.f32 %v844, %v536
    %v923 = vmul.f32 %v849, %v537
    %v924 = vmul.f32 %v854, %v538
    %v925 = vmul.f32 %v859, %v539
    %v926 = vmul.f32 %v864, %v540
    %v927 = vmul.f32 %v869, %v541
    %v928 = vmul.f32 %v874, %v542
    %v929 = vmul.f32 %v879, %v543
    %v930 = vmul.f32 %v884, %v544
    %v931 = vmul.f32 %v889, %v545
    %v932 = vmul.f32 %v894, %v546
    %v933 = vmul.f32 %v899, %v547
    %v934 = vld [vmem:[#allocation13] sm:$0xff]
    %v935 = vld [vmem:[#allocation13 + $0x8] sm:$0xff]
    %v936 = vld [vmem:[#allocation13 + $0x10] sm:$0xff]
    %v937 = vld [vmem:[#allocation13 + $0x18] sm:$0xff]
    %v938 = vld [vmem:[#allocation13 + $0x20] sm:$0xff]
    %v939 = vld [vmem:[#allocation13 + $0x28] sm:$0xff]
    %v940 = vld [vmem:[#allocation13 + $0x30] sm:$0xff]
    %v941 = vld [vmem:[#allocation13 + $0x38] sm:$0xff]
    %v943 = vsel %vm218, %v902, 0
    %v946 = vsel %vm218, %v903, 0
    %v949 = vsel %vm218, %v904, 0
    %v952 = vsel %vm218, %v905, 0
    %v955 = vsel %vm218, %v906, 0
    %v958 = vsel %vm218, %v907, 0
    %v961 = vsel %vm218, %v908, 0
    %v964 = vsel %vm218, %v909, 0
    %v967 = vsel %vm218, %v910, 0
    %v970 = vsel %vm218, %v911, 0
    %v973 = vsel %vm218, %v912, 0
    %v976 = vsel %vm218, %v913, 0
    %v979 = vsel %vm218, %v914, 0
    %v982 = vsel %vm218, %v915, 0
    %v985 = vsel %vm218, %v916, 0
    %v988 = vsel %vm218, %v917, 0
    %v991 = vsel %vm218, %v918, 0
    %v994 = vsel %vm218, %v919, 0
    %v997 = vsel %vm218, %v920, 0
    %v1000 = vsel %vm218, %v921, 0
    %v1003 = vsel %vm218, %v922, 0
    %v1006 = vsel %vm218, %v923, 0
    %v1009 = vsel %vm218, %v924, 0
    %v1012 = vsel %vm218, %v925, 0
    %v1015 = vsel %vm218, %v926, 0
    %v1018 = vsel %vm218, %v927, 0
    %v1021 = vsel %vm218, %v928, 0
    %v1024 = vsel %vm218, %v929, 0
    %v1027 = vsel %vm218, %v930, 0
    %v1030 = vsel %vm218, %v931, 0
    %v1033 = vsel %vm218, %v932, 0
    %v1036 = vsel %vm218, %v933, 0
    %1038 = vmatprep.subr.mxu0 0.0
    %1039 = vmatpush1.msra.mxu0 %v934
    %1040 = vmatprep.subr.mxu0 0.0
    %1041 = vmatpush1.msra.mxu0 %v935
    %1042 = vmatprep.subr.mxu0 0.0
    %1043 = vmatpush1.msra.mxu0 %v936
    %1044 = vmatprep.subr.mxu0 0.0
    %1045 = vmatpush1.msra.mxu0 %v937
    %1046 = vmatprep.subr.mxu0 0.0
    %1047 = vmatpush1.msra.mxu0 %v938
    %1048 = vmatprep.subr.mxu0 0.0
    %1049 = vmatpush1.msra.mxu0 %v939
    %1050 = vmatprep.subr.mxu0 0.0
    %1051 = vmatpush1.msra.mxu0 %v940
    %1052 = vmatprep.subr.mxu0 0.0
    %1053 = vmatpush1.msra.mxu0 %v941
    %1054 = vmatprep.subr.mxu0 0.0
    %1055 = vmatpush1.msra.mxu0 0.0
    %1056 = vmatprep.subr.mxu0 0.0
    %1057 = vmatpush1.msra.mxu0 0.0
    %1058 = vmatprep.subr.mxu0 0.0
    %1059 = vmatpush1.msra.mxu0 0.0
    %1060 = vmatprep.subr.mxu0 0.0
    %1061 = vmatpush1.msra.mxu0 0.0
    %1062 = vmatprep.subr.mxu0 0.0
    %1063 = vmatpush1.msra.mxu0 0.0
    %1064 = vmatprep.subr.mxu0 0.0
    %1065 = vmatpush1.msra.mxu0 0.0
    %1066 = vmatprep.subr.mxu0 0.0
    %1067 = vmatpush1.msra.mxu0 0.0
    %1068 = vmatprep.subr.mxu0 0.0
    %1069 = vmatpush1.msra.mxu0 0.0
    %1070 = vmatprep.subr.mxu0 0.0
    %1071 = vmatpush1.msra.mxu0 0.0
    %1072 = vmatprep.subr.mxu0 0.0
    %1073 = vmatpush1.msra.mxu0 0.0
    %1074 = vmatprep.subr.mxu0 0.0
    %1075 = vmatpush1.msra.mxu0 0.0
    %1076 = vmatprep.subr.mxu0 0.0
    %1077 = vmatpush1.msra.mxu0 0.0
    %1078 = vmatprep.subr.mxu0 0.0
    %1079 = vmatpush1.msra.mxu0 0.0
    %1080 = vmatprep.subr.mxu0 0.0
    %1081 = vmatpush1.msra.mxu0 0.0
    %1082 = vmatprep.subr.mxu0 0.0
    %1083 = vmatpush1.msra.mxu0 0.0
    %1084 = vmatprep.subr.mxu0 0.0
    %1085 = vmatpush1.msra.mxu0 0.0
    %1086 = vmatprep.subr.mxu0 0.0
    %1087 = vmatpush1.msra.mxu0 0.0
    %1088 = vmatprep.subr.mxu0 0.0
    %1089 = vmatpush1.msra.mxu0 0.0
    %1090 = vmatprep.subr.mxu0 0.0
    %1091 = vmatpush1.msra.mxu0 0.0
    %1092 = vmatprep.subr.mxu0 0.0
    %1093 = vmatpush1.msra.mxu0 0.0
    %1094 = vmatprep.subr.mxu0 0.0
    %1095 = vmatpush1.msra.mxu0 0.0
    %1096 = vmatprep.subr.mxu0 0.0
    %1097 = vmatpush1.msra.mxu0 0.0
    %1098 = vmatprep.subr.mxu0 0.0
    %1099 = vmatpush1.msra.mxu0 0.0
    %1100 = vmatprep.subr.mxu0 0.0
    %1101 = vmatpush1.msra.mxu0 0.0
    %1102 = vmatprep.mubr.f32.mxu0 0.0
    %1103 = vmatmul.mubr.f32.gmra.mrb[0].mxu0 %v943
    %v1104 = vpop.f32.mrb[0].mxu0
    %v1105 = vadd.f32 0.0, %v1104
    %v1106 = vpop.f32.mrb[0].mxu0
    %1107 = vmatprep.mubr.f32.mxu0 0.0
    %1108 = vmatmul.mubr.f32.gmra.mrb[0].mxu0 %v946
    %v1109 = vpop.f32.mrb[0].mxu0
    %v1110 = vadd.f32 0.0, %v1109
    %v1111 = vpop.f32.mrb[0].mxu0
    %1112 = vmatprep.mubr.f32.mxu0 0.0
    %1113 = vmatmul.mubr.f32.gmra.mrb[0].mxu0 %v949
    %v1114 = vpop.f32.mrb[0].mxu0
    %v1115 = vadd.f32 0.0, %v1114
    %v1116 = vpop.f32.mrb[0].mxu0
    %1117 = vmatprep.mubr.f32.mxu0 0.0
    %1118 = vmatmul.mubr.f32.gmra.mrb[0].mxu0 %v952
    %v1119 = vpop.f32.mrb[0].mxu0
    %v1120 = vadd.f32 0.0, %v1119
    %v1121 = vpop.f32.mrb[0].mxu0
    %1122 = vmatprep.mubr.f32.mxu0 0.0
    %1123 = vmatmul.mubr.f32.gmra.mrb[0].mxu0 %v955
    %v1124 = vpop.f32.mrb[0].mxu0
    %v1125 = vadd.f32 0.0, %v1124
    %v1126 = vpop.f32.mrb[0].mxu0
    %1127 = vmatprep.mubr.f32.mxu0 0.0
    %1128 = vmatmul.mubr.f32.gmra.mrb[0].mxu0 %v958
    %v1129 = vpop.f32.mrb[0].mxu0
    %v1130 = vadd.f32 0.0, %v1129
    %v1131 = vpop.f32.mrb[0].mxu0
    %1132 = vmatprep.mubr.f32.mxu0 0.0
    %1133 = vmatmul.mubr.f32.gmra.mrb[0].mxu0 %v961
    %v1134 = vpop.f32.mrb[0].mxu0
    %v1135 = vadd.f32 0.0, %v1134
    %v1136 = vpop.f32.mrb[0].mxu0
    %1137 = vmatprep.mubr.f32.mxu0 0.0
    %1138 = vmatmul.mubr.f32.gmra.mrb[0].mxu0 %v964
    %v1139 = vpop.f32.mrb[0].mxu0
    %v1140 = vadd.f32 0.0, %v1139
    %v1141 = vpop.f32.mrb[0].mxu0
    %1142 = vmatprep.mubr.f32.mxu0 0.0
    %1143 = vmatmul.mubr.f32.gmra.mrb[0].mxu0 %v967
    %v1144 = vpop.f32.mrb[0].mxu0
    %v1145 = vadd.f32 0.0, %v1144
    %v1146 = vpop.f32.mrb[0].mxu0
    %1147 = vmatprep.mubr.f32.mxu0 0.0
    %1148 = vmatmul.mubr.f32.gmra.mrb[0].mxu0 %v970
    %v1149 = vpop.f32.mrb[0].mxu0
    %v1150 = vadd.f32 0.0, %v1149
    %v1151 = vpop.f32.mrb[0].mxu0
    %1152 = vmatprep.mubr.f32.mxu0 0.0
    %1153 = vmatmul.mubr.f32.gmra.mrb[0].mxu0 %v973
    %v1154 = vpop.f32.mrb[0].mxu0
    %v1155 = vadd.f32 0.0, %v1154
    %v1156 = vpop.f32.mrb[0].mxu0
    %1157 = vmatprep.mubr.f32.mxu0 0.0
    %1158 = vmatmul.mubr.f32.gmra.mrb[0].mxu0 %v976
    %v1159 = vpop.f32.mrb[0].mxu0
    %v1160 = vadd.f32 0.0, %v1159
    %v1161 = vpop.f32.mrb[0].mxu0
    %1162 = vmatprep.mubr.f32.mxu0 0.0
    %1163 = vmatmul.mubr.f32.gmra.mrb[0].mxu0 %v979
    %v1164 = vpop.f32.mrb[0].mxu0
    %v1165 = vadd.f32 0.0, %v1164
    %v1166 = vpop.f32.mrb[0].mxu0
    %1167 = vmatprep.mubr.f32.mxu0 0.0
    %1168 = vmatmul.mubr.f32.gmra.mrb[0].mxu0 %v982
    %v1169 = vpop.f32.mrb[0].mxu0
    %v1170 = vadd.f32 0.0, %v1169
    %v1171 = vpop.f32.mrb[0].mxu0
    %1172 = vmatprep.mubr.f32.mxu0 0.0
    %1173 = vmatmul.mubr.f32.gmra.mrb[0].mxu0 %v985
    %v1174 = vpop.f32.mrb[0].mxu0
    %v1175 = vadd.f32 0.0, %v1174
    %v1176 = vpop.f32.mrb[0].mxu0
    %1177 = vmatprep.mubr.f32.mxu0 0.0
    %1178 = vmatmul.mubr.f32.gmra.mrb[0].mxu0 %v988
    %v1179 = vpop.f32.mrb[0].mxu0
    %v1180 = vadd.f32 0.0, %v1179
    %v1181 = vpop.f32.mrb[0].mxu0
    %1182 = vmatprep.mubr.f32.mxu0 0.0
    %1183 = vmatmul.mubr.f32.gmra.mrb[0].mxu0 %v991
    %v1184 = vpop.f32.mrb[0].mxu0
    %v1185 = vadd.f32 0.0, %v1184
    %v1186 = vpop.f32.mrb[0].mxu0
    %1187 = vmatprep.mubr.f32.mxu0 0.0
    %1188 = vmatmul.mubr.f32.gmra.mrb[0].mxu0 %v994
    %v1189 = vpop.f32.mrb[0].mxu0
    %v1190 = vadd.f32 0.0, %v1189
    %v1191 = vpop.f32.mrb[0].mxu0
    %1192 = vmatprep.mubr.f32.mxu0 0.0
    %1193 = vmatmul.mubr.f32.gmra.mrb[0].mxu0 %v997
    %v1194 = vpop.f32.mrb[0].mxu0
    %v1195 = vadd.f32 0.0, %v1194
    %v1196 = vpop.f32.mrb[0].mxu0
    %1197 = vmatprep.mubr.f32.mxu0 0.0
    %1198 = vmatmul.mubr.f32.gmra.mrb[0].mxu0 %v1000
    %v1199 = vpop.f32.mrb[0].mxu0
    %v1200 = vadd.f32 0.0, %v1199
    %v1201 = vpop.f32.mrb[0].mxu0
    %1202 = vmatprep.mubr.f32.mxu0 0.0
    %1203 = vmatmul.mubr.f32.gmra.mrb[0].mxu0 %v1003
    %v1204 = vpop.f32.mrb[0].mxu0
    %v1205 = vadd.f32 0.0, %v1204
    %v1206 = vpop.f32.mrb[0].mxu0
    %1207 = vmatprep.mubr.f32.mxu0 0.0
    %1208 = vmatmul.mubr.f32.gmra.mrb[0].mxu0 %v1006
    %v1209 = vpop.f32.mrb[0].mxu0
    %v1210 = vadd.f32 0.0, %v1209
    %v1211 = vpop.f32.mrb[0].mxu0
    %1212 = vmatprep.mubr.f32.mxu0 0.0
    %1213 = vmatmul.mubr.f32.gmra.mrb[0].mxu0 %v1009
    %v1214 = vpop.f32.mrb[0].mxu0
    %v1215 = vadd.f32 0.0, %v1214
    %v1216 = vpop.f32.mrb[0].mxu0
    %1217 = vmatprep.mubr.f32.mxu0 0.0
    %1218 = vmatmul.mubr.f32.gmra.mrb[0].mxu0 %v1012
    %v1219 = vpop.f32.mrb[0].mxu0
    %v1220 = vadd.f32 0.0, %v1219
    %v1221 = vpop.f32.mrb[0].mxu0
    %1222 = vmatprep.mubr.f32.mxu0 0.0
    %1223 = vmatmul.mubr.f32.gmra.mrb[0].mxu0 %v1015
    %v1224 = vpop.f32.mrb[0].mxu0
    %v1225 = vadd.f32 0.0, %v1224
    %v1226 = vpop.f32.mrb[0].mxu0
    %1227 = vmatprep.mubr.f32.mxu0 0.0
    %1228 = vmatmul.mubr.f32.gmra.mrb[0].mxu0 %v1018
    %v1229 = vpop.f32.mrb[0].mxu0
    %v1230 = vadd.f32 0.0, %v1229
    %v1231 = vpop.f32.mrb[0].mxu0
    %1232 = vmatprep.mubr.f32.mxu0 0.0
    %1233 = vmatmul.mubr.f32.gmra.mrb[0].mxu0 %v1021
    %v1234 = vpop.f32.mrb[0].mxu0
    %v1235 = vadd.f32 0.0, %v1234
    %v1236 = vpop.f32.mrb[0].mxu0
    %1237 = vmatprep.mubr.f32.mxu0 0.0
    %1238 = vmatmul.mubr.f32.gmra.mrb[0].mxu0 %v1024
    %v1239 = vpop.f32.mrb[0].mxu0
    %v1240 = vadd.f32 0.0, %v1239
    %v1241 = vpop.f32.mrb[0].mxu0
    %1242 = vmatprep.mubr.f32.mxu0 0.0
    %1243 = vmatmul.mubr.f32.gmra.mrb[0].mxu0 %v1027
    %v1244 = vpop.f32.mrb[0].mxu0
    %v1245 = vadd.f32 0.0, %v1244
    %v1246 = vpop.f32.mrb[0].mxu0
    %1247 = vmatprep.mubr.f32.mxu0 0.0
    %1248 = vmatmul.mubr.f32.gmra.mrb[0].mxu0 %v1030
    %v1249 = vpop.f32.mrb[0].mxu0
    %v1250 = vadd.f32 0.0, %v1249
    %v1251 = vpop.f32.mrb[0].mxu0
    %1252 = vmatprep.mubr.f32.mxu0 0.0
    %1253 = vmatmul.mubr.f32.gmra.mrb[0].mxu0 %v1033
    %v1254 = vpop.f32.mrb[0].mxu0
    %v1255 = vadd.f32 0.0, %v1254
    %v1256 = vpop.f32.mrb[0].mxu0
    %1257 = vmatprep.mubr.f32.mxu0 0.0
    %1258 = vmatmul.mubr.f32.gmra.mrb[0].mxu0 %v1036
    %v1259 = vpop.f32.mrb[0].mxu0
    %v1260 = vadd.f32 0.0, %v1259
    %v1261 = vpop.f32.mrb[0].mxu0
    %1262 = vdwg.mxu0
    %v1263 = vld [vmem:[#allocation15] sm:$0xff]
    %v1264 = vld [vmem:[#allocation15 + $0x8] sm:$0xff]
    %v1265 = vld [vmem:[#allocation15 + $0x10] sm:$0xff]
    %v1266 = vld [vmem:[#allocation15 + $0x18] sm:$0xff]
    %v1267 = vld [vmem:[#allocation15 + $0x20] sm:$0xff]
    %v1268 = vld [vmem:[#allocation15 + $0x28] sm:$0xff]
    %v1269 = vld [vmem:[#allocation15 + $0x30] sm:$0xff]
    %v1270 = vld [vmem:[#allocation15 + $0x38] sm:$0xff]
    %v1271 = vld [vmem:[#allocation15 + $0x40] sm:$0xff]
    %v1272 = vld [vmem:[#allocation15 + $0x48] sm:$0xff]
    %v1273 = vld [vmem:[#allocation15 + $0x50] sm:$0xff]
    %v1274 = vld [vmem:[#allocation15 + $0x58] sm:$0xff]
    %v1275 = vld [vmem:[#allocation15 + $0x60] sm:$0xff]
    %v1276 = vld [vmem:[#allocation15 + $0x68] sm:$0xff]
    %v1277 = vld [vmem:[#allocation15 + $0x70] sm:$0xff]
    %v1278 = vld [vmem:[#allocation15 + $0x78] sm:$0xff]
    %v1279 = vld [vmem:[#allocation15 + $0x80] sm:$0xff]
    %v1280 = vld [vmem:[#allocation15 + $0x88] sm:$0xff]
    %v1281 = vld [vmem:[#allocation15 + $0x90] sm:$0xff]
    %v1282 = vld [vmem:[#allocation15 + $0x98] sm:$0xff]
    %v1283 = vld [vmem:[#allocation15 + $0xa0] sm:$0xff]
    %v1284 = vld [vmem:[#allocation15 + $0xa8] sm:$0xff]
    %v1285 = vld [vmem:[#allocation15 + $0xb0] sm:$0xff]
    %v1286 = vld [vmem:[#allocation15 + $0xb8] sm:$0xff]
    %v1287 = vld [vmem:[#allocation15 + $0xc0] sm:$0xff]
    %v1288 = vld [vmem:[#allocation15 + $0xc8] sm:$0xff]
    %v1289 = vld [vmem:[#allocation15 + $0xd0] sm:$0xff]
    %v1290 = vld [vmem:[#allocation15 + $0xd8] sm:$0xff]
    %v1291 = vld [vmem:[#allocation15 + $0xe0] sm:$0xff]
    %v1292 = vld [vmem:[#allocation15 + $0xe8] sm:$0xff]
    %v1293 = vld [vmem:[#allocation15 + $0xf0] sm:$0xff]
    %v1294 = vld [vmem:[#allocation15 + $0xf8] sm:$0xff]
    %v1295 = vmul.f32 %v1105, %v1263
    %v1296 = vmul.f32 %v1110, %v1264
    %v1297 = vmul.f32 %v1115, %v1265
    %v1298 = vmul.f32 %v1120, %v1266
    %v1299 = vmul.f32 %v1125, %v1267
    %v1300 = vmul.f32 %v1130, %v1268
    %v1301 = vmul.f32 %v1135, %v1269
    %v1302 = vmul.f32 %v1140, %v1270
    %v1303 = vmul.f32 %v1145, %v1271
    %v1304 = vmul.f32 %v1150, %v1272
    %v1305 = vmul.f32 %v1155, %v1273
    %v1306 = vmul.f32 %v1160, %v1274
    %v1307 = vmul.f32 %v1165, %v1275
    %v1308 = vmul.f32 %v1170, %v1276
    %v1309 = vmul.f32 %v1175, %v1277
    %v1310 = vmul.f32 %v1180, %v1278
    %v1311 = vmul.f32 %v1185, %v1279
    %v1312 = vmul.f32 %v1190, %v1280
    %v1313 = vmul.f32 %v1195, %v1281
    %v1314 = vmul.f32 %v1200, %v1282
    %v1315 = vmul.f32 %v1205, %v1283
    %v1316 = vmul.f32 %v1210, %v1284
    %v1317 = vmul.f32 %v1215, %v1285
    %v1318 = vmul.f32 %v1220, %v1286
    %v1319 = vmul.f32 %v1225, %v1287
    %v1320 = vmul.f32 %v1230, %v1288
    %v1321 = vmul.f32 %v1235, %v1289
    %v1322 = vmul.f32 %v1240, %v1290
    %v1323 = vmul.f32 %v1245, %v1291
    %v1324 = vmul.f32 %v1250, %v1292
    %v1325 = vmul.f32 %v1255, %v1293
    %v1326 = vmul.f32 %v1260, %v1294
    %v1327 = vld [vmem:[#allocation16] sm:$0xff]
    %v1328 = vld [vmem:[#allocation16 + $0x8] sm:$0xff]
    %v1329 = vld [vmem:[#allocation16 + $0x10] sm:$0xff]
    %v1330 = vld [vmem:[#allocation16 + $0x18] sm:$0xff]
    %v1331 = vld [vmem:[#allocation16 + $0x20] sm:$0xff]
    %v1332 = vld [vmem:[#allocation16 + $0x28] sm:$0xff]
    %v1333 = vld [vmem:[#allocation16 + $0x30] sm:$0xff]
    %v1334 = vld [vmem:[#allocation16 + $0x38] sm:$0xff]
    %v1335 = vld [vmem:[#allocation16 + $0x40] sm:$0xff]
    %v1336 = vld [vmem:[#allocation16 + $0x48] sm:$0xff]
    %v1337 = vld [vmem:[#allocation16 + $0x50] sm:$0xff]
    %v1338 = vld [vmem:[#allocation16 + $0x58] sm:$0xff]
    %v1339 = vld [vmem:[#allocation16 + $0x60] sm:$0xff]
    %v1340 = vld [vmem:[#allocation16 + $0x68] sm:$0xff]
    %v1341 = vld [vmem:[#allocation16 + $0x70] sm:$0xff]
    %v1342 = vld [vmem:[#allocation16 + $0x78] sm:$0xff]
    %v1343 = vld [vmem:[#allocation16 + $0x80] sm:$0xff]
    %v1344 = vld [vmem:[#allocation16 + $0x88] sm:$0xff]
    %v1345 = vld [vmem:[#allocation16 + $0x90] sm:$0xff]
    %v1346 = vld [vmem:[#allocation16 + $0x98] sm:$0xff]
    %v1347 = vld [vmem:[#allocation16 + $0xa0] sm:$0xff]
    %v1348 = vld [vmem:[#allocation16 + $0xa8] sm:$0xff]
    %v1349 = vld [vmem:[#allocation16 + $0xb0] sm:$0xff]
    %v1350 = vld [vmem:[#allocation16 + $0xb8] sm:$0xff]
    %v1351 = vld [vmem:[#allocation16 + $0xc0] sm:$0xff]
    %v1352 = vld [vmem:[#allocation16 + $0xc8] sm:$0xff]
    %v1353 = vld [vmem:[#allocation16 + $0xd0] sm:$0xff]
    %v1354 = vld [vmem:[#allocation16 + $0xd8] sm:$0xff]
    %v1355 = vld [vmem:[#allocation16 + $0xe0] sm:$0xff]
    %v1356 = vld [vmem:[#allocation16 + $0xe8] sm:$0xff]
    %v1357 = vld [vmem:[#allocation16 + $0xf0] sm:$0xff]
    %v1358 = vld [vmem:[#allocation16 + $0xf8] sm:$0xff]
    %v1360 = vsel %vm580, %v1295, 0
    %v1363 = vsel %vm580, %v1296, 0
    %v1366 = vsel %vm580, %v1297, 0
    %v1369 = vsel %vm580, %v1298, 0
    %v1372 = vsel %vm580, %v1299, 0
    %v1375 = vsel %vm580, %v1300, 0
    %v1378 = vsel %vm580, %v1301, 0
    %v1381 = vsel %vm580, %v1302, 0
    %v1384 = vsel %vm580, %v1303, 0
    %v1387 = vsel %vm580, %v1304, 0
    %v1390 = vsel %vm580, %v1305, 0
    %v1393 = vsel %vm580, %v1306, 0
    %v1396 = vsel %vm580, %v1307, 0
    %v1399 = vsel %vm580, %v1308, 0
    %v1402 = vsel %vm580, %v1309, 0
    %v1405 = vsel %vm580, %v1310, 0
    %v1408 = vsel %vm580, %v1311, 0
    %v1411 = vsel %vm580, %v1312, 0
    %v1414 = vsel %vm580, %v1313, 0
    %v1417 = vsel %vm580, %v1314, 0
    %v1420 = vsel %vm580, %v1315, 0
    %v1423 = vsel %vm580, %v1316, 0
    %v1426 = vsel %vm580, %v1317, 0
    %v1429 = vsel %vm580, %v1318, 0
    %v1432 = vsel %vm580, %v1319, 0
    %v1435 = vsel %vm580, %v1320, 0
    %v1438 = vsel %vm580, %v1321, 0
    %v1441 = vsel %vm580, %v1322, 0
    %v1444 = vsel %vm580, %v1323, 0
    %v1447 = vsel %vm580, %v1324, 0
    %v1450 = vsel %vm580, %v1325, 0
    %v1453 = vsel %vm580, %v1326, 0
    %1455 = vmatprep.subr.mxu0 0.0
    %1456 = vmatpush1.msra.mxu0 %v398
    %1457 = vmatprep.subr.mxu0 0.0
    %1458 = vmatpush1.msra.mxu0 %v403
    %1459 = vmatprep.subr.mxu0 0.0
    %1460 = vmatpush1.msra.mxu0 %v408
    %1461 = vmatprep.subr.mxu0 0.0
    %1462 = vmatpush1.msra.mxu0 %v413
    %1463 = vmatprep.subr.mxu0 0.0
    %1464 = vmatpush1.msra.mxu0 0.0
    %1465 = vmatprep.subr.mxu0 0.0
    %1466 = vmatpush1.msra.mxu0 0.0
    %1467 = vmatprep.subr.mxu0 0.0
    %1468 = vmatpush1.msra.mxu0 0.0
    %1469 = vmatprep.subr.mxu0 0.0
    %1470 = vmatpush1.msra.mxu0 0.0
    %1471 = vmatprep.subr.mxu0 0.0
    %1472 = vmatpush1.msra.mxu0 0.0
    %1473 = vmatprep.subr.mxu0 0.0
    %1474 = vmatpush1.msra.mxu0 0.0
    %1475 = vmatprep.subr.mxu0 0.0
    %1476 = vmatpush1.msra.mxu0 0.0
    %1477 = vmatprep.subr.mxu0 0.0
    %1478 = vmatpush1.msra.mxu0 0.0
    %1479 = vmatprep.subr.mxu0 0.0
    %1480 = vmatpush1.msra.mxu0 0.0
    %1481 = vmatprep.subr.mxu0 0.0
    %1482 = vmatpush1.msra.mxu0 0.0
    %1483 = vmatprep.subr.mxu0 0.0
    %1484 = vmatpush1.msra.mxu0 0.0
    %1485 = vmatprep.subr.mxu0 0.0
    %1486 = vmatpush1.msra.mxu0 0.0
    %1487 = vmatprep.subr.mxu0 0.0
    %1488 = vmatpush1.msra.mxu0 0.0
    %1489 = vmatprep.subr.mxu0 0.0
    %1490 = vmatpush1.msra.mxu0 0.0
    %1491 = vmatprep.subr.mxu0 0.0
    %1492 = vmatpush1.msra.mxu0 0.0
    %1493 = vmatprep.subr.mxu0 0.0
    %1494 = vmatpush1.msra.mxu0 0.0
    %1495 = vmatprep.subr.mxu0 0.0
    %1496 = vmatpush1.msra.mxu0 0.0
    %1497 = vmatprep.subr.mxu0 0.0
    %1498 = vmatpush1.msra.mxu0 0.0
    %1499 = vmatprep.subr.mxu0 0.0
    %1500 = vmatpush1.msra.mxu0 0.0
    %1501 = vmatprep.subr.mxu0 0.0
    %1502 = vmatpush1.msra.mxu0 0.0
    %1503 = vmatprep.subr.mxu0 0.0
    %1504 = vmatpush1.msra.mxu0 0.0
    %1505 = vmatprep.subr.mxu0 0.0
    %1506 = vmatpush1.msra.mxu0 0.0
    %1507 = vmatprep.subr.mxu0 0.0
    %1508 = vmatpush1.msra.mxu0 0.0
    %1509 = vmatprep.subr.mxu0 0.0
    %1510 = vmatpush1.msra.mxu0 0.0
    %1511 = vmatprep.subr.mxu0 0.0
    %1512 = vmatpush1.msra.mxu0 0.0
    %1513 = vmatprep.subr.mxu0 0.0
    %1514 = vmatpush1.msra.mxu0 0.0
    %1515 = vmatprep.subr.mxu0 0.0
    %1516 = vmatpush1.msra.mxu0 0.0
    %1517 = vmatprep.subr.mxu0 0.0
    %1518 = vmatpush1.msra.mxu0 0.0
    %1519 = vmatprep.mubr.f32.mxu0 0.0
    %1520 = vmatmul.mubr.f32.gmra.mrb[0].mxu0 %v1360
    %v1521 = vpop.f32.mrb[0].mxu0
    %v1522 = vadd.f32 %v1327, %v1521
    %v1523 = vpop.f32.mrb[0].mxu0
    %1524 = vmatprep.mubr.f32.mxu0 0.0
    %1525 = vmatmul.mubr.f32.gmra.mrb[0].mxu0 %v1363
    %v1526 = vpop.f32.mrb[0].mxu0
    %v1527 = vadd.f32 %v1328, %v1526
    %v1528 = vpop.f32.mrb[0].mxu0
    %1529 = vmatprep.mubr.f32.mxu0 0.0
    %1530 = vmatmul.mubr.f32.gmra.mrb[0].mxu0 %v1366
    %v1531 = vpop.f32.mrb[0].mxu0
    %v1532 = vadd.f32 %v1329, %v1531
    %v1533 = vpop.f32.mrb[0].mxu0
    %1534 = vmatprep.mubr.f32.mxu0 0.0
    %1535 = vmatmul.mubr.f32.gmra.mrb[0].mxu0 %v1369
    %v1536 = vpop.f32.mrb[0].mxu0
    %v1537 = vadd.f32 %v1330, %v1536
    %v1538 = vpop.f32.mrb[0].mxu0
    %1539 = vmatprep.mubr.f32.mxu0 0.0
    %1540 = vmatmul.mubr.f32.gmra.mrb[0].mxu0 %v1372
    %v1541 = vpop.f32.mrb[0].mxu0
    %v1542 = vadd.f32 %v1331, %v1541
    %v1543 = vpop.f32.mrb[0].mxu0
    %1544 = vmatprep.mubr.f32.mxu0 0.0
    %1545 = vmatmul.mubr.f32.gmra.mrb[0].mxu0 %v1375
    %v1546 = vpop.f32.mrb[0].mxu0
    %v1547 = vadd.f32 %v1332, %v1546
    %v1548 = vpop.f32.mrb[0].mxu0
    %1549 = vmatprep.mubr.f32.mxu0 0.0
    %1550 = vmatmul.mubr.f32.gmra.mrb[0].mxu0 %v1378
    %v1551 = vpop.f32.mrb[0].mxu0
    %v1552 = vadd.f32 %v1333, %v1551
    %v1553 = vpop.f32.mrb[0].mxu0
    %1554 = vmatprep.mubr.f32.mxu0 0.0
    %1555 = vmatmul.mubr.f32.gmra.mrb[0].mxu0 %v1381
    %v1556 = vpop.f32.mrb[0].mxu0
    %v1557 = vadd.f32 %v1334, %v1556
    %v1558 = vpop.f32.mrb[0].mxu0
    %1559 = vmatprep.mubr.f32.mxu0 0.0
    %1560 = vmatmul.mubr.f32.gmra.mrb[0].mxu0 %v1384
    %v1561 = vpop.f32.mrb[0].mxu0
    %v1562 = vadd.f32 %v1335, %v1561
    %v1563 = vpop.f32.mrb[0].mxu0
    %1564 = vmatprep.mubr.f32.mxu0 0.0
    %1565 = vmatmul.mubr.f32.gmra.mrb[0].mxu0 %v1387
    %v1566 = vpop.f32.mrb[0].mxu0
    %v1567 = vadd.f32 %v1336, %v1566
    %v1568 = vpop.f32.mrb[0].mxu0
    %1569 = vmatprep.mubr.f32.mxu0 0.0
    %1570 = vmatmul.mubr.f32.gmra.mrb[0].mxu0 %v1390
    %v1571 = vpop.f32.mrb[0].mxu0
    %v1572 = vadd.f32 %v1337, %v1571
    %v1573 = vpop.f32.mrb[0].mxu0
    %1574 = vmatprep.mubr.f32.mxu0 0.0
    %1575 = vmatmul.mubr.f32.gmra.mrb[0].mxu0 %v1393
    %v1576 = vpop.f32.mrb[0].mxu0
    %v1577 = vadd.f32 %v1338, %v1576
    %v1578 = vpop.f32.mrb[0].mxu0
    %1579 = vmatprep.mubr.f32.mxu0 0.0
    %1580 = vmatmul.mubr.f32.gmra.mrb[0].mxu0 %v1396
    %v1581 = vpop.f32.mrb[0].mxu0
    %v1582 = vadd.f32 %v1339, %v1581
    %v1583 = vpop.f32.mrb[0].mxu0
    %1584 = vmatprep.mubr.f32.mxu0 0.0
    %1585 = vmatmul.mubr.f32.gmra.mrb[0].mxu0 %v1399
    %v1586 = vpop.f32.mrb[0].mxu0
    %v1587 = vadd.f32 %v1340, %v1586
    %v1588 = vpop.f32.mrb[0].mxu0
    %1589 = vmatprep.mubr.f32.mxu0 0.0
    %1590 = vmatmul.mubr.f32.gmra.mrb[0].mxu0 %v1402
    %v1591 = vpop.f32.mrb[0].mxu0
    %v1592 = vadd.f32 %v1341, %v1591
    %v1593 = vpop.f32.mrb[0].mxu0
    %1594 = vmatprep.mubr.f32.mxu0 0.0
    %1595 = vmatmul.mubr.f32.gmra.mrb[0].mxu0 %v1405
    %v1596 = vpop.f32.mrb[0].mxu0
    %v1597 = vadd.f32 %v1342, %v1596
    %v1598 = vpop.f32.mrb[0].mxu0
    %1599 = vmatprep.mubr.f32.mxu0 0.0
    %1600 = vmatmul.mubr.f32.gmra.mrb[0].mxu0 %v1408
    %v1601 = vpop.f32.mrb[0].mxu0
    %v1602 = vadd.f32 %v1343, %v1601
    %v1603 = vpop.f32.mrb[0].mxu0
    %1604 = vmatprep.mubr.f32.mxu0 0.0
    %1605 = vmatmul.mubr.f32.gmra.mrb[0].mxu0 %v1411
    %v1606 = vpop.f32.mrb[0].mxu0
    %v1607 = vadd.f32 %v1344, %v1606
    %v1608 = vpop.f32.mrb[0].mxu0
    %1609 = vmatprep.mubr.f32.mxu0 0.0
    %1610 = vmatmul.mubr.f32.gmra.mrb[0].mxu0 %v1414
    %v1611 = vpop.f32.mrb[0].mxu0
    %v1612 = vadd.f32 %v1345, %v1611
    %v1613 = vpop.f32.mrb[0].mxu0
    %1614 = vmatprep.mubr.f32.mxu0 0.0
    %1615 = vmatmul.mubr.f32.gmra.mrb[0].mxu0 %v1417
    %v1616 = vpop.f32.mrb[0].mxu0
    %v1617 = vadd.f32 %v1346, %v1616
    %v1618 = vpop.f32.mrb[0].mxu0
    %1619 = vmatprep.mubr.f32.mxu0 0.0
    %1620 = vmatmul.mubr.f32.gmra.mrb[0].mxu0 %v1420
    %v1621 = vpop.f32.mrb[0].mxu0
    %v1622 = vadd.f32 %v1347, %v1621
    %v1623 = vpop.f32.mrb[0].mxu0
    %1624 = vmatprep.mubr.f32.mxu0 0.0
    %1625 = vmatmul.mubr.f32.gmra.mrb[0].mxu0 %v1423
    %v1626 = vpop.f32.mrb[0].mxu0
    %v1627 = vadd.f32 %v1348, %v1626
    %v1628 = vpop.f32.mrb[0].mxu0
    %1629 = vmatprep.mubr.f32.mxu0 0.0
    %1630 = vmatmul.mubr.f32.gmra.mrb[0].mxu0 %v1426
    %v1631 = vpop.f32.mrb[0].mxu0
    %v1632 = vadd.f32 %v1349, %v1631
    %v1633 = vpop.f32.mrb[0].mxu0
    %1634 = vmatprep.mubr.f32.mxu0 0.0
    %1635 = vmatmul.mubr.f32.gmra.mrb[0].mxu0 %v1429
    %v1636 = vpop.f32.mrb[0].mxu0
    %v1637 = vadd.f32 %v1350, %v1636
    %v1638 = vpop.f32.mrb[0].mxu0
    %1639 = vmatprep.mubr.f32.mxu0 0.0
    %1640 = vmatmul.mubr.f32.gmra.mrb[0].mxu0 %v1432
    %v1641 = vpop.f32.mrb[0].mxu0
    %v1642 = vadd.f32 %v1351, %v1641
    %v1643 = vpop.f32.mrb[0].mxu0
    %1644 = vmatprep.mubr.f32.mxu0 0.0
    %1645 = vmatmul.mubr.f32.gmra.mrb[0].mxu0 %v1435
    %v1646 = vpop.f32.mrb[0].mxu0
    %v1647 = vadd.f32 %v1352, %v1646
    %v1648 = vpop.f32.mrb[0].mxu0
    %1649 = vmatprep.mubr.f32.mxu0 0.0
    %1650 = vmatmul.mubr.f32.gmra.mrb[0].mxu0 %v1438
    %v1651 = vpop.f32.mrb[0].mxu0
    %v1652 = vadd.f32 %v1353, %v1651
    %v1653 = vpop.f32.mrb[0].mxu0
    %1654 = vmatprep.mubr.f32.mxu0 0.0
    %1655 = vmatmul.mubr.f32.gmra.mrb[0].mxu0 %v1441
    %v1656 = vpop.f32.mrb[0].mxu0
    %v1657 = vadd.f32 %v1354, %v1656
    %v1658 = vpop.f32.mrb[0].mxu0
    %1659 = vmatprep.mubr.f32.mxu0 0.0
    %1660 = vmatmul.mubr.f32.gmra.mrb[0].mxu0 %v1444
    %v1661 = vpop.f32.mrb[0].mxu0
    %v1662 = vadd.f32 %v1355, %v1661
    %v1663 = vpop.f32.mrb[0].mxu0
    %1664 = vmatprep.mubr.f32.mxu0 0.0
    %1665 = vmatmul.mubr.f32.gmra.mrb[0].mxu0 %v1447
    %v1666 = vpop.f32.mrb[0].mxu0
    %v1667 = vadd.f32 %v1356, %v1666
    %v1668 = vpop.f32.mrb[0].mxu0
    %1669 = vmatprep.mubr.f32.mxu0 0.0
    %1670 = vmatmul.mubr.f32.gmra.mrb[0].mxu0 %v1450
    %v1671 = vpop.f32.mrb[0].mxu0
    %v1672 = vadd.f32 %v1357, %v1671
    %v1673 = vpop.f32.mrb[0].mxu0
    %1674 = vmatprep.mubr.f32.mxu0 0.0
    %1675 = vmatmul.mubr.f32.gmra.mrb[0].mxu0 %v1453
    %v1676 = vpop.f32.mrb[0].mxu0
    %v1677 = vadd.f32 %v1358, %v1676
    %v1678 = vpop.f32.mrb[0].mxu0
    %1679 = vdwg.mxu0
    %v1680 = vsel %vm218, %v1522, -inf
    %1681 = vmax.xlane.f32.xlu0 %v1680
    %v1682 = vpop.xlane.xlu0 %1681
    %v1683 = vsel %vm218, %v1527, -inf
    %1684 = vmax.xlane.f32.xlu0 %v1683
    %v1685 = vpop.xlane.xlu0 %1684
    %v1686 = vsel %vm218, %v1532, -inf
    %1687 = vmax.xlane.f32.xlu0 %v1686
    %v1688 = vpop.xlane.xlu0 %1687
    %v1689 = vsel %vm218, %v1537, -inf
    %1690 = vmax.xlane.f32.xlu0 %v1689
    %v1691 = vpop.xlane.xlu0 %1690
    %v1692 = vsel %vm218, %v1542, -inf
    %1693 = vmax.xlane.f32.xlu0 %v1692
    %v1694 = vpop.xlane.xlu0 %1693
    %v1695 = vsel %vm218, %v1547, -inf
    %1696 = vmax.xlane.f32.xlu0 %v1695
    %v1697 = vpop.xlane.xlu0 %1696
    %v1698 = vsel %vm218, %v1552, -inf
    %1699 = vmax.xlane.f32.xlu0 %v1698
    %v1700 = vpop.xlane.xlu0 %1699
    %v1701 = vsel %vm218, %v1557, -inf
    %1702 = vmax.xlane.f32.xlu0 %v1701
    %v1703 = vpop.xlane.xlu0 %1702
    %v1704 = vsel %vm218, %v1562, -inf
    %1705 = vmax.xlane.f32.xlu0 %v1704
    %v1706 = vpop.xlane.xlu0 %1705
    %v1707 = vsel %vm218, %v1567, -inf
    %1708 = vmax.xlane.f32.xlu0 %v1707
    %v1709 = vpop.xlane.xlu0 %1708
    %v1710 = vsel %vm218, %v1572, -inf
    %1711 = vmax.xlane.f32.xlu0 %v1710
    %v1712 = vpop.xlane.xlu0 %1711
    %v1713 = vsel %vm218, %v1577, -inf
    %1714 = vmax.xlane.f32.xlu0 %v1713
    %v1715 = vpop.xlane.xlu0 %1714
    %v1716 = vsel %vm218, %v1582, -inf
    %1717 = vmax.xlane.f32.xlu0 %v1716
    %v1718 = vpop.xlane.xlu0 %1717
    %v1719 = vsel %vm218, %v1587, -inf
    %1720 = vmax.xlane.f32.xlu0 %v1719
    %v1721 = vpop.xlane.xlu0 %1720
    %v1722 = vsel %vm218, %v1592, -inf
    %1723 = vmax.xlane.f32.xlu0 %v1722
    %v1724 = vpop.xlane.xlu0 %1723
    %v1725 = vsel %vm218, %v1597, -inf
    %1726 = vmax.xlane.f32.xlu0 %v1725
    %v1727 = vpop.xlane.xlu0 %1726
    %v1728 = vsel %vm218, %v1602, -inf
    %1729 = vmax.xlane.f32.xlu0 %v1728
    %v1730 = vpop.xlane.xlu0 %1729
    %v1731 = vsel %vm218, %v1607, -inf
    %1732 = vmax.xlane.f32.xlu0 %v1731
    %v1733 = vpop.xlane.xlu0 %1732
    %v1734 = vsel %vm218, %v1612, -inf
    %1735 = vmax.xlane.f32.xlu0 %v1734
    %v1736 = vpop.xlane.xlu0 %1735
    %v1737 = vsel %vm218, %v1617, -inf
    %1738 = vmax.xlane.f32.xlu0 %v1737
    %v1739 = vpop.xlane.xlu0 %1738
    %v1740 = vsel %vm218, %v1622, -inf
    %1741 = vmax.xlane.f32.xlu0 %v1740
    %v1742 = vpop.xlane.xlu0 %1741
    %v1743 = vsel %vm218, %v1627, -inf
    %1744 = vmax.xlane.f32.xlu0 %v1743
    %v1745 = vpop.xlane.xlu0 %1744
    %v1746 = vsel %vm218, %v1632, -inf
    %1747 = vmax.xlane.f32.xlu0 %v1746
    %v1748 = vpop.xlane.xlu0 %1747
    %v1749 = vsel %vm218, %v1637, -inf
    %1750 = vmax.xlane.f32.xlu0 %v1749
    %v1751 = vpop.xlane.xlu0 %1750
    %v1752 = vsel %vm218, %v1642, -inf
    %1753 = vmax.xlane.f32.xlu0 %v1752
    %v1754 = vpop.xlane.xlu0 %1753
    %v1755 = vsel %vm218, %v1647, -inf
    %1756 = vmax.xlane.f32.xlu0 %v1755
    %v1757 = vpop.xlane.xlu0 %1756
    %v1758 = vsel %vm218, %v1652, -inf
    %1759 = vmax.xlane.f32.xlu0 %v1758
    %v1760 = vpop.xlane.xlu0 %1759
    %v1761 = vsel %vm218, %v1657, -inf
    %1762 = vmax.xlane.f32.xlu0 %v1761
    %v1763 = vpop.xlane.xlu0 %1762
    %v1764 = vsel %vm218, %v1662, -inf
    %1765 = vmax.xlane.f32.xlu0 %v1764
    %v1766 = vpop.xlane.xlu0 %1765
    %v1767 = vsel %vm218, %v1667, -inf
    %1768 = vmax.xlane.f32.xlu0 %v1767
    %v1769 = vpop.xlane.xlu0 %1768
    %v1770 = vsel %vm218, %v1672, -inf
    %1771 = vmax.xlane.f32.xlu0 %v1770
    %v1772 = vpop.xlane.xlu0 %1771
    %v1773 = vsel %vm218, %v1677, -inf
    %1774 = vmax.xlane.f32.xlu0 %v1773
    %v1775 = vpop.xlane.xlu0 %1774
    %v1776 = vsub.f32 %v1522, %v1682
    %v1777 = vsub.f32 %v1527, %v1685
    %v1778 = vsub.f32 %v1532, %v1688
    %v1779 = vsub.f32 %v1537, %v1691
    %v1780 = vsub.f32 %v1542, %v1694
    %v1781 = vsub.f32 %v1547, %v1697
    %v1782 = vsub.f32 %v1552, %v1700
    %v1783 = vsub.f32 %v1557, %v1703
    %v1784 = vsub.f32 %v1562, %v1706
    %v1785 = vsub.f32 %v1567, %v1709
    %v1786 = vsub.f32 %v1572, %v1712
    %v1787 = vsub.f32 %v1577, %v1715
    %v1788 = vsub.f32 %v1582, %v1718
    %v1789 = vsub.f32 %v1587, %v1721
    %v1790 = vsub.f32 %v1592, %v1724
    %v1791 = vsub.f32 %v1597, %v1727
    %v1792 = vsub.f32 %v1602, %v1730
    %v1793 = vsub.f32 %v1607, %v1733
    %v1794 = vsub.f32 %v1612, %v1736
    %v1795 = vsub.f32 %v1617, %v1739
    %v1796 = vsub.f32 %v1622, %v1742
    %v1797 = vsub.f32 %v1627, %v1745
    %v1798 = vsub.f32 %v1632, %v1748
    %v1799 = vsub.f32 %v1637, %v1751
    %v1800 = vsub.f32 %v1642, %v1754
    %v1801 = vsub.f32 %v1647, %v1757
    %v1802 = vsub.f32 %v1652, %v1760
    %v1803 = vsub.f32 %v1657, %v1763
    %v1804 = vsub.f32 %v1662, %v1766
    %v1805 = vsub.f32 %v1667, %v1769
    %v1806 = vsub.f32 %v1672, %v1772
    %v1807 = vsub.f32 %v1677, %v1775
    %v1808 = vmul.f32 %v1776, 1.442695
    %v1809 = vpow.pop %v1808
    %v1810 = vmul.f32 %v1777, 1.442695
    %v1811 = vpow.pop %v1810
    %v1812 = vmul.f32 %v1778, 1.442695
    %v1813 = vpow.pop %v1812
    %v1814 = vmul.f32 %v1779, 1.442695
    %v1815 = vpow.pop %v1814
    %v1816 = vmul.f32 %v1780, 1.442695
    %v1817 = vpow.pop %v1816
    %v1818 = vmul.f32 %v1781, 1.442695
    %v1819 = vpow.pop %v1818
    %v1820 = vmul.f32 %v1782, 1.442695
    %v1821 = vpow.pop %v1820
    %v1822 = vmul.f32 %v1783, 1.442695
    %v1823 = vpow.pop %v1822
    %v1824 = vmul.f32 %v1784, 1.442695
    %v1825 = vpow.pop %v1824
    %v1826 = vmul.f32 %v1785, 1.442695
    %v1827 = vpow.pop %v1826
    %v1828 = vmul.f32 %v1786, 1.442695
    %v1829 = vpow.pop %v1828
    %v1830 = vmul.f32 %v1787, 1.442695
    %v1831 = vpow.pop %v1830
    %v1832 = vmul.f32 %v1788, 1.442695
    %v1833 = vpow.pop %v1832
    %v1834 = vmul.f32 %v1789, 1.442695
    %v1835 = vpow.pop %v1834
    %v1836 = vmul.f32 %v1790, 1.442695
    %v1837 = vpow.pop %v1836
    %v1838 = vmul.f32 %v1791, 1.442695
    %v1839 = vpow.pop %v1838
    %v1840 = vmul.f32 %v1792, 1.442695
    %v1841 = vpow.pop %v1840
    %v1842 = vmul.f32 %v1793, 1.442695
    %v1843 = vpow.pop %v1842
    %v1844 = vmul.f32 %v1794, 1.442695
    %v1845 = vpow.pop %v1844
    %v1846 = vmul.f32 %v1795, 1.442695
    %v1847 = vpow.pop %v1846
    %v1848 = vmul.f32 %v1796, 1.442695
    %v1849 = vpow.pop %v1848
    %v1850 = vmul.f32 %v1797, 1.442695
    %v1851 = vpow.pop %v1850
    %v1852 = vmul.f32 %v1798, 1.442695
    %v1853 = vpow.pop %v1852
    %v1854 = vmul.f32 %v1799, 1.442695
    %v1855 = vpow.pop %v1854
    %v1856 = vmul.f32 %v1800, 1.442695
    %v1857 = vpow.pop %v1856
    %v1858 = vmul.f32 %v1801, 1.442695
    %v1859 = vpow.pop %v1858
    %v1860 = vmul.f32 %v1802, 1.442695
    %v1861 = vpow.pop %v1860
    %v1862 = vmul.f32 %v1803, 1.442695
    %v1863 = vpow.pop %v1862
    %v1864 = vmul.f32 %v1804, 1.442695
    %v1865 = vpow.pop %v1864
    %v1866 = vmul.f32 %v1805, 1.442695
    %v1867 = vpow.pop %v1866
    %v1868 = vmul.f32 %v1806, 1.442695
    %v1869 = vpow.pop %v1868
    %v1870 = vmul.f32 %v1807, 1.442695
    %v1871 = vpow.pop %v1870
    %v1872 = vsel %vm218, %v1809, 0.0
    %1873 = vadd.xlane.f32.xlu0 %v1872
    %v1874 = vpop.xlane.xlu0 %1873
    %v1875 = vsel %vm218, %v1811, 0.0
    %1876 = vadd.xlane.f32.xlu0 %v1875
    %v1877 = vpop.xlane.xlu0 %1876
    %v1878 = vsel %vm218, %v1813, 0.0
    %1879 = vadd.xlane.f32.xlu0 %v1878
    %v1880 = vpop.xlane.xlu0 %1879
    %v1881 = vsel %vm218, %v1815, 0.0
    %1882 = vadd.xlane.f32.xlu0 %v1881
    %v1883 = vpop.xlane.xlu0 %1882
    %v1884 = vsel %vm218, %v1817, 0.0
    %1885 = vadd.xlane.f32.xlu0 %v1884
    %v1886 = vpop.xlane.xlu0 %1885
    %v1887 = vsel %vm218, %v1819, 0.0
    %1888 = vadd.xlane.f32.xlu0 %v1887
    %v1889 = vpop.xlane.xlu0 %1888
    %v1890 = vsel %vm218, %v1821, 0.0
    %1891 = vadd.xlane.f32.xlu0 %v1890
    %v1892 = vpop.xlane.xlu0 %1891
    %v1893 = vsel %vm218, %v1823, 0.0
    %1894 = vadd.xlane.f32.xlu0 %v1893
    %v1895 = vpop.xlane.xlu0 %1894
    %v1896 = vsel %vm218, %v1825, 0.0
    %1897 = vadd.xlane.f32.xlu0 %v1896
    %v1898 = vpop.xlane.xlu0 %1897
    %v1899 = vsel %vm218, %v1827, 0.0
    %1900 = vadd.xlane.f32.xlu0 %v1899
    %v1901 = vpop.xlane.xlu0 %1900
    %v1902 = vsel %vm218, %v1829, 0.0
    %1903 = vadd.xlane.f32.xlu0 %v1902
    %v1904 = vpop.xlane.xlu0 %1903
    %v1905 = vsel %vm218, %v1831, 0.0
    %1906 = vadd.xlane.f32.xlu0 %v1905
    %v1907 = vpop.xlane.xlu0 %1906
    %v1908 = vsel %vm218, %v1833, 0.0
    %1909 = vadd.xlane.f32.xlu0 %v1908
    %v1910 = vpop.xlane.xlu0 %1909
    %v1911 = vsel %vm218, %v1835, 0.0
    %1912 = vadd.xlane.f32.xlu0 %v1911
    %v1913 = vpop.xlane.xlu0 %1912
    %v1914 = vsel %vm218, %v1837, 0.0
    %1915 = vadd.xlane.f32.xlu0 %v1914
    %v1916 = vpop.xlane.xlu0 %1915
    %v1917 = vsel %vm218, %v1839, 0.0
    %1918 = vadd.xlane.f32.xlu0 %v1917
    %v1919 = vpop.xlane.xlu0 %1918
    %v1920 = vsel %vm218, %v1841, 0.0
    %1921 = vadd.xlane.f32.xlu0 %v1920
    %v1922 = vpop.xlane.xlu0 %1921
    %v1923 = vsel %vm218, %v1843, 0.0
    %1924 = vadd.xlane.f32.xlu0 %v1923
    %v1925 = vpop.xlane.xlu0 %1924
    %v1926 = vsel %vm218, %v1845, 0.0
    %1927 = vadd.xlane.f32.xlu0 %v1926
    %v1928 = vpop.xlane.xlu0 %1927
    %v1929 = vsel %vm218, %v1847, 0.0
    %1930 = vadd.xlane.f32.xlu0 %v1929
    %v1931 = vpop.xlane.xlu0 %1930
    %v1932 = vsel %vm218, %v1849, 0.0
    %1933 = vadd.xlane.f32.xlu0 %v1932
    %v1934 = vpop.xlane.xlu0 %1933
    %v1935 = vsel %vm218, %v1851, 0.0
    %1936 = vadd.xlane.f32.xlu0 %v1935
    %v1937 = vpop.xlane.xlu0 %1936
    %v1938 = vsel %vm218, %v1853, 0.0
    %1939 = vadd.xlane.f32.xlu0 %v1938
    %v1940 = vpop.xlane.xlu0 %1939
    %v1941 = vsel %vm218, %v1855, 0.0
    %1942 = vadd.xlane.f32.xlu0 %v1941
    %v1943 = vpop.xlane.xlu0 %1942
    %v1944 = vsel %vm218, %v1857, 0.0
    %1945 = vadd.xlane.f32.xlu0 %v1944
    %v1946 = vpop.xlane.xlu0 %1945
    %v1947 = vsel %vm218, %v1859, 0.0
    %1948 = vadd.xlane.f32.xlu0 %v1947
    %v1949 = vpop.xlane.xlu0 %1948
    %v1950 = vsel %vm218, %v1861, 0.0
    %1951 = vadd.xlane.f32.xlu0 %v1950
    %v1952 = vpop.xlane.xlu0 %1951
    %v1953 = vsel %vm218, %v1863, 0.0
    %1954 = vadd.xlane.f32.xlu0 %v1953
    %v1955 = vpop.xlane.xlu0 %1954
    %v1956 = vsel %vm218, %v1865, 0.0
    %1957 = vadd.xlane.f32.xlu0 %v1956
    %v1958 = vpop.xlane.xlu0 %1957
    %v1959 = vsel %vm218, %v1867, 0.0
    %1960 = vadd.xlane.f32.xlu0 %v1959
    %v1961 = vpop.xlane.xlu0 %1960
    %v1962 = vsel %vm218, %v1869, 0.0
    %1963 = vadd.xlane.f32.xlu0 %v1962
    %v1964 = vpop.xlane.xlu0 %1963
    %v1965 = vsel %vm218, %v1871, 0.0
    %1966 = vadd.xlane.f32.xlu0 %v1965
    %v1967 = vpop.xlane.xlu0 %1966
    %v1968 = vrcp.pop %v1874
    %v1969 = vrcp.pop %v1877
    %v1970 = vrcp.pop %v1880
    %v1971 = vrcp.pop %v1883
    %v1972 = vrcp.pop %v1886
    %v1973 = vrcp.pop %v1889
    %v1974 = vrcp.pop %v1892
    %v1975 = vrcp.pop %v1895
    %v1976 = vrcp.pop %v1898
    %v1977 = vrcp.pop %v1901
    %v1978 = vrcp.pop %v1904
    %v1979 = vrcp.pop %v1907
    %v1980 = vrcp.pop %v1910
    %v1981 = vrcp.pop %v1913
    %v1982 = vrcp.pop %v1916
    %v1983 = vrcp.pop %v1919
    %v1984 = vrcp.pop %v1922
    %v1985 = vrcp.pop %v1925
    %v1986 = vrcp.pop %v1928
    %v1987 = vrcp.pop %v1931
    %v1988 = vrcp.pop %v1934
    %v1989 = vrcp.pop %v1937
    %v1990 = vrcp.pop %v1940
    %v1991 = vrcp.pop %v1943
    %v1992 = vrcp.pop %v1946
    %v1993 = vrcp.pop %v1949
    %v1994 = vrcp.pop %v1952
    %v1995 = vrcp.pop %v1955
    %v1996 = vrcp.pop %v1958
    %v1997 = vrcp.pop %v1961
    %v1998 = vrcp.pop %v1964
    %v1999 = vrcp.pop %v1967
    %v2000 = vmul.f32 %v1874, %v1968
    %v2001 = vmul.f32 %v1877, %v1969
    %v2002 = vmul.f32 %v1880, %v1970
    %v2003 = vmul.f32 %v1883, %v1971
    %v2004 = vmul.f32 %v1886, %v1972
    %v2005 = vmul.f32 %v1889, %v1973
    %v2006 = vmul.f32 %v1892, %v1974
    %v2007 = vmul.f32 %v1895, %v1975
    %v2008 = vmul.f32 %v1898, %v1976
    %v2009 = vmul.f32 %v1901, %v1977
    %v2010 = vmul.f32 %v1904, %v1978
    %v2011 = vmul.f32 %v1907, %v1979
    %v2012 = vmul.f32 %v1910, %v1980
    %v2013 = vmul.f32 %v1913, %v1981
    %v2014 = vmul.f32 %v1916, %v1982
    %v2015 = vmul.f32 %v1919, %v1983
    %v2016 = vmul.f32 %v1922, %v1984
    %v2017 = vmul.f32 %v1925, %v1985
    %v2018 = vmul.f32 %v1928, %v1986
    %v2019 = vmul.f32 %v1931, %v1987
    %v2020 = vmul.f32 %v1934, %v1988
    %v2021 = vmul.f32 %v1937, %v1989
    %v2022 = vmul.f32 %v1940, %v1990
    %v2023 = vmul.f32 %v1943, %v1991
    %v2024 = vmul.f32 %v1946, %v1992
    %v2025 = vmul.f32 %v1949, %v1993
    %v2026 = vmul.f32 %v1952, %v1994
    %v2027 = vmul.f32 %v1955, %v1995
    %v2028 = vmul.f32 %v1958, %v1996
    %v2029 = vmul.f32 %v1961, %v1997
    %v2030 = vmul.f32 %v1964, %v1998
    %v2031 = vmul.f32 %v1967, %v1999
    %v2032 = vsub.f32 2.0, %v2000
    %v2033 = vsub.f32 2.0, %v2001
    %v2034 = vsub.f32 2.0, %v2002
    %v2035 = vsub.f32 2.0, %v2003
    %v2036 = vsub.f32 2.0, %v2004
    %v2037 = vsub.f32 2.0, %v2005
    %v2038 = vsub.f32 2.0, %v2006
    %v2039 = vsub.f32 2.0, %v2007
    %v2040 = vsub.f32 2.0, %v2008
    %v2041 = vsub.f32 2.0, %v2009
    %v2042 = vsub.f32 2.0, %v2010
    %v2043 = vsub.f32 2.0, %v2011
    %v2044 = vsub.f32 2.0, %v2012
    %v2045 = vsub.f32 2.0, %v2013
    %v2046 = vsub.f32 2.0, %v2014
    %v2047 = vsub.f32 2.0, %v2015
    %v2048 = vsub.f32 2.0, %v2016
    %v2049 = vsub.f32 2.0, %v2017
    %v2050 = vsub.f32 2.0, %v2018
    %v2051 = vsub.f32 2.0, %v2019
    %v2052 = vsub.f32 2.0, %v2020
    %v2053 = vsub.f32 2.0, %v2021
    %v2054 = vsub.f32 2.0, %v2022
    %v2055 = vsub.f32 2.0, %v2023
    %v2056 = vsub.f32 2.0, %v2024
    %v2057 = vsub.f32 2.0, %v2025
    %v2058 = vsub.f32 2.0, %v2026
    %v2059 = vsub.f32 2.0, %v2027
    %v2060 = vsub.f32 2.0, %v2028
    %v2061 = vsub.f32 2.0, %v2029
    %v2062 = vsub.f32 2.0, %v2030
    %v2063 = vsub.f32 2.0, %v2031
    %v2064 = vmul.f32 %v1968, %v2032
    %v2065 = vmul.f32 %v1969, %v2033
    %v2066 = vmul.f32 %v1970, %v2034
    %v2067 = vmul.f32 %v1971, %v2035
    %v2068 = vmul.f32 %v1972, %v2036
    %v2069 = vmul.f32 %v1973, %v2037
    %v2070 = vmul.f32 %v1974, %v2038
    %v2071 = vmul.f32 %v1975, %v2039
    %v2072 = vmul.f32 %v1976, %v2040
    %v2073 = vmul.f32 %v1977, %v2041
    %v2074 = vmul.f32 %v1978, %v2042
    %v2075 = vmul.f32 %v1979, %v2043
    %v2076 = vmul.f32 %v1980, %v2044
    %v2077 = vmul.f32 %v1981, %v2045
    %v2078 = vmul.f32 %v1982, %v2046
    %v2079 = vmul.f32 %v1983, %v2047
    %v2080 = vmul.f32 %v1984, %v2048
    %v2081 = vmul.f32 %v1985, %v2049
    %v2082 = vmul.f32 %v1986, %v2050
    %v2083 = vmul.f32 %v1987, %v2051
    %v2084 = vmul.f32 %v1988, %v2052
    %v2085 = vmul.f32 %v1989, %v2053
    %v2086 = vmul.f32 %v1990, %v2054
    %v2087 = vmul.f32 %v1991, %v2055
    %v2088 = vmul.f32 %v1992, %v2056
    %v2089 = vmul.f32 %v1993, %v2057
    %v2090 = vmul.f32 %v1994, %v2058
    %v2091 = vmul.f32 %v1995, %v2059
    %v2092 = vmul.f32 %v1996, %v2060
    %v2093 = vmul.f32 %v1997, %v2061
    %v2094 = vmul.f32 %v1998, %v2062
    %v2095 = vmul.f32 %v1999, %v2063
    %v2096 = vmul.f32 %v1809, %v2064
    %v2097 = vmul.f32 %v1811, %v2065
    %v2098 = vmul.f32 %v1813, %v2066
    %v2099 = vmul.f32 %v1815, %v2067
    %v2100 = vmul.f32 %v1817, %v2068
    %v2101 = vmul.f32 %v1819, %v2069
    %v2102 = vmul.f32 %v1821, %v2070
    %v2103 = vmul.f32 %v1823, %v2071
    %v2104 = vmul.f32 %v1825, %v2072
    %v2105 = vmul.f32 %v1827, %v2073
    %v2106 = vmul.f32 %v1829, %v2074
    %v2107 = vmul.f32 %v1831, %v2075
    %v2108 = vmul.f32 %v1833, %v2076
    %v2109 = vmul.f32 %v1835, %v2077
    %v2110 = vmul.f32 %v1837, %v2078
    %v2111 = vmul.f32 %v1839, %v2079
    %v2112 = vmul.f32 %v1841, %v2080
    %v2113 = vmul.f32 %v1843, %v2081
    %v2114 = vmul.f32 %v1845, %v2082
    %v2115 = vmul.f32 %v1847, %v2083
    %v2116 = vmul.f32 %v1849, %v2084
    %v2117 = vmul.f32 %v1851, %v2085
    %v2118 = vmul.f32 %v1853, %v2086
    %v2119 = vmul.f32 %v1855, %v2087
    %v2120 = vmul.f32 %v1857, %v2088
    %v2121 = vmul.f32 %v1859, %v2089
    %v2122 = vmul.f32 %v1861, %v2090
    %v2123 = vmul.f32 %v1863, %v2091
    %v2124 = vmul.f32 %v1865, %v2092
    %v2125 = vmul.f32 %v1867, %v2093
    %v2126 = vmul.f32 %v1869, %v2094
    %v2127 = vmul.f32 %v1871, %v2095
    %v2128 = vld [vmem:[#allocation18] sm:$0xff]
    %v2129 = vld [vmem:[#allocation18 + $0x8] sm:$0xff]
    %v2130 = vld [vmem:[#allocation18 + $0x10] sm:$0xff]
    %v2131 = vld [vmem:[#allocation18 + $0x18] sm:$0xff]
    %v2132 = vld [vmem:[#allocation18 + $0x20] sm:$0xff]
    %v2133 = vld [vmem:[#allocation18 + $0x28] sm:$0xff]
    %v2134 = vld [vmem:[#allocation18 + $0x30] sm:$0xff]
    %v2135 = vld [vmem:[#allocation18 + $0x38] sm:$0xff]
    %v2137 = vsel %vm218, %v2096, 0
    %v2140 = vsel %vm218, %v2097, 0
    %v2143 = vsel %vm218, %v2098, 0
    %v2146 = vsel %vm218, %v2099, 0
    %v2149 = vsel %vm218, %v2100, 0
    %v2152 = vsel %vm218, %v2101, 0
    %v2155 = vsel %vm218, %v2102, 0
    %v2158 = vsel %vm218, %v2103, 0
    %v2161 = vsel %vm218, %v2104, 0
    %v2164 = vsel %vm218, %v2105, 0
    %v2167 = vsel %vm218, %v2106, 0
    %v2170 = vsel %vm218, %v2107, 0
    %v2173 = vsel %vm218, %v2108, 0
    %v2176 = vsel %vm218, %v2109, 0
    %v2179 = vsel %vm218, %v2110, 0
    %v2182 = vsel %vm218, %v2111, 0
    %v2185 = vsel %vm218, %v2112, 0
    %v2188 = vsel %vm218, %v2113, 0
    %v2191 = vsel %vm218, %v2114, 0
    %v2194 = vsel %vm218, %v2115, 0
    %v2197 = vsel %vm218, %v2116, 0
    %v2200 = vsel %vm218, %v2117, 0
    %v2203 = vsel %vm218, %v2118, 0
    %v2206 = vsel %vm218, %v2119, 0
    %v2209 = vsel %vm218, %v2120, 0
    %v2212 = vsel %vm218, %v2121, 0
    %v2215 = vsel %vm218, %v2122, 0
    %v2218 = vsel %vm218, %v2123, 0
    %v2221 = vsel %vm218, %v2124, 0
    %v2224 = vsel %vm218, %v2125, 0
    %v2227 = vsel %vm218, %v2126, 0
    %v2230 = vsel %vm218, %v2127, 0
    %2232 = vmatprep.subr.mxu0 0.0
    %2233 = vmatpush1.msra.mxu0 %v2128
    %2234 = vmatprep.subr.mxu0 0.0
    %2235 = vmatpush1.msra.mxu0 %v2129
    %2236 = vmatprep.subr.mxu0 0.0
    %2237 = vmatpush1.msra.mxu0 %v2130
    %2238 = vmatprep.subr.mxu0 0.0
    %2239 = vmatpush1.msra.mxu0 %v2131
    %2240 = vmatprep.subr.mxu0 0.0
    %2241 = vmatpush1.msra.mxu0 %v2132
    %2242 = vmatprep.subr.mxu0 0.0
    %2243 = vmatpush1.msra.mxu0 %v2133
    %2244 = vmatprep.subr.mxu0 0.0
    %2245 = vmatpush1.msra.mxu0 %v2134
    %2246 = vmatprep.subr.mxu0 0.0
    %2247 = vmatpush1.msra.mxu0 %v2135
    %2248 = vmatprep.subr.mxu0 0.0
    %2249 = vmatpush1.msra.mxu0 0.0
    %2250 = vmatprep.subr.mxu0 0.0
    %2251 = vmatpush1.msra.mxu0 0.0
    %2252 = vmatprep.subr.mxu0 0.0
    %2253 = vmatpush1.msra.mxu0 0.0
    %2254 = vmatprep.subr.mxu0 0.0
    %2255 = vmatpush1.msra.mxu0 0.0
    %2256 = vmatprep.subr.mxu0 0.0
    %2257 = vmatpush1.msra.mxu0 0.0
    %2258 = vmatprep.subr.mxu0 0.0
    %2259 = vmatpush1.msra.mxu0 0.0
    %2260 = vmatprep.subr.mxu0 0.0
    %2261 = vmatpush1.msra.mxu0 0.0
    %2262 = vmatprep.subr.mxu0 0.0
    %2263 = vmatpush1.msra.mxu0 0.0
    %2264 = vmatprep.subr.mxu0 0.0
    %2265 = vmatpush1.msra.mxu0 0.0
    %2266 = vmatprep.subr.mxu0 0.0
    %2267 = vmatpush1.msra.mxu0 0.0
    %2268 = vmatprep.subr.mxu0 0.0
    %2269 = vmatpush1.msra.mxu0 0.0
    %2270 = vmatprep.subr.mxu0 0.0
    %2271 = vmatpush1.msra.mxu0 0.0
    %2272 = vmatprep.subr.mxu0 0.0
    %2273 = vmatpush1.msra.mxu0 0.0
    %2274 = vmatprep.subr.mxu0 0.0
    %2275 = vmatpush1.msra.mxu0 0.0
    %2276 = vmatprep.subr.mxu0 0.0
    %2277 = vmatpush1.msra.mxu0 0.0
    %2278 = vmatprep.subr.mxu0 0.0
    %2279 = vmatpush1.msra.mxu0 0.0
    %2280 = vmatprep.subr.mxu0 0.0
    %2281 = vmatpush1.msra.mxu0 0.0
    %2282 = vmatprep.subr.mxu0 0.0
    %2283 = vmatpush1.msra.mxu0 0.0
    %2284 = vmatprep.subr.mxu0 0.0
    %2285 = vmatpush1.msra.mxu0 0.0
    %2286 = vmatprep.subr.mxu0 0.0
    %2287 = vmatpush1.msra.mxu0 0.0
    %2288 = vmatprep.subr.mxu0 0.0
    %2289 = vmatpush1.msra.mxu0 0.0
    %2290 = vmatprep.subr.mxu0 0.0
    %2291 = vmatpush1.msra.mxu0 0.0
    %2292 = vmatprep.subr.mxu0 0.0
    %2293 = vmatpush1.msra.mxu0 0.0
    %2294 = vmatprep.subr.mxu0 0.0
    %2295 = vmatpush1.msra.mxu0 0.0
    %2296 = vmatprep.mubr.f32.mxu0 0.0
    %2297 = vmatmul.mubr.f32.gmra.mrb[0].mxu0 %v2137
    %v2298 = vpop.f32.mrb[0].mxu0
    %v2299 = vadd.f32 0.0, %v2298
    %v2300 = vpop.f32.mrb[0].mxu0
    %2301 = vmatprep.mubr.f32.mxu0 0.0
    %2302 = vmatmul.mubr.f32.gmra.mrb[0].mxu0 %v2140
    %v2303 = vpop.f32.mrb[0].mxu0
    %v2304 = vadd.f32 0.0, %v2303
    %v2305 = vpop.f32.mrb[0].mxu0
    %2306 = vmatprep.mubr.f32.mxu0 0.0
    %2307 = vmatmul.mubr.f32.gmra.mrb[0].mxu0 %v2143
    %v2308 = vpop.f32.mrb[0].mxu0
    %v2309 = vadd.f32 0.0, %v2308
    %v2310 = vpop.f32.mrb[0].mxu0
    %2311 = vmatprep.mubr.f32.mxu0 0.0
    %2312 = vmatmul.mubr.f32.gmra.mrb[0].mxu0 %v2146
    %v2313 = vpop.f32.mrb[0].mxu0
    %v2314 = vadd.f32 0.0, %v2313
    %v2315 = vpop.f32.mrb[0].mxu0
    %2316 = vmatprep.mubr.f32.mxu0 0.0
    %2317 = vmatmul.mubr.f32.gmra.mrb[0].mxu0 %v2149
    %v2318 = vpop.f32.mrb[0].mxu0
    %v2319 = vadd.f32 0.0, %v2318
    %v2320 = vpop.f32.mrb[0].mxu0
    %2321 = vmatprep.mubr.f32.mxu0 0.0
    %2322 = vmatmul.mubr.f32.gmra.mrb[0].mxu0 %v2152
    %v2323 = vpop.f32.mrb[0].mxu0
    %v2324 = vadd.f32 0.0, %v2323
    %v2325 = vpop.f32.mrb[0].mxu0
    %2326 = vmatprep.mubr.f32.mxu0 0.0
    %2327 = vmatmul.mubr.f32.gmra.mrb[0].mxu0 %v2155
    %v2328 = vpop.f32.mrb[0].mxu0
    %v2329 = vadd.f32 0.0, %v2328
    %v2330 = vpop.f32.mrb[0].mxu0
    %2331 = vmatprep.mubr.f32.mxu0 0.0
    %2332 = vmatmul.mubr.f32.gmra.mrb[0].mxu0 %v2158
    %v2333 = vpop.f32.mrb[0].mxu0
    %v2334 = vadd.f32 0.0, %v2333
    %v2335 = vpop.f32.mrb[0].mxu0
    %2336 = vmatprep.mubr.f32.mxu0 0.0
    %2337 = vmatmul.mubr.f32.gmra.mrb[0].mxu0 %v2161
    %v2338 = vpop.f32.mrb[0].mxu0
    %v2339 = vadd.f32 0.0, %v2338
    %v2340 = vpop.f32.mrb[0].mxu0
    %2341 = vmatprep.mubr.f32.mxu0 0.0
    %2342 = vmatmul.mubr.f32.gmra.mrb[0].mxu0 %v2164
    %v2343 = vpop.f32.mrb[0].mxu0
    %v2344 = vadd.f32 0.0, %v2343
    %v2345 = vpop.f32.mrb[0].mxu0
    %2346 = vmatprep.mubr.f32.mxu0 0.0
    %2347 = vmatmul.mubr.f32.gmra.mrb[0].mxu0 %v2167
    %v2348 = vpop.f32.mrb[0].mxu0
    %v2349 = vadd.f32 0.0, %v2348
    %v2350 = vpop.f32.mrb[0].mxu0
    %2351 = vmatprep.mubr.f32.mxu0 0.0
    %2352 = vmatmul.mubr.f32.gmra.mrb[0].mxu0 %v2170
    %v2353 = vpop.f32.mrb[0].mxu0
    %v2354 = vadd.f32 0.0, %v2353
    %v2355 = vpop.f32.mrb[0].mxu0
    %2356 = vmatprep.mubr.f32.mxu0 0.0
    %2357 = vmatmul.mubr.f32.gmra.mrb[0].mxu0 %v2173
    %v2358 = vpop.f32.mrb[0].mxu0
    %v2359 = vadd.f32 0.0, %v2358
    %v2360 = vpop.f32.mrb[0].mxu0
    %2361 = vmatprep.mubr.f32.mxu0 0.0
    %2362 = vmatmul.mubr.f32.gmra.mrb[0].mxu0 %v2176
    %v2363 = vpop.f32.mrb[0].mxu0
    %v2364 = vadd.f32 0.0, %v2363
    %v2365 = vpop.f32.mrb[0].mxu0
    %2366 = vmatprep.mubr.f32.mxu0 0.0
    %2367 = vmatmul.mubr.f32.gmra.mrb[0].mxu0 %v2179
    %v2368 = vpop.f32.mrb[0].mxu0
    %v2369 = vadd.f32 0.0, %v2368
    %v2370 = vpop.f32.mrb[0].mxu0
    %2371 = vmatprep.mubr.f32.mxu0 0.0
    %2372 = vmatmul.mubr.f32.gmra.mrb[0].mxu0 %v2182
    %v2373 = vpop.f32.mrb[0].mxu0
    %v2374 = vadd.f32 0.0, %v2373
    %v2375 = vpop.f32.mrb[0].mxu0
    %2376 = vmatprep.mubr.f32.mxu0 0.0
    %2377 = vmatmul.mubr.f32.gmra.mrb[0].mxu0 %v2185
    %v2378 = vpop.f32.mrb[0].mxu0
    %v2379 = vadd.f32 0.0, %v2378
    %v2380 = vpop.f32.mrb[0].mxu0
    %2381 = vmatprep.mubr.f32.mxu0 0.0
    %2382 = vmatmul.mubr.f32.gmra.mrb[0].mxu0 %v2188
    %v2383 = vpop.f32.mrb[0].mxu0
    %v2384 = vadd.f32 0.0, %v2383
    %v2385 = vpop.f32.mrb[0].mxu0
    %2386 = vmatprep.mubr.f32.mxu0 0.0
    %2387 = vmatmul.mubr.f32.gmra.mrb[0].mxu0 %v2191
    %v2388 = vpop.f32.mrb[0].mxu0
    %v2389 = vadd.f32 0.0, %v2388
    %v2390 = vpop.f32.mrb[0].mxu0
    %2391 = vmatprep.mubr.f32.mxu0 0.0
    %2392 = vmatmul.mubr.f32.gmra.mrb[0].mxu0 %v2194
    %v2393 = vpop.f32.mrb[0].mxu0
    %v2394 = vadd.f32 0.0, %v2393
    %v2395 = vpop.f32.mrb[0].mxu0
    %2396 = vmatprep.mubr.f32.mxu0 0.0
    %2397 = vmatmul.mubr.f32.gmra.mrb[0].mxu0 %v2197
    %v2398 = vpop.f32.mrb[0].mxu0
    %v2399 = vadd.f32 0.0, %v2398
    %v2400 = vpop.f32.mrb[0].mxu0
    %2401 = vmatprep.mubr.f32.mxu0 0.0
    %2402 = vmatmul.mubr.f32.gmra.mrb[0].mxu0 %v2200
    %v2403 = vpop.f32.mrb[0].mxu0
    %v2404 = vadd.f32 0.0, %v2403
    %v2405 = vpop.f32.mrb[0].mxu0
    %2406 = vmatprep.mubr.f32.mxu0 0.0
    %2407 = vmatmul.mubr.f32.gmra.mrb[0].mxu0 %v2203
    %v2408 = vpop.f32.mrb[0].mxu0
    %v2409 = vadd.f32 0.0, %v2408
    %v2410 = vpop.f32.mrb[0].mxu0
    %2411 = vmatprep.mubr.f32.mxu0 0.0
    %2412 = vmatmul.mubr.f32.gmra.mrb[0].mxu0 %v2206
    %v2413 = vpop.f32.mrb[0].mxu0
    %v2414 = vadd.f32 0.0, %v2413
    %v2415 = vpop.f32.mrb[0].mxu0
    %2416 = vmatprep.mubr.f32.mxu0 0.0
    %2417 = vmatmul.mubr.f32.gmra.mrb[0].mxu0 %v2209
    %v2418 = vpop.f32.mrb[0].mxu0
    %v2419 = vadd.f32 0.0, %v2418
    %v2420 = vpop.f32.mrb[0].mxu0
    %2421 = vmatprep.mubr.f32.mxu0 0.0
    %2422 = vmatmul.mubr.f32.gmra.mrb[0].mxu0 %v2212
    %v2423 = vpop.f32.mrb[0].mxu0
    %v2424 = vadd.f32 0.0, %v2423
    %v2425 = vpop.f32.mrb[0].mxu0
    %2426 = vmatprep.mubr.f32.mxu0 0.0
    %2427 = vmatmul.mubr.f32.gmra.mrb[0].mxu0 %v2215
    %v2428 = vpop.f32.mrb[0].mxu0
    %v2429 = vadd.f32 0.0, %v2428
    %v2430 = vpop.f32.mrb[0].mxu0
    %2431 = vmatprep.mubr.f32.mxu0 0.0
    %2432 = vmatmul.mubr.f32.gmra.mrb[0].mxu0 %v2218
    %v2433 = vpop.f32.mrb[0].mxu0
    %v2434 = vadd.f32 0.0, %v2433
    %v2435 = vpop.f32.mrb[0].mxu0
    %2436 = vmatprep.mubr.f32.mxu0 0.0
    %2437 = vmatmul.mubr.f32.gmra.mrb[0].mxu0 %v2221
    %v2438 = vpop.f32.mrb[0].mxu0
    %v2439 = vadd.f32 0.0, %v2438
    %v2440 = vpop.f32.mrb[0].mxu0
    %2441 = vmatprep.mubr.f32.mxu0 0.0
    %2442 = vmatmul.mubr.f32.gmra.mrb[0].mxu0 %v2224
    %v2443 = vpop.f32.mrb[0].mxu0
    %v2444 = vadd.f32 0.0, %v2443
    %v2445 = vpop.f32.mrb[0].mxu0
    %2446 = vmatprep.mubr.f32.mxu0 0.0
    %2447 = vmatmul.mubr.f32.gmra.mrb[0].mxu0 %v2227
    %v2448 = vpop.f32.mrb[0].mxu0
    %v2449 = vadd.f32 0.0, %v2448
    %v2450 = vpop.f32.mrb[0].mxu0
    %2451 = vmatprep.mubr.f32.mxu0 0.0
    %2452 = vmatmul.mubr.f32.gmra.mrb[0].mxu0 %v2230
    %v2453 = vpop.f32.mrb[0].mxu0
    %v2454 = vadd.f32 0.0, %v2453
    %v2455 = vpop.f32.mrb[0].mxu0
    %2456 = vdwg.mxu0
    %2457 = vmatprep.subr.mxu0 0.0
    %2458 = vmatpush1.msra.mxu0 %v498
    %2459 = vmatprep.subr.mxu0 0.0
    %2460 = vmatpush1.msra.mxu0 %v503
    %2461 = vmatprep.subr.mxu0 0.0
    %2462 = vmatpush1.msra.mxu0 %v508
    %2463 = vmatprep.subr.mxu0 0.0
    %2464 = vmatpush1.msra.mxu0 %v513
    %2465 = vmatprep.subr.mxu0 0.0
    %2466 = vmatpush1.msra.mxu0 0.0
    %2467 = vmatprep.subr.mxu0 0.0
    %2468 = vmatpush1.msra.mxu0 0.0
    %2469 = vmatprep.subr.mxu0 0.0
    %2470 = vmatpush1.msra.mxu0 0.0
    %2471 = vmatprep.subr.mxu0 0.0
    %2472 = vmatpush1.msra.mxu0 0.0
    %2473 = vmatprep.subr.mxu0 0.0
    %2474 = vmatpush1.msra.mxu0 0.0
    %2475 = vmatprep.subr.mxu0 0.0
    %2476 = vmatpush1.msra.mxu0 0.0
    %2477 = vmatprep.subr.mxu0 0.0
    %2478 = vmatpush1.msra.mxu0 0.0
    %2479 = vmatprep.subr.mxu0 0.0
    %2480 = vmatpush1.msra.mxu0 0.0
    %2481 = vmatprep.subr.mxu0 0.0
    %2482 = vmatpush1.msra.mxu0 0.0
    %2483 = vmatprep.subr.mxu0 0.0
    %2484 = vmatpush1.msra.mxu0 0.0
    %2485 = vmatprep.subr.mxu0 0.0
    %2486 = vmatpush1.msra.mxu0 0.0
    %2487 = vmatprep.subr.mxu0 0.0
    %2488 = vmatpush1.msra.mxu0 0.0
    %2489 = vmatprep.subr.mxu0 0.0
    %2490 = vmatpush1.msra.mxu0 0.0
    %2491 = vmatprep.subr.mxu0 0.0
    %2492 = vmatpush1.msra.mxu0 0.0
    %2493 = vmatprep.subr.mxu0 0.0
    %2494 = vmatpush1.msra.mxu0 0.0
    %2495 = vmatprep.subr.mxu0 0.0
    %2496 = vmatpush1.msra.mxu0 0.0
    %2497 = vmatprep.subr.mxu0 0.0
    %2498 = vmatpush1.msra.mxu0 0.0
    %2499 = vmatprep.subr.mxu0 0.0
    %2500 = vmatpush1.msra.mxu0 0.0
    %2501 = vmatprep.subr.mxu0 0.0
    %2502 = vmatpush1.msra.mxu0 0.0
    %2503 = vmatprep.subr.mxu0 0.0
    %2504 = vmatpush1.msra.mxu0 0.0
    %2505 = vmatprep.subr.mxu0 0.0
    %2506 = vmatpush1.msra.mxu0 0.0
    %2507 = vmatprep.subr.mxu0 0.0
    %2508 = vmatpush1.msra.mxu0 0.0
    %2509 = vmatprep.subr.mxu0 0.0
    %2510 = vmatpush1.msra.mxu0 0.0
    %2511 = vmatprep.subr.mxu0 0.0
    %2512 = vmatpush1.msra.mxu0 0.0
    %2513 = vmatprep.subr.mxu0 0.0
    %2514 = vmatpush1.msra.mxu0 0.0
    %2515 = vmatprep.subr.mxu0 0.0
    %2516 = vmatpush1.msra.mxu0 0.0
    %2517 = vmatprep.subr.mxu0 0.0
    %2518 = vmatpush1.msra.mxu0 0.0
    %2519 = vmatprep.subr.mxu0 0.0
    %2520 = vmatpush1.msra.mxu0 0.0
    %2521 = vmatprep.mubr.f32.mxu0 0.0
    %2522 = vmatmul.mubr.f32.gmra.mrb[0].mxu0 %v582
    %v2523 = vpop.f32.mrb[0].mxu0
    %v2524 = vadd.f32 0.0, %v2523
    %v2525 = vpop.f32.mrb[0].mxu0
    %2526 = vmatprep.mubr.f32.mxu0 0.0
    %2527 = vmatmul.mubr.f32.gmra.mrb[0].mxu0 %v585
    %v2528 = vpop.f32.mrb[0].mxu0
    %v2529 = vadd.f32 0.0, %v2528
    %v2530 = vpop.f32.mrb[0].mxu0
    %2531 = vmatprep.mubr.f32.mxu0 0.0
    %2532 = vmatmul.mubr.f32.gmra.mrb[0].mxu0 %v588
    %v2533 = vpop.f32.mrb[0].mxu0
    %v2534 = vadd.f32 0.0, %v2533
    %v2535 = vpop.f32.mrb[0].mxu0
    %2536 = vmatprep.mubr.f32.mxu0 0.0
    %2537 = vmatmul.mubr.f32.gmra.mrb[0].mxu0 %v591
    %v2538 = vpop.f32.mrb[0].mxu0
    %v2539 = vadd.f32 0.0, %v2538
    %v2540 = vpop.f32.mrb[0].mxu0
    %2541 = vmatprep.mubr.f32.mxu0 0.0
    %2542 = vmatmul.mubr.f32.gmra.mrb[0].mxu0 %v594
    %v2543 = vpop.f32.mrb[0].mxu0
    %v2544 = vadd.f32 0.0, %v2543
    %v2545 = vpop.f32.mrb[0].mxu0
    %2546 = vmatprep.mubr.f32.mxu0 0.0
    %2547 = vmatmul.mubr.f32.gmra.mrb[0].mxu0 %v597
    %v2548 = vpop.f32.mrb[0].mxu0
    %v2549 = vadd.f32 0.0, %v2548
    %v2550 = vpop.f32.mrb[0].mxu0
    %2551 = vmatprep.mubr.f32.mxu0 0.0
    %2552 = vmatmul.mubr.f32.gmra.mrb[0].mxu0 %v600
    %v2553 = vpop.f32.mrb[0].mxu0
    %v2554 = vadd.f32 0.0, %v2553
    %v2555 = vpop.f32.mrb[0].mxu0
    %2556 = vmatprep.mubr.f32.mxu0 0.0
    %2557 = vmatmul.mubr.f32.gmra.mrb[0].mxu0 %v603
    %v2558 = vpop.f32.mrb[0].mxu0
    %v2559 = vadd.f32 0.0, %v2558
    %v2560 = vpop.f32.mrb[0].mxu0
    %2561 = vmatprep.mubr.f32.mxu0 0.0
    %2562 = vmatmul.mubr.f32.gmra.mrb[0].mxu0 %v606
    %v2563 = vpop.f32.mrb[0].mxu0
    %v2564 = vadd.f32 0.0, %v2563
    %v2565 = vpop.f32.mrb[0].mxu0
    %2566 = vmatprep.mubr.f32.mxu0 0.0
    %2567 = vmatmul.mubr.f32.gmra.mrb[0].mxu0 %v609
    %v2568 = vpop.f32.mrb[0].mxu0
    %v2569 = vadd.f32 0.0, %v2568
    %v2570 = vpop.f32.mrb[0].mxu0
    %2571 = vmatprep.mubr.f32.mxu0 0.0
    %2572 = vmatmul.mubr.f32.gmra.mrb[0].mxu0 %v612
    %v2573 = vpop.f32.mrb[0].mxu0
    %v2574 = vadd.f32 0.0, %v2573
    %v2575 = vpop.f32.mrb[0].mxu0
    %2576 = vmatprep.mubr.f32.mxu0 0.0
    %2577 = vmatmul.mubr.f32.gmra.mrb[0].mxu0 %v615
    %v2578 = vpop.f32.mrb[0].mxu0
    %v2579 = vadd.f32 0.0, %v2578
    %v2580 = vpop.f32.mrb[0].mxu0
    %2581 = vmatprep.mubr.f32.mxu0 0.0
    %2582 = vmatmul.mubr.f32.gmra.mrb[0].mxu0 %v618
    %v2583 = vpop.f32.mrb[0].mxu0
    %v2584 = vadd.f32 0.0, %v2583
    %v2585 = vpop.f32.mrb[0].mxu0
    %2586 = vmatprep.mubr.f32.mxu0 0.0
    %2587 = vmatmul.mubr.f32.gmra.mrb[0].mxu0 %v621
    %v2588 = vpop.f32.mrb[0].mxu0
    %v2589 = vadd.f32 0.0, %v2588
    %v2590 = vpop.f32.mrb[0].mxu0
    %2591 = vmatprep.mubr.f32.mxu0 0.0
    %2592 = vmatmul.mubr.f32.gmra.mrb[0].mxu0 %v624
    %v2593 = vpop.f32.mrb[0].mxu0
    %v2594 = vadd.f32 0.0, %v2593
    %v2595 = vpop.f32.mrb[0].mxu0
    %2596 = vmatprep.mubr.f32.mxu0 0.0
    %2597 = vmatmul.mubr.f32.gmra.mrb[0].mxu0 %v627
    %v2598 = vpop.f32.mrb[0].mxu0
    %v2599 = vadd.f32 0.0, %v2598
    %v2600 = vpop.f32.mrb[0].mxu0
    %2601 = vmatprep.mubr.f32.mxu0 0.0
    %2602 = vmatmul.mubr.f32.gmra.mrb[0].mxu0 %v630
    %v2603 = vpop.f32.mrb[0].mxu0
    %v2604 = vadd.f32 0.0, %v2603
    %v2605 = vpop.f32.mrb[0].mxu0
    %2606 = vmatprep.mubr.f32.mxu0 0.0
    %2607 = vmatmul.mubr.f32.gmra.mrb[0].mxu0 %v633
    %v2608 = vpop.f32.mrb[0].mxu0
    %v2609 = vadd.f32 0.0, %v2608
    %v2610 = vpop.f32.mrb[0].mxu0
    %2611 = vmatprep.mubr.f32.mxu0 0.0
    %2612 = vmatmul.mubr.f32.gmra.mrb[0].mxu0 %v636
    %v2613 = vpop.f32.mrb[0].mxu0
    %v2614 = vadd.f32 0.0, %v2613
    %v2615 = vpop.f32.mrb[0].mxu0
    %2616 = vmatprep.mubr.f32.mxu0 0.0
    %2617 = vmatmul.mubr.f32.gmra.mrb[0].mxu0 %v639
    %v2618 = vpop.f32.mrb[0].mxu0
    %v2619 = vadd.f32 0.0, %v2618
    %v2620 = vpop.f32.mrb[0].mxu0
    %2621 = vmatprep.mubr.f32.mxu0 0.0
    %2622 = vmatmul.mubr.f32.gmra.mrb[0].mxu0 %v642
    %v2623 = vpop.f32.mrb[0].mxu0
    %v2624 = vadd.f32 0.0, %v2623
    %v2625 = vpop.f32.mrb[0].mxu0
    %2626 = vmatprep.mubr.f32.mxu0 0.0
    %2627 = vmatmul.mubr.f32.gmra.mrb[0].mxu0 %v645
    %v2628 = vpop.f32.mrb[0].mxu0
    %v2629 = vadd.f32 0.0, %v2628
    %v2630 = vpop.f32.mrb[0].mxu0
    %2631 = vmatprep.mubr.f32.mxu0 0.0
    %2632 = vmatmul.mubr.f32.gmra.mrb[0].mxu0 %v648
    %v2633 = vpop.f32.mrb[0].mxu0
    %v2634 = vadd.f32 0.0, %v2633
    %v2635 = vpop.f32.mrb[0].mxu0
    %2636 = vmatprep.mubr.f32.mxu0 0.0
    %2637 = vmatmul.mubr.f32.gmra.mrb[0].mxu0 %v651
    %v2638 = vpop.f32.mrb[0].mxu0
    %v2639 = vadd.f32 0.0, %v2638
    %v2640 = vpop.f32.mrb[0].mxu0
    %2641 = vmatprep.mubr.f32.mxu0 0.0
    %2642 = vmatmul.mubr.f32.gmra.mrb[0].mxu0 %v654
    %v2643 = vpop.f32.mrb[0].mxu0
    %v2644 = vadd.f32 0.0, %v2643
    %v2645 = vpop.f32.mrb[0].mxu0
    %2646 = vmatprep.mubr.f32.mxu0 0.0
    %2647 = vmatmul.mubr.f32.gmra.mrb[0].mxu0 %v657
    %v2648 = vpop.f32.mrb[0].mxu0
    %v2649 = vadd.f32 0.0, %v2648
    %v2650 = vpop.f32.mrb[0].mxu0
    %2651 = vmatprep.mubr.f32.mxu0 0.0
    %2652 = vmatmul.mubr.f32.gmra.mrb[0].mxu0 %v660
    %v2653 = vpop.f32.mrb[0].mxu0
    %v2654 = vadd.f32 0.0, %v2653
    %v2655 = vpop.f32.mrb[0].mxu0
    %2656 = vmatprep.mubr.f32.mxu0 0.0
    %2657 = vmatmul.mubr.f32.gmra.mrb[0].mxu0 %v663
    %v2658 = vpop.f32.mrb[0].mxu0
    %v2659 = vadd.f32 0.0, %v2658
    %v2660 = vpop.f32.mrb[0].mxu0
    %2661 = vmatprep.mubr.f32.mxu0 0.0
    %2662 = vmatmul.mubr.f32.gmra.mrb[0].mxu0 %v666
    %v2663 = vpop.f32.mrb[0].mxu0
    %v2664 = vadd.f32 0.0, %v2663
    %v2665 = vpop.f32.mrb[0].mxu0
    %2666 = vmatprep.mubr.f32.mxu0 0.0
    %2667 = vmatmul.mubr.f32.gmra.mrb[0].mxu0 %v669
    %v2668 = vpop.f32.mrb[0].mxu0
    %v2669 = vadd.f32 0.0, %v2668
    %v2670 = vpop.f32.mrb[0].mxu0
    %2671 = vmatprep.mubr.f32.mxu0 0.0
    %2672 = vmatmul.mubr.f32.gmra.mrb[0].mxu0 %v672
    %v2673 = vpop.f32.mrb[0].mxu0
    %v2674 = vadd.f32 0.0, %v2673
    %v2675 = vpop.f32.mrb[0].mxu0
    %2676 = vmatprep.mubr.f32.mxu0 0.0
    %2677 = vmatmul.mubr.f32.gmra.mrb[0].mxu0 %v675
    %v2678 = vpop.f32.mrb[0].mxu0
    %v2679 = vadd.f32 0.0, %v2678
    %v2680 = vpop.f32.mrb[0].mxu0
    %2681 = vdwg.mxu0
    %v2682 = vmul.f32 %v2299, %v2524
    %v2683 = vmul.f32 %v2304, %v2529
    %v2684 = vmul.f32 %v2309, %v2534
    %v2685 = vmul.f32 %v2314, %v2539
    %v2686 = vmul.f32 %v2319, %v2544
    %v2687 = vmul.f32 %v2324, %v2549
    %v2688 = vmul.f32 %v2329, %v2554
    %v2689 = vmul.f32 %v2334, %v2559
    %v2690 = vmul.f32 %v2339, %v2564
    %v2691 = vmul.f32 %v2344, %v2569
    %v2692 = vmul.f32 %v2349, %v2574
    %v2693 = vmul.f32 %v2354, %v2579
    %v2694 = vmul.f32 %v2359, %v2584
    %v2695 = vmul.f32 %v2364, %v2589
    %v2696 = vmul.f32 %v2369, %v2594
    %v2697 = vmul.f32 %v2374, %v2599
    %v2698 = vmul.f32 %v2379, %v2604
    %v2699 = vmul.f32 %v2384, %v2609
    %v2700 = vmul.f32 %v2389, %v2614
    %v2701 = vmul.f32 %v2394, %v2619
    %v2702 = vmul.f32 %v2399, %v2624
    %v2703 = vmul.f32 %v2404, %v2629
    %v2704 = vmul.f32 %v2409, %v2634
    %v2705 = vmul.f32 %v2414, %v2639
    %v2706 = vmul.f32 %v2419, %v2644
    %v2707 = vmul.f32 %v2424, %v2649
    %v2708 = vmul.f32 %v2429, %v2654
    %v2709 = vmul.f32 %v2434, %v2659
    %v2710 = vmul.f32 %v2439, %v2664
    %v2711 = vmul.f32 %v2444, %v2669
    %v2712 = vmul.f32 %v2449, %v2674
    %v2713 = vmul.f32 %v2454, %v2679
    %v2714 = vld [vmem:[%s14] sm:$0xff]
    %v2715 = vld [vmem:[%s14 + $0x8] sm:$0xff]
    %v2716 = vld [vmem:[%s14 + $0x10] sm:$0xff]
    %v2717 = vld [vmem:[%s14 + $0x18] sm:$0xff]
    %v2718 = vld [vmem:[%s14 + $0x20] sm:$0xff]
    %v2719 = vld [vmem:[%s14 + $0x28] sm:$0xff]
    %v2720 = vld [vmem:[%s14 + $0x30] sm:$0xff]
    %v2721 = vld [vmem:[%s14 + $0x38] sm:$0xff]
    %v2723 = vsel %vm218, %v2682, 0
    %v2726 = vsel %vm218, %v2683, 0
    %v2729 = vsel %vm218, %v2684, 0
    %v2732 = vsel %vm218, %v2685, 0
    %v2735 = vsel %vm218, %v2686, 0
    %v2738 = vsel %vm218, %v2687, 0
    %v2741 = vsel %vm218, %v2688, 0
    %v2744 = vsel %vm218, %v2689, 0
    %v2747 = vsel %vm218, %v2690, 0
    %v2750 = vsel %vm218, %v2691, 0
    %v2753 = vsel %vm218, %v2692, 0
    %v2756 = vsel %vm218, %v2693, 0
    %v2759 = vsel %vm218, %v2694, 0
    %v2762 = vsel %vm218, %v2695, 0
    %v2765 = vsel %vm218, %v2696, 0
    %v2768 = vsel %vm218, %v2697, 0
    %v2771 = vsel %vm218, %v2698, 0
    %v2774 = vsel %vm218, %v2699, 0
    %v2777 = vsel %vm218, %v2700, 0
    %v2780 = vsel %vm218, %v2701, 0
    %v2783 = vsel %vm218, %v2702, 0
    %v2786 = vsel %vm218, %v2703, 0
    %v2789 = vsel %vm218, %v2704, 0
    %v2792 = vsel %vm218, %v2705, 0
    %v2795 = vsel %vm218, %v2706, 0
    %v2798 = vsel %vm218, %v2707, 0
    %v2801 = vsel %vm218, %v2708, 0
    %v2804 = vsel %vm218, %v2709, 0
    %v2807 = vsel %vm218, %v2710, 0
    %v2810 = vsel %vm218, %v2711, 0
    %v2813 = vsel %vm218, %v2712, 0
    %v2816 = vsel %vm218, %v2713, 0
    %2818 = vmatprep.subr.mxu0 0.0
    %2819 = vmatpush1.msra.mxu0 %v2714
    %2820 = vmatprep.subr.mxu0 0.0
    %2821 = vmatpush1.msra.mxu0 %v2715
    %2822 = vmatprep.subr.mxu0 0.0
    %2823 = vmatpush1.msra.mxu0 %v2716
    %2824 = vmatprep.subr.mxu0 0.0
    %2825 = vmatpush1.msra.mxu0 %v2717
    %2826 = vmatprep.subr.mxu0 0.0
    %2827 = vmatpush1.msra.mxu0 %v2718
    %2828 = vmatprep.subr.mxu0 0.0
    %2829 = vmatpush1.msra.mxu0 %v2719
    %2830 = vmatprep.subr.mxu0 0.0
    %2831 = vmatpush1.msra.mxu0 %v2720
    %2832 = vmatprep.subr.mxu0 0.0
    %2833 = vmatpush1.msra.mxu0 %v2721
    %2834 = vmatprep.subr.mxu0 0.0
    %2835 = vmatpush1.msra.mxu0 0.0
    %2836 = vmatprep.subr.mxu0 0.0
    %2837 = vmatpush1.msra.mxu0 0.0
    %2838 = vmatprep.subr.mxu0 0.0
    %2839 = vmatpush1.msra.mxu0 0.0
    %2840 = vmatprep.subr.mxu0 0.0
    %2841 = vmatpush1.msra.mxu0 0.0
    %2842 = vmatprep.subr.mxu0 0.0
    %2843 = vmatpush1.msra.mxu0 0.0
    %2844 = vmatprep.subr.mxu0 0.0
    %2845 = vmatpush1.msra.mxu0 0.0
    %2846 = vmatprep.subr.mxu0 0.0
    %2847 = vmatpush1.msra.mxu0 0.0
    %2848 = vmatprep.subr.mxu0 0.0
    %2849 = vmatpush1.msra.mxu0 0.0
    %2850 = vmatprep.subr.mxu0 0.0
    %2851 = vmatpush1.msra.mxu0 0.0
    %2852 = vmatprep.subr.mxu0 0.0
    %2853 = vmatpush1.msra.mxu0 0.0
    %2854 = vmatprep.subr.mxu0 0.0
    %2855 = vmatpush1.msra.mxu0 0.0
    %2856 = vmatprep.subr.mxu0 0.0
    %2857 = vmatpush1.msra.mxu0 0.0
    %2858 = vmatprep.subr.mxu0 0.0
    %2859 = vmatpush1.msra.mxu0 0.0
    %2860 = vmatprep.subr.mxu0 0.0
    %2861 = vmatpush1.msra.mxu0 0.0
    %2862 = vmatprep.subr.mxu0 0.0
    %2863 = vmatpush1.msra.mxu0 0.0
    %2864 = vmatprep.subr.mxu0 0.0
    %2865 = vmatpush1.msra.mxu0 0.0
    %2866 = vmatprep.subr.mxu0 0.0
    %2867 = vmatpush1.msra.mxu0 0.0
    %2868 = vmatprep.subr.mxu0 0.0
    %2869 = vmatpush1.msra.mxu0 0.0
    %2870 = vmatprep.subr.mxu0 0.0
    %2871 = vmatpush1.msra.mxu0 0.0
    %2872 = vmatprep.subr.mxu0 0.0
    %2873 = vmatpush1.msra.mxu0 0.0
    %2874 = vmatprep.subr.mxu0 0.0
    %2875 = vmatpush1.msra.mxu0 0.0
    %2876 = vmatprep.subr.mxu0 0.0
    %2877 = vmatpush1.msra.mxu0 0.0
    %2878 = vmatprep.subr.mxu0 0.0
    %2879 = vmatpush1.msra.mxu0 0.0
    %2880 = vmatprep.subr.mxu0 0.0
    %2881 = vmatpush1.msra.mxu0 0.0
    %2882 = vmatprep.mubr.f32.mxu0 0.0
    %2883 = vmatmul.mubr.f32.gmra.mrb[0].mxu0 %v2723
    %v2884 = vpop.f32.mrb[0].mxu0
    %v2885 = vadd.f32 0.0, %v2884
    %v2886 = vpop.f32.mrb[0].mxu0
    %2887 = vmatprep.mubr.f32.mxu0 0.0
    %2888 = vmatmul.mubr.f32.gmra.mrb[0].mxu0 %v2726
    %v2889 = vpop.f32.mrb[0].mxu0
    %v2890 = vadd.f32 0.0, %v2889
    %v2891 = vpop.f32.mrb[0].mxu0
    %2892 = vmatprep.mubr.f32.mxu0 0.0
    %2893 = vmatmul.mubr.f32.gmra.mrb[0].mxu0 %v2729
    %v2894 = vpop.f32.mrb[0].mxu0
    %v2895 = vadd.f32 0.0, %v2894
    %v2896 = vpop.f32.mrb[0].mxu0
    %2897 = vmatprep.mubr.f32.mxu0 0.0
    %2898 = vmatmul.mubr.f32.gmra.mrb[0].mxu0 %v2732
    %v2899 = vpop.f32.mrb[0].mxu0
    %v2900 = vadd.f32 0.0, %v2899
    %v2901 = vpop.f32.mrb[0].mxu0
    %2902 = vmatprep.mubr.f32.mxu0 0.0
    %2903 = vmatmul.mubr.f32.gmra.mrb[0].mxu0 %v2735
    %v2904 = vpop.f32.mrb[0].mxu0
    %v2905 = vadd.f32 0.0, %v2904
    %v2906 = vpop.f32.mrb[0].mxu0
    %2907 = vmatprep.mubr.f32.mxu0 0.0
    %2908 = vmatmul.mubr.f32.gmra.mrb[0].mxu0 %v2738
    %v2909 = vpop.f32.mrb[0].mxu0
    %v2910 = vadd.f32 0.0, %v2909
    %v2911 = vpop.f32.mrb[0].mxu0
    %2912 = vmatprep.mubr.f32.mxu0 0.0
    %2913 = vmatmul.mubr.f32.gmra.mrb[0].mxu0 %v2741
    %v2914 = vpop.f32.mrb[0].mxu0
    %v2915 = vadd.f32 0.0, %v2914
    %v2916 = vpop.f32.mrb[0].mxu0
    %2917 = vmatprep.mubr.f32.mxu0 0.0
    %2918 = vmatmul.mubr.f32.gmra.mrb[0].mxu0 %v2744
    %v2919 = vpop.f32.mrb[0].mxu0
    %v2920 = vadd.f32 0.0, %v2919
    %v2921 = vpop.f32.mrb[0].mxu0
    %2922 = vmatprep.mubr.f32.mxu0 0.0
    %2923 = vmatmul.mubr.f32.gmra.mrb[0].mxu0 %v2747
    %v2924 = vpop.f32.mrb[0].mxu0
    %v2925 = vadd.f32 0.0, %v2924
    %v2926 = vpop.f32.mrb[0].mxu0
    %2927 = vmatprep.mubr.f32.mxu0 0.0
    %2928 = vmatmul.mubr.f32.gmra.mrb[0].mxu0 %v2750
    %v2929 = vpop.f32.mrb[0].mxu0
    %v2930 = vadd.f32 0.0, %v2929
    %v2931 = vpop.f32.mrb[0].mxu0
    %2932 = vmatprep.mubr.f32.mxu0 0.0
    %2933 = vmatmul.mubr.f32.gmra.mrb[0].mxu0 %v2753
    %v2934 = vpop.f32.mrb[0].mxu0
    %v2935 = vadd.f32 0.0, %v2934
    %v2936 = vpop.f32.mrb[0].mxu0
    %2937 = vmatprep.mubr.f32.mxu0 0.0
    %2938 = vmatmul.mubr.f32.gmra.mrb[0].mxu0 %v2756
    %v2939 = vpop.f32.mrb[0].mxu0
    %v2940 = vadd.f32 0.0, %v2939
    %v2941 = vpop.f32.mrb[0].mxu0
    %2942 = vmatprep.mubr.f32.mxu0 0.0
    %2943 = vmatmul.mubr.f32.gmra.mrb[0].mxu0 %v2759
    %v2944 = vpop.f32.mrb[0].mxu0
    %v2945 = vadd.f32 0.0, %v2944
    %v2946 = vpop.f32.mrb[0].mxu0
    %2947 = vmatprep.mubr.f32.mxu0 0.0
    %2948 = vmatmul.mubr.f32.gmra.mrb[0].mxu0 %v2762
    %v2949 = vpop.f32.mrb[0].mxu0
    %v2950 = vadd.f32 0.0, %v2949
    %v2951 = vpop.f32.mrb[0].mxu0
    %2952 = vmatprep.mubr.f32.mxu0 0.0
    %2953 = vmatmul.mubr.f32.gmra.mrb[0].mxu0 %v2765
    %v2954 = vpop.f32.mrb[0].mxu0
    %v2955 = vadd.f32 0.0, %v2954
    %v2956 = vpop.f32.mrb[0].mxu0
    %2957 = vmatprep.mubr.f32.mxu0 0.0
    %2958 = vmatmul.mubr.f32.gmra.mrb[0].mxu0 %v2768
    %v2959 = vpop.f32.mrb[0].mxu0
    %v2960 = vadd.f32 0.0, %v2959
    %v2961 = vpop.f32.mrb[0].mxu0
    %2962 = vmatprep.mubr.f32.mxu0 0.0
    %2963 = vmatmul.mubr.f32.gmra.mrb[0].mxu0 %v2771
    %v2964 = vpop.f32.mrb[0].mxu0
    %v2965 = vadd.f32 0.0, %v2964
    %v2966 = vpop.f32.mrb[0].mxu0
    %2967 = vmatprep.mubr.f32.mxu0 0.0
    %2968 = vmatmul.mubr.f32.gmra.mrb[0].mxu0 %v2774
    %v2969 = vpop.f32.mrb[0].mxu0
    %v2970 = vadd.f32 0.0, %v2969
    %v2971 = vpop.f32.mrb[0].mxu0
    %2972 = vmatprep.mubr.f32.mxu0 0.0
    %2973 = vmatmul.mubr.f32.gmra.mrb[0].mxu0 %v2777
    %v2974 = vpop.f32.mrb[0].mxu0
    %v2975 = vadd.f32 0.0, %v2974
    %v2976 = vpop.f32.mrb[0].mxu0
    %2977 = vmatprep.mubr.f32.mxu0 0.0
    %2978 = vmatmul.mubr.f32.gmra.mrb[0].mxu0 %v2780
    %v2979 = vpop.f32.mrb[0].mxu0
    %v2980 = vadd.f32 0.0, %v2979
    %v2981 = vpop.f32.mrb[0].mxu0
    %2982 = vmatprep.mubr.f32.mxu0 0.0
    %2983 = vmatmul.mubr.f32.gmra.mrb[0].mxu0 %v2783
    %v2984 = vpop.f32.mrb[0].mxu0
    %v2985 = vadd.f32 0.0, %v2984
    %v2986 = vpop.f32.mrb[0].mxu0
    %2987 = vmatprep.mubr.f32.mxu0 0.0
    %2988 = vmatmul.mubr.f32.gmra.mrb[0].mxu0 %v2786
    %v2989 = vpop.f32.mrb[0].mxu0
    %v2990 = vadd.f32 0.0, %v2989
    %v2991 = vpop.f32.mrb[0].mxu0
    %2992 = vmatprep.mubr.f32.mxu0 0.0
    %2993 = vmatmul.mubr.f32.gmra.mrb[0].mxu0 %v2789
    %v2994 = vpop.f32.mrb[0].mxu0
    %v2995 = vadd.f32 0.0, %v2994
    %v2996 = vpop.f32.mrb[0].mxu0
    %2997 = vmatprep.mubr.f32.mxu0 0.0
    %2998 = vmatmul.mubr.f32.gmra.mrb[0].mxu0 %v2792
    %v2999 = vpop.f32.mrb[0].mxu0
    %v3000 = vadd.f32 0.0, %v2999
    %v3001 = vpop.f32.mrb[0].mxu0
    %3002 = vmatprep.mubr.f32.mxu0 0.0
    %3003 = vmatmul.mubr.f32.gmra.mrb[0].mxu0 %v2795
    %v3004 = vpop.f32.mrb[0].mxu0
    %v3005 = vadd.f32 0.0, %v3004
    %v3006 = vpop.f32.mrb[0].mxu0
    %3007 = vmatprep.mubr.f32.mxu0 0.0
    %3008 = vmatmul.mubr.f32.gmra.mrb[0].mxu0 %v2798
    %v3009 = vpop.f32.mrb[0].mxu0
    %v3010 = vadd.f32 0.0, %v3009
    %v3011 = vpop.f32.mrb[0].mxu0
    %3012 = vmatprep.mubr.f32.mxu0 0.0
    %3013 = vmatmul.mubr.f32.gmra.mrb[0].mxu0 %v2801
    %v3014 = vpop.f32.mrb[0].mxu0
    %v3015 = vadd.f32 0.0, %v3014
    %v3016 = vpop.f32.mrb[0].mxu0
    %3017 = vmatprep.mubr.f32.mxu0 0.0
    %3018 = vmatmul.mubr.f32.gmra.mrb[0].mxu0 %v2804
    %v3019 = vpop.f32.mrb[0].mxu0
    %v3020 = vadd.f32 0.0, %v3019
    %v3021 = vpop.f32.mrb[0].mxu0
    %3022 = vmatprep.mubr.f32.mxu0 0.0
    %3023 = vmatmul.mubr.f32.gmra.mrb[0].mxu0 %v2807
    %v3024 = vpop.f32.mrb[0].mxu0
    %v3025 = vadd.f32 0.0, %v3024
    %v3026 = vpop.f32.mrb[0].mxu0
    %3027 = vmatprep.mubr.f32.mxu0 0.0
    %3028 = vmatmul.mubr.f32.gmra.mrb[0].mxu0 %v2810
    %v3029 = vpop.f32.mrb[0].mxu0
    %v3030 = vadd.f32 0.0, %v3029
    %v3031 = vpop.f32.mrb[0].mxu0
    %3032 = vmatprep.mubr.f32.mxu0 0.0
    %3033 = vmatmul.mubr.f32.gmra.mrb[0].mxu0 %v2813
    %v3034 = vpop.f32.mrb[0].mxu0
    %v3035 = vadd.f32 0.0, %v3034
    %v3036 = vpop.f32.mrb[0].mxu0
    %3037 = vmatprep.mubr.f32.mxu0 0.0
    %3038 = vmatmul.mubr.f32.gmra.mrb[0].mxu0 %v2816
    %v3039 = vpop.f32.mrb[0].mxu0
    %v3040 = vadd.f32 0.0, %v3039
    %v3041 = vpop.f32.mrb[0].mxu0
    %3042 = vdwg.mxu0
    %vm3043 = vcmp.ne.f32.partialorder %v516, 0.0
    %vm3044 = vcmp.ne.f32.partialorder %v517, 0.0
    %vm3045 = vcmp.ne.f32.partialorder %v518, 0.0
    %vm3046 = vcmp.ne.f32.partialorder %v519, 0.0
    %vm3047 = vcmp.ne.f32.partialorder %v520, 0.0
    %vm3048 = vcmp.ne.f32.partialorder %v521, 0.0
    %vm3049 = vcmp.ne.f32.partialorder %v522, 0.0
    %vm3050 = vcmp.ne.f32.partialorder %v523, 0.0
    %vm3051 = vcmp.ne.f32.partialorder %v524, 0.0
    %vm3052 = vcmp.ne.f32.partialorder %v525, 0.0
    %vm3053 = vcmp.ne.f32.partialorder %v526, 0.0
    %vm3054 = vcmp.ne.f32.partialorder %v527, 0.0
    %vm3055 = vcmp.ne.f32.partialorder %v528, 0.0
    %vm3056 = vcmp.ne.f32.partialorder %v529, 0.0
    %vm3057 = vcmp.ne.f32.partialorder %v530, 0.0
    %vm3058 = vcmp.ne.f32.partialorder %v531, 0.0
    %vm3059 = vcmp.ne.f32.partialorder %v532, 0.0
    %vm3060 = vcmp.ne.f32.partialorder %v533, 0.0
    %vm3061 = vcmp.ne.f32.partialorder %v534, 0.0
    %vm3062 = vcmp.ne.f32.partialorder %v535, 0.0
    %vm3063 = vcmp.ne.f32.partialorder %v536, 0.0
    %vm3064 = vcmp.ne.f32.partialorder %v537, 0.0
    %vm3065 = vcmp.ne.f32.partialorder %v538, 0.0
    %vm3066 = vcmp.ne.f32.partialorder %v539, 0.0
    %vm3067 = vcmp.ne.f32.partialorder %v540, 0.0
    %vm3068 = vcmp.ne.f32.partialorder %v541, 0.0
    %vm3069 = vcmp.ne.f32.partialorder %v542, 0.0
    %vm3070 = vcmp.ne.f32.partialorder %v543, 0.0
    %vm3071 = vcmp.ne.f32.partialorder %v544, 0.0
    %vm3072 = vcmp.ne.f32.partialorder %v545, 0.0
    %vm3073 = vcmp.ne.f32.partialorder %v546, 0.0
    %vm3074 = vcmp.ne.f32.partialorder %v547, 0.0
    %v3075 = vsel %vm3043, %v2885, 0.0
    %v3076 = vsel %vm3044, %v2890, 0.0
    %v3077 = vsel %vm3045, %v2895, 0.0
    %v3078 = vsel %vm3046, %v2900, 0.0
    %v3079 = vsel %vm3047, %v2905, 0.0
    %v3080 = vsel %vm3048, %v2910, 0.0
    %v3081 = vsel %vm3049, %v2915, 0.0
    %v3082 = vsel %vm3050, %v2920, 0.0
    %v3083 = vsel %vm3051, %v2925, 0.0
    %v3084 = vsel %vm3052, %v2930, 0.0
    %v3085 = vsel %vm3053, %v2935, 0.0
    %v3086 = vsel %vm3054, %v2940, 0.0
    %v3087 = vsel %vm3055, %v2945, 0.0
    %v3088 = vsel %vm3056, %v2950, 0.0
    %v3089 = vsel %vm3057, %v2955, 0.0
    %v3090 = vsel %vm3058, %v2960, 0.0
    %v3091 = vsel %vm3059, %v2965, 0.0
    %v3092 = vsel %vm3060, %v2970, 0.0
    %v3093 = vsel %vm3061, %v2975, 0.0
    %v3094 = vsel %vm3062, %v2980, 0.0
    %v3095 = vsel %vm3063, %v2985, 0.0
    %v3096 = vsel %vm3064, %v2990, 0.0
    %v3097 = vsel %vm3065, %v2995, 0.0
    %v3098 = vsel %vm3066, %v3000, 0.0
    %v3099 = vsel %vm3067, %v3005, 0.0
    %v3100 = vsel %vm3068, %v3010, 0.0
    %v3101 = vsel %vm3069, %v3015, 0.0
    %v3102 = vsel %vm3070, %v3020, 0.0
    %v3103 = vsel %vm3071, %v3025, 0.0
    %v3104 = vsel %vm3072, %v3030, 0.0
    %v3105 = vsel %vm3073, %v3035, 0.0
    %v3106 = vsel %vm3074, %v3040, 0.0
    %v3107 = vld [vmem:[#allocation10] sm:$0xff]
    %v3108 = vld [vmem:[#allocation10 + $0x8] sm:$0xff]
    %v3109 = vld [vmem:[#allocation10 + $0x10] sm:$0xff]
    %v3110 = vld [vmem:[#allocation10 + $0x18] sm:$0xff]
    %v3111 = vld [vmem:[#allocation10 + $0x20] sm:$0xff]
    %v3112 = vld [vmem:[#allocation10 + $0x28] sm:$0xff]
    %v3113 = vld [vmem:[#allocation10 + $0x30] sm:$0xff]
    %v3114 = vld [vmem:[#allocation10 + $0x38] sm:$0xff]
    %3115 = vmatprep.subr.mxu0 0.0
    %3116 = vmatpush1.msra.mxu0 %v3075
    %3117 = vmatprep.subr.mxu0 0.0
    %3118 = vmatpush1.msra.mxu0 %v3076
    %3119 = vmatprep.subr.mxu0 0.0
    %3120 = vmatpush1.msra.mxu0 %v3077
    %3121 = vmatprep.subr.mxu0 0.0
    %3122 = vmatpush1.msra.mxu0 %v3078
    %3123 = vmatprep.subr.mxu0 0.0
    %3124 = vmatpush1.msra.mxu0 %v3079
    %3125 = vmatprep.subr.mxu0 0.0
    %3126 = vmatpush1.msra.mxu0 %v3080
    %3127 = vmatprep.subr.mxu0 0.0
    %3128 = vmatpush1.msra.mxu0 %v3081
    %3129 = vmatprep.subr.mxu0 0.0
    %3130 = vmatpush1.msra.mxu0 %v3082
    %3131 = vmatprep.subr.mxu0 0.0
    %3132 = vmatpush1.msra.mxu0 %v3083
    %3133 = vmatprep.subr.mxu0 0.0
    %3134 = vmatpush1.msra.mxu0 %v3084
    %3135 = vmatprep.subr.mxu0 0.0
    %3136 = vmatpush1.msra.mxu0 %v3085
    %3137 = vmatprep.subr.mxu0 0.0
    %3138 = vmatpush1.msra.mxu0 %v3086
    %3139 = vmatprep.subr.mxu0 0.0
    %3140 = vmatpush1.msra.mxu0 %v3087
    %3141 = vmatprep.subr.mxu0 0.0
    %3142 = vmatpush1.msra.mxu0 %v3088
    %3143 = vmatprep.subr.mxu0 0.0
    %3144 = vmatpush1.msra.mxu0 %v3089
    %3145 = vmatprep.subr.mxu0 0.0
    %3146 = vmatpush1.msra.mxu0 %v3090
    %3147 = vmatprep.subr.mxu0 0.0
    %3148 = vmatpush1.msra.mxu0 %v3091
    %3149 = vmatprep.subr.mxu0 0.0
    %3150 = vmatpush1.msra.mxu0 %v3092
    %3151 = vmatprep.subr.mxu0 0.0
    %3152 = vmatpush1.msra.mxu0 %v3093
    %3153 = vmatprep.subr.mxu0 0.0
    %3154 = vmatpush1.msra.mxu0 %v3094
    %3155 = vmatprep.subr.mxu0 0.0
    %3156 = vmatpush1.msra.mxu0 %v3095
    %3157 = vmatprep.subr.mxu0 0.0
    %3158 = vmatpush1.msra.mxu0 %v3096
    %3159 = vmatprep.subr.mxu0 0.0
    %3160 = vmatpush1.msra.mxu0 %v3097
    %3161 = vmatprep.subr.mxu0 0.0
    %3162 = vmatpush1.msra.mxu0 %v3098
    %3163 = vmatprep.subr.mxu0 0.0
    %3164 = vmatpush1.msra.mxu0 %v3099
    %3165 = vmatprep.subr.mxu0 0.0
    %3166 = vmatpush1.msra.mxu0 %v3100
    %3167 = vmatprep.subr.mxu0 0.0
    %3168 = vmatpush1.msra.mxu0 %v3101
    %3169 = vmatprep.subr.mxu0 0.0
    %3170 = vmatpush1.msra.mxu0 %v3102
    %3171 = vmatprep.subr.mxu0 0.0
    %3172 = vmatpush1.msra.mxu0 %v3103
    %3173 = vmatprep.subr.mxu0 0.0
    %3174 = vmatpush1.msra.mxu0 %v3104
    %3175 = vmatprep.subr.mxu0 0.0
    %3176 = vmatpush1.msra.mxu0 %v3105
    %3177 = vmatprep.subr.mxu0 0.0
    %3178 = vmatpush1.msra.mxu0 %v3106
    %3179 = vmatprep.mubr.f32.mxu0 %v3108
    %3180 = vmatmul.mubr.f32.gmra.mrb[0].mxu0 %v3107
    %v3181 = vpop.f32.mrb[0].mxu0
    %v3182 = vadd.f32 0.0, %v3181
    %v3183 = vpop.f32.mrb[0].mxu0
    %3184 = vmatprep.mubr.f32.mxu0 %v3110
    %3185 = vmatmul.mubr.f32.gmra.mrb[0].mxu0 %v3109
    %v3186 = vpop.f32.mrb[0].mxu0
    %v3187 = vadd.f32 0.0, %v3186
    %v3188 = vpop.f32.mrb[0].mxu0
    %3189 = vmatprep.mubr.f32.mxu0 %v3112
    %3190 = vmatmul.mubr.f32.gmra.mrb[0].mxu0 %v3111
    %v3191 = vpop.f32.mrb[0].mxu0
    %v3192 = vadd.f32 0.0, %v3191
    %v3193 = vpop.f32.mrb[0].mxu0
    %3194 = vmatprep.mubr.f32.mxu0 %v3114
    %3195 = vmatmul.mubr.f32.gmra.mrb[0].mxu0 %v3113
    %v3196 = vpop.f32.mrb[0].mxu0
    %v3197 = vadd.f32 0.0, %v3196
    %v3198 = vpop.f32.mrb[0].mxu0
    %3199 = vdwg.mxu0
    %3200 = vst.msk [vmem:[%s15] sm:$0xff] %vm218, %v3182
    %3201 = vst.msk [vmem:[%s15 + $0x8] sm:$0xff] %vm218, %v3187
    %3202 = vst.msk [vmem:[%s15 + $0x10] sm:$0xff] %vm218, %v3192
    %3203 = vst.msk [vmem:[%s15 + $0x18] sm:$0xff] %vm218, %v3197
    // Predicated region
    $region106: #{window_attention.1} parent=1 // pred_check
      _
    $region107: #{window_attention.1} parent=1 // pred_check_branch
      %3205 = sbr.rel (0) target = $region109
    $region108: #{window_attention.1} parent=1 // pred_region
      _
    $region109: #{window_attention.1} parent=1 // pred_fallthru
      _
    // Predicated region
    $region110: #{window_attention.1} parent=1 // pred_check
      _
    $region111: #{window_attention.1} parent=1 // pred_check_branch
      %3207 = sbr.rel (0) target = $region113
    $region112: #{window_attention.1} parent=1 // pred_region
      _
    $region113: #{window_attention.1} parent=1 // pred_fallthru
      _
    %3208 = vsyncpa [#allocation3], 1
    %3209 = vsyncpa [#allocation5], 1
    %3210 = vsyncpa [#allocation8], 1
    %3211 = vsyncpa [#allocation11], 1
    %3212 = vsyncpa [#allocation14], 1
    %3213 = vsyncpa [#allocation17], 1

</llo_original>
